<compile_context>
chip_gen: v6e
topology: v6e:2x2x1
jax: 0.10.0
libtpu: 0.0.40
codegen_flags: <defaults>
</compile_context>

<pallas_src>
import jax
import jax.numpy as jnp
from jax import lax
from jax.experimental import pallas as pl
from jax.experimental.pallas import tpu as pltpu


# ---------------------------------------------------------------------------
# small helpers
# ---------------------------------------------------------------------------
def _round_up(x, m):
    return ((x + m - 1) // m) * m


def _pad_axis(x, axis, new):
    pads = [(0, 0)] * x.ndim
    pads[axis] = (0, new - x.shape[axis])
    return jnp.pad(x, pads)


def _pad_blocks(x, axis, n_blocks, blk_pad):
    """Split x into n_blocks along `axis` (e.g. GRU gates) and zero-pad each
    block to blk_pad so every gate slab is lane aligned."""
    parts = jnp.split(x, n_blocks, axis=axis)
    return jnp.concatenate([_pad_axis(p, axis, blk_pad) for p in parts],
                           axis=axis)


# ---------------------------------------------------------------------------
# generic tiled matmul + bias kernel  (used for the hoisted decoder input
# projection and for the vocab projection; both grid axes are 'parallel')
# ---------------------------------------------------------------------------
def matmul_bias_kernel(x_ref, w_ref, b_ref, o_ref):
    o_ref[...] = (jnp.dot(x_ref[...], w_ref[...],
                          preferred_element_type=jnp.float32) + b_ref[...])


def _matmul_bias(x, w, b):
    M, K = x.shape
    N = w.shape[1]
    tm = next((c for c in (512, 256, 128, 64, 32, 16, 8) if M % c == 0), M)
    tn = next((c for c in (512, 256, 128) if N % c == 0), N)
    # TODO(synk): no K-axis tiling (K is a single 128-wide block at these sizes).
    return pl.pallas_call(
        matmul_bias_kernel,
        out_shape=jax.ShapeDtypeStruct((M, N), jnp.float32),
        grid=(M // tm, N // tn),
        in_specs=[pl.BlockSpec((tm, K), lambda i, j: (i, 0)),
                  pl.BlockSpec((K, tn), lambda i, j: (0, j)),
                  pl.BlockSpec((1, tn), lambda i, j: (0, j))],
        out_specs=pl.BlockSpec((tm, tn), lambda i, j: (i, j)),
        compiler_params=pltpu.CompilerParams(
            dimension_semantics=("parallel", "parallel")),
    )(x, w, b)


# ---------------------------------------------------------------------------
# encoder kernel: bidirectional single-layer GRU with length masking.
# Input->hidden projections are hoisted into two big MXU matmuls; the forward
# and backward recurrences share one loop and one (2B, 3H) gate computation.
# ---------------------------------------------------------------------------
def encoder_kernel(x_ref, mask_ref,
                   wif_ref, whf_ref, bif_ref, bhf_ref,
                   wib_ref, whb_ref, bib_ref, bhb_ref,
                   out_f_ref, out_b_ref, hlast_b_ref,
                   gi_f_scr, gi_b_scr):
    S, B, E = x_ref.shape
    H = whf_ref.shape[0]

    # hoisted input projections: one (S*B, E) x (E, 3H) matmul per direction
    x2d = x_ref[...].reshape(S * B, E)
    gi_f_scr[...] = (jnp.dot(x2d, wif_ref[...],
                             preferred_element_type=jnp.float32)
                     + bif_ref[...]).reshape(S, B, 3 * H)
    gi_b_scr[...] = (jnp.dot(x2d, wib_ref[...],
                             preferred_element_type=jnp.float32)
                     + bib_ref[...]).reshape(S, B, 3 * H)

    h0 = jnp.zeros((2 * B, H), jnp.float32)        # rows [0:B] fwd, [B:2B] bwd

    def step(t, h):
        tb = S - 1 - t
        m_f = mask_ref[t]                           # (B, 1)
        m_b = mask_ref[tb]
        gh_f = (jnp.dot(h[0:B], whf_ref[...],
                        preferred_element_type=jnp.float32) + bhf_ref[...])
        gh_b = (jnp.dot(h[B:2 * B], whb_ref[...],
                        preferred_element_type=jnp.float32) + bhb_ref[...])
        gi = jnp.concatenate([gi_f_scr[t], gi_b_scr[tb]], axis=0)   # (2B, 3H)
        gh = jnp.concatenate([gh_f, gh_b], axis=0)                  # (2B, 3H)
        r = jax.nn.sigmoid(gi[:, 0:H] + gh[:, 0:H])
        z = jax.nn.sigmoid(gi[:, H:2 * H] + gh[:, H:2 * H])
        n = jnp.tanh(gi[:, 2 * H:3 * H] + r * gh[:, 2 * H:3 * H])
        h_new = (1.0 - z) * n + z * h
        m = jnp.concatenate([m_f, m_b], axis=0)                     # (2B, 1)
        h = m * h_new + (1.0 - m) * h
        # pack_padded_sequence semantics: padded steps emit zeros, carry hidden
        out_f_ref[t] = h[0:B] * m_f
        out_b_ref[tb] = h[B:2 * B] * m_b
        return h

    h_fin = lax.fori_loop(0, S, step, h0)
    hlast_b_ref[...] = h_fin[B:2 * B]               # src_last[1]: bwd last hidden


def _run_encoder(x_tm, mask_tm, q):
    S, B, _ = x_tm.shape
    H = q['enc_whf'].shape[0]
    args = (x_tm, mask_tm,
            q['enc_wif'], q['enc_whf'], q['enc_bif'], q['enc_bhf'],
            q['enc_wib'], q['enc_whb'], q['enc_bib'], q['enc_bhb'])
    vmem = lambda: pl.BlockSpec(memory_space=pltpu.MemorySpace.VMEM)
    return pl.pallas_call(
        encoder_kernel,
        out_shape=(jax.ShapeDtypeStruct((S, B, H), jnp.float32),
                   jax.ShapeDtypeStruct((S, B, H), jnp.float32),
                   jax.ShapeDtypeStruct((B, H), jnp.float32)),
        in_specs=[vmem() for _ in args],
        out_specs=(vmem(), vmem(), vmem()),
        scratch_shapes=[pltpu.VMEM((S, B, 3 * H), jnp.float32),
                        pltpu.VMEM((S, B, 3 * H), jnp.float32)],
    )(*args)


# ---------------------------------------------------------------------------
# decoder recurrence kernel: gridded over target time.
# gi (input projection) is precomputed and streamed per step; GRU hidden is
# carried in a VMEM scratch; attention runs as batched MXU contractions.
# ---------------------------------------------------------------------------
def decoder_kernel(gi_ref, hsrc_ref, src_out_ref, neg_ref,
                   w_init_ref, b_init_ref, wh_ref, bh_ref,
                   w_attn_ref, w_ch_ref, w_cc_ref, b_c_ref,
                   comb_ref, h_scr):
    t = pl.program_id(0)
    H = wh_ref.shape[0]

    @pl.when(t == 0)
    def _init():
        # DecInit: tanh(W_init @ h_bwd_last + b)
        h_scr[...] = jnp.tanh(
            jnp.dot(hsrc_ref[...], w_init_ref[...],
                    preferred_element_type=jnp.float32) + b_init_ref[...])

    h_prev = h_scr[...]
    gi = gi_ref[0]                                               # (B, 3H)
    gh = (jnp.dot(h_prev, wh_ref[...], preferred_element_type=jnp.float32)
          + bh_ref[...])
    r = jax.nn.sigmoid(gi[:, 0:H] + gh[:, 0:H])
    z = jax.nn.sigmoid(gi[:, H:2 * H] + gh[:, H:2 * H])
    n = jnp.tanh(gi[:, 2 * H:3 * H] + r * gh[:, 2 * H:3 * H])
    h = (1.0 - z) * n + z * h_prev
    h_scr[...] = h

    src_out = src_out_ref[...]                                   # (B, S, 2He)
    q = jnp.dot(h, w_attn_ref[...], preferred_element_type=jnp.float32)
    # general attention on the MXU (flash-attention style batched einsums)
    scores = jnp.einsum('bqd,bsd->bqs', q[:, None, :], src_out,
                        preferred_element_type=jnp.float32)      # (B, 1, S)
    scores = scores + neg_ref[...]
    scores = scores - jnp.max(scores, axis=-1, keepdims=True)
    e = jnp.exp(scores)
    p = e * pl.reciprocal(jnp.sum(e, axis=-1, keepdims=True), approx=True)
    ctx3 = jnp.einsum('bqs,bsd->bqd', p, src_out,
                      preferred_element_type=jnp.float32)        # (B, 1, 2He)
    ctx = jnp.sum(ctx3, axis=1)     # squeeze unit axis via reduce (robust lowering)
    comb_ref[0] = jnp.tanh(
        jnp.dot(h, w_ch_ref[...], preferred_element_type=jnp.float32)
        + jnp.dot(ctx, w_cc_ref[...], preferred_element_type=jnp.float32)
        + b_c_ref[...])


def _run_decoder(gi_dec, h_bwd, src_out, neg3, q):
    T, B, G = gi_dec.shape
    Hd = q['dec_wh'].shape[0]

    def full(shape):
        return pl.BlockSpec(shape, lambda t: (0,) * len(shape))

    in_specs = [
        pl.BlockSpec((1, B, G), lambda t: (t, 0, 0)),   # streamed gi block
        full(h_bwd.shape),
        full(src_out.shape),
        full(neg3.shape),
        full(q['w_init'].shape), full(q['b_init'].shape),
        full(q['dec_wh'].shape), full(q['dec_bh'].shape),
        full(q['w_attn'].shape), full(q['w_ch'].shape),
        full(q['w_cc'].shape), full(q['b_c'].shape),
    ]
    return pl.pallas_call(
        decoder_kernel,
        out_shape=jax.ShapeDtypeStruct((T, B, Hd), jnp.float32),
        grid=(T,),
        in_specs=in_specs,
        out_specs=pl.BlockSpec((1, B, Hd), lambda t: (t, 0, 0)),
        scratch_shapes=[pltpu.VMEM((B, Hd), jnp.float32)],
        compiler_params=pltpu.CompilerParams(
            dimension_semantics=("arbitrary",)),
    )(gi_dec, h_bwd, src_out, neg3,
      q['w_init'], q['b_init'], q['dec_wh'], q['dec_bh'],
      q['w_attn'], q['w_ch'], q['w_cc'], q['b_c'])


# ---------------------------------------------------------------------------
# parameter padding (gate / lane alignment)
# ---------------------------------------------------------------------------
def _prepare_params(p, E_pad, He_pad, Hd_pad, V_pad):
    q = {}
    q['src_embed'] = _pad_axis(p['src_embed'], 1, E_pad)
    q['tgt_embed'] = _pad_axis(p['tgt_embed'], 1, E_pad)
    for d in ('f', 'b'):
        q[f'enc_wi{d}'] = _pad_axis(_pad_blocks(p[f'enc_wi{d}'], 1, 3, He_pad),
                                    0, E_pad)
        q[f'enc_wh{d}'] = _pad_axis(_pad_blocks(p[f'enc_wh{d}'], 1, 3, He_pad),
                                    0, He_pad)
        q[f'enc_bi{d}'] = _pad_blocks(p[f'enc_bi{d}'], 1, 3, He_pad)
        q[f'enc_bh{d}'] = _pad_blocks(p[f'enc_bh{d}'], 1, 3, He_pad)
    q['w_init'] = _pad_axis(_pad_axis(p['w_init'], 1, Hd_pad), 0, He_pad)
    q['b_init'] = _pad_axis(p['b_init'], 1, Hd_pad)
    q['dec_wi'] = _pad_axis(_pad_blocks(p['dec_wi'], 1, 3, Hd_pad), 0, E_pad)
    q['dec_wh'] = _pad_axis(_pad_blocks(p['dec_wh'], 1, 3, Hd_pad), 0, Hd_pad)
    q['dec_bi'] = _pad_blocks(p['dec_bi'], 1, 3, Hd_pad)
    q['dec_bh'] = _pad_blocks(p['dec_bh'], 1, 3, Hd_pad)
    q['w_attn'] = _pad_axis(_pad_blocks(p['w_attn'], 1, 2, He_pad), 0, Hd_pad)
    q['w_ch'] = _pad_axis(_pad_axis(p['w_ch'], 1, Hd_pad), 0, Hd_pad)
    q['w_cc'] = _pad_axis(_pad_blocks(p['w_cc'], 0, 2, He_pad), 1, Hd_pad)
    q['b_c'] = _pad_axis(p['b_c'], 1, Hd_pad)
    q['w_out'] = _pad_axis(_pad_axis(p['w_out'], 1, V_pad), 0, Hd_pad)
    q['b_out'] = _pad_axis(p['b_out'], 1, V_pad)
    return q


# ---------------------------------------------------------------------------
# forward wrapper (mirrors Seq2seq.forward, returns logits (B, T_tgt, V_tgt))
# ---------------------------------------------------------------------------
def seq2seq_forward(params, src_in, len_src, tgt_in, len_tgt):
    B, S = src_in.shape
    _, T = tgt_in.shape
    E = params['src_embed'].shape[1]
    He = params['enc_whf'].shape[0]
    Hd = params['dec_wh'].shape[0]
    V = params['w_out'].shape[1]

    E_pad = _round_up(E, 128)
    He_pad = _round_up(He, 128)
    Hd_pad = _round_up(Hd, 128)
    V_pad = _round_up(V, 128)
    B_pad = _round_up(B, 8)

    q = _prepare_params(params, E_pad, He_pad, Hd_pad, V_pad)

    # pad batch (padded rows get length 0; their outputs are sliced away)
    len_src_p = jnp.pad(len_src, (0, B_pad - B))
    src_ids = jnp.pad(src_in, ((0, B_pad - B), (0, 0)))
    tgt_ids = jnp.pad(tgt_in, ((0, B_pad - B), (0, 0)))

    # embedding lookups directly in time-major layout (XLA glue)
    src_emb = jnp.take(q['src_embed'], src_ids.T, axis=0).astype(jnp.float32)
    tgt_emb = jnp.take(q['tgt_embed'], tgt_ids.T, axis=0).astype(jnp.float32)

    # masks from lengths
    mask_tm = (jnp.arange(S)[:, None] < len_src_p[None, :]
               ).astype(jnp.float32)[:, :, None]                   # (S, Bp, 1)
    neg3 = jnp.where(jnp.arange(S)[None, :] < len_src_p[:, None],
                     0.0, -1e9).astype(jnp.float32)[:, None, :]    # (Bp, 1, S)

    # encoder (bi-GRU)
    out_f, out_b, h_bwd = _run_encoder(src_emb, mask_tm, q)
    # TODO(synk): batch-major relayout of src_out done by XLA (one HBM pass);
    # could be fused into the encoder kernel with strided stores.
    src_out = jnp.concatenate(
        [jnp.transpose(out_f, (1, 0, 2)), jnp.transpose(out_b, (1, 0, 2))],
        axis=-1)                                                    # (Bp, S, 2He_pad)

    # hoisted decoder input projection (single big MXU matmul)
    gi_dec = _matmul_bias(tgt_emb.reshape(T * B_pad, E_pad),
                          q['dec_wi'], q['dec_bi']).reshape(T, B_pad,
                                                            3 * Hd_pad)

    # decoder recurrence + attention, then tiled vocab projection
    comb = _run_decoder(gi_dec, h_bwd, src_out, neg3, q)            # (T, Bp, Hd_pad)
    logits = _matmul_bias(comb.reshape(T * B_pad, Hd_pad),
                          q['w_out'], q['b_out']).reshape(T, B_pad, V_pad)
    return jnp.transpose(logits, (1, 0, 2))[:B, :, :V]


# ---------------------------------------------------------------------------
# pure-JAX reference (same math, python loops) for correctness check
# ---------------------------------------------------------------------------
def _gru_step(x, h, wi, wh, bi, bh, H):
    gi = jnp.dot(x, wi) + bi
    gh = jnp.dot(h, wh) + bh
    r = jax.nn.sigmoid(gi[:, 0:H] + gh[:, 0:H])
    z = jax.nn.sigmoid(gi[:, H:2 * H] + gh[:, H:2 * H])
    n = jnp.tanh(gi[:, 2 * H:3 * H] + r * gh[:, 2 * H:3 * H])
    return (1.0 - z) * n + z * h


def seq2seq_reference(params, src_in, len_src, tgt_in, len_tgt):
    p = params
    B, S = src_in.shape
    _, T = tgt_in.shape
    He = p['enc_whf'].shape[0]
    Hd = p['dec_wh'].shape[0]

    src_emb = jnp.transpose(jnp.take(p['src_embed'], src_in, axis=0), (1, 0, 2))
    tgt_emb = jnp.transpose(jnp.take(p['tgt_embed'], tgt_in, axis=0), (1, 0, 2))
    mask = (jnp.arange(S)[:, None] < len_src[None, :]
            ).astype(jnp.float32)[:, :, None]
    src_mask_bs = (jnp.arange(S)[None, :] < len_src[:, None]).astype(jnp.float32)

    hf = jnp.zeros((B, He)); out_f = []
    for t in range(S):
        hn = _gru_step(src_emb[t], hf, p['enc_wif'], p['enc_whf'],
                       p['enc_bif'], p['enc_bhf'], He)
        hf = mask[t] * hn + (1.0 - mask[t]) * hf
        out_f.append(hf * mask[t])
    hb = jnp.zeros((B, He)); out_b = [None] * S
    for t in range(S - 1, -1, -1):
        hn = _gru_step(src_emb[t], hb, p['enc_wib'], p['enc_whb'],
                       p['enc_bib'], p['enc_bhb'], He)
        hb = mask[t] * hn + (1.0 - mask[t]) * hb
        out_b[t] = hb * mask[t]
    src_output = jnp.concatenate(
        [jnp.transpose(jnp.stack(out_f), (1, 0, 2)),
         jnp.transpose(jnp.stack(out_b), (1, 0, 2))], axis=-1)

    h = jnp.tanh(jnp.dot(hb, p['w_init']) + p['b_init'])
    neg = (1.0 - src_mask_bs) * (-1e9)
    logits = []
    for t in range(T):
        h = _gru_step(tgt_emb[t], h, p['dec_wi'], p['dec_wh'],
                      p['dec_bi'], p['dec_bh'], Hd)
        qv = jnp.dot(h, p['w_attn'])
        scores = jnp.sum(qv[:, None, :] * src_output, axis=-1) + neg
        scores = scores - jnp.max(scores, axis=-1, keepdims=True)
        e = jnp.exp(scores)
        pr = e / jnp.sum(e, axis=-1, keepdims=True)
        ctx = jnp.sum(pr[:, :, None] * src_output, axis=1)
        comb = jnp.tanh(jnp.dot(h, p['w_ch']) + jnp.dot(ctx, p['w_cc'])
                        + p['b_c'])
        logits.append(jnp.dot(comb, p['w_out']) + p['b_out'])
    return jnp.transpose(jnp.stack(logits), (1, 0, 2))


# ---------------------------------------------------------------------------
# deterministic parameter init
# ---------------------------------------------------------------------------
def make_params(key, V_src, V_tgt, E, He, Hd):
    names_shapes = [
        ('src_embed', (V_src, E)), ('tgt_embed', (V_tgt, E)),
        ('enc_wif', (E, 3 * He)), ('enc_whf', (He, 3 * He)),
        ('enc_bif', (1, 3 * He)), ('enc_bhf', (1, 3 * He)),
        ('enc_wib', (E, 3 * He)), ('enc_whb', (He, 3 * He)),
        ('enc_bib', (1, 3 * He)), ('enc_bhb', (1, 3 * He)),
        ('w_init', (He, Hd)), ('b_init', (1, Hd)),
        ('dec_wi', (E, 3 * Hd)), ('dec_wh', (Hd, 3 * Hd)),
        ('dec_bi', (1, 3 * Hd)), ('dec_bh', (1, 3 * Hd)),
        ('w_attn', (Hd, 2 * He)),
        ('w_ch', (Hd, Hd)), ('w_cc', (2 * He, Hd)), ('b_c', (1, Hd)),
        ('w_out', (Hd, V_tgt)), ('b_out', (1, V_tgt)),
    ]
    keys = jax.random.split(key, len(names_shapes))
    return {name: (0.2 * jax.random.normal(k, shape, jnp.float32))
            for (name, shape), k in zip(names_shapes, keys)}


# TODO(synk): weights/activations kept in f32 (bf16-with-f32-accum would halve
# VMEM and double MXU throughput but loosens the correctness tolerance).

if __name__ == "__main__":
    B, S, T = 2, 8, 8
    E, He, Hd = 32, 32, 32
    V_src, V_tgt = 50, 64

    key = jax.random.PRNGKey(0)
    k_p, k_src, k_tgt = jax.random.split(key, 3)
    params = make_params(k_p, V_src, V_tgt, E, He, Hd)

    src_in = jax.random.randint(k_src, (B, S), 0, V_src, dtype=jnp.int32)
    tgt_in = jax.random.randint(k_tgt, (B, T), 0, V_tgt, dtype=jnp.int32)
    len_src = jnp.array([S, 5], dtype=jnp.int32)
    len_tgt = jnp.array([T, 6], dtype=jnp.int32)

    fwd = jax.jit(seq2seq_forward)
    logits = jax.block_until_ready(fwd(params, src_in, len_src, tgt_in, len_tgt))

    ref = seq2seq_reference(params, src_in, len_src, tgt_in, len_tgt)
    assert logits.shape == (B, T, V_tgt)
    assert bool(jnp.all(jnp.isfinite(logits)))
    max_err = float(jnp.max(jnp.abs(logits - ref)))
    assert bool(jnp.allclose(logits, ref, atol=2e-2, rtol=2e-2)), max_err

    print("KERNEL_OK")
</pallas_src>

<mosaic_0001>
module attributes {stable_mosaic.version = 11 : i64} {
  func.func @encoder_kernel(%arg0: memref<8x8x128xf32, #tpu.memory_space<vmem>>, %arg1: memref<8x8x1xf32, #tpu.memory_space<vmem>>, %arg2: memref<128x384xf32, #tpu.memory_space<vmem>>, %arg3: memref<128x384xf32, #tpu.memory_space<vmem>>, %arg4: memref<1x384xf32, #tpu.memory_space<vmem>>, %arg5: memref<1x384xf32, #tpu.memory_space<vmem>>, %arg6: memref<128x384xf32, #tpu.memory_space<vmem>>, %arg7: memref<128x384xf32, #tpu.memory_space<vmem>>, %arg8: memref<1x384xf32, #tpu.memory_space<vmem>>, %arg9: memref<1x384xf32, #tpu.memory_space<vmem>>, %arg10: memref<8x8x128xf32, #tpu.memory_space<vmem>>, %arg11: memref<8x8x128xf32, #tpu.memory_space<vmem>>, %arg12: memref<8x128xf32, #tpu.memory_space<vmem>>, %arg13: memref<8x8x384xf32, #tpu.memory_space<vmem>>, %arg14: memref<8x8x384xf32, #tpu.memory_space<vmem>>) attributes {dimension_semantics = [], scalar_prefetch = 0 : i64, scratch_operands = 2 : i64, tpu.core_type = #tpu.core_type<tc>} {
    %c0 = arith.constant 0 : index
    %c0_0 = arith.constant 0 : index
    %c0_1 = arith.constant 0 : index
    %0 = vector.load %arg0[%c0, %c0_0, %c0_1] : memref<8x8x128xf32, #tpu.memory_space<vmem>>, vector<8x8x128xf32>
    %1 = vector.shape_cast %0 : vector<8x8x128xf32> to vector<64x128xf32>
    %c0_2 = arith.constant 0 : index
    %c0_3 = arith.constant 0 : index
    %2 = vector.load %arg2[%c0_2, %c0_3] : memref<128x384xf32, #tpu.memory_space<vmem>>, vector<128x384xf32>
    %cst = arith.constant dense<0.000000e+00> : vector<64x384xf32>
    %3 = tpu.matmul %1, %2, %cst {dimension_numbers = #tpu.dot_dimension_numbers<[1], [0], [0], [1], [0, 0, 1, 1], [], []>} : vector<64x128xf32>, vector<128x384xf32>, vector<64x384xf32> -> vector<64x384xf32>
    %c0_4 = arith.constant 0 : index
    %c0_5 = arith.constant 0 : index
    %4 = vector.load %arg4[%c0_4, %c0_5] : memref<1x384xf32, #tpu.memory_space<vmem>>, vector<1x384xf32>
    %5 = vector.broadcast %4 : vector<1x384xf32> to vector<64x384xf32>
    %6 = arith.addf %3, %5 : vector<64x384xf32>
    %7 = vector.shape_cast %6 : vector<64x384xf32> to vector<8x8x384xf32>
    %c0_6 = arith.constant 0 : index
    %c0_7 = arith.constant 0 : index
    %c0_8 = arith.constant 0 : index
    %8 = vector.load %arg13[%c0_6, %c0_7, %c0_8] : memref<8x8x384xf32, #tpu.memory_space<vmem>>, vector<8x8x384xf32>
    tpu.vector_store %arg13[%c0_6, %c0_7, %c0_8], %7 {strides = array<i32>} : memref<8x8x384xf32, #tpu.memory_space<vmem>>, vector<8x8x384xf32>,
    %c0_9 = arith.constant 0 : index
    %c0_10 = arith.constant 0 : index
    %9 = vector.load %arg6[%c0_9, %c0_10] : memref<128x384xf32, #tpu.memory_space<vmem>>, vector<128x384xf32>
    %cst_11 = arith.constant dense<0.000000e+00> : vector<64x384xf32>
    %10 = tpu.matmul %1, %9, %cst_11 {dimension_numbers = #tpu.dot_dimension_numbers<[1], [0], [0], [1], [0, 0, 1, 1], [], []>} : vector<64x128xf32>, vector<128x384xf32>, vector<64x384xf32> -> vector<64x384xf32>
    %c0_12 = arith.constant 0 : index
    %c0_13 = arith.constant 0 : index
    %11 = vector.load %arg8[%c0_12, %c0_13] : memref<1x384xf32, #tpu.memory_space<vmem>>, vector<1x384xf32>
    %12 = vector.broadcast %11 : vector<1x384xf32> to vector<64x384xf32>
    %13 = arith.addf %10, %12 : vector<64x384xf32>
    %14 = vector.shape_cast %13 : vector<64x384xf32> to vector<8x8x384xf32>
    %c0_14 = arith.constant 0 : index
    %c0_15 = arith.constant 0 : index
    %c0_16 = arith.constant 0 : index
    %15 = vector.load %arg14[%c0_14, %c0_15, %c0_16] : memref<8x8x384xf32, #tpu.memory_space<vmem>>, vector<8x8x384xf32>
    tpu.vector_store %arg14[%c0_14, %c0_15, %c0_16], %14 {strides = array<i32>} : memref<8x8x384xf32, #tpu.memory_space<vmem>>, vector<8x8x384xf32>,
    %cst_17 = arith.constant 0.000000e+00 : f32
    %16 = vector.broadcast %cst_17 : f32 to vector<16x128xf32>
    %c0_i32 = arith.constant 0 : i32
    %c8_i32 = arith.constant 8 : i32
    %17 = arith.addi %c0_i32, %c8_i32 : i32
    %c1_i32 = arith.constant 1 : i32
    %18 = scf.for %arg15 = %c0_i32 to %17 step %c1_i32 iter_args(%arg16 = %16) -> (vector<16x128xf32>)  : i32 {
      %c7_i32 = arith.constant 7 : i32
      %21 = arith.subi %c7_i32, %arg15 : i32
      %22 = arith.index_cast %arg15 : i32 to index
      %c0_21 = arith.constant 0 : index
      %c0_22 = arith.constant 0 : index
      %23 = vector.load %arg1[%22, %c0_21, %c0_22] : memref<8x8x1xf32, #tpu.memory_space<vmem>>, vector<1x8x1xf32>
      %24 = vector.shape_cast %23 : vector<1x8x1xf32> to vector<8x1xf32>
      %25 = arith.index_cast %21 : i32 to index
      %c0_23 = arith.constant 0 : index
      %c0_24 = arith.constant 0 : index
      %26 = vector.load %arg1[%25, %c0_23, %c0_24] : memref<8x8x1xf32, #tpu.memory_space<vmem>>, vector<1x8x1xf32>
      %27 = vector.shape_cast %26 : vector<1x8x1xf32> to vector<8x1xf32>
      %28 = vector.extract_strided_slice %arg16 {offsets = [0, 0], sizes = [8, 128], strides = [1, 1]} : vector<16x128xf32> to vector<8x128xf32>
      %c0_25 = arith.constant 0 : index
      %c0_26 = arith.constant 0 : index
      %29 = vector.load %arg3[%c0_25, %c0_26] : memref<128x384xf32, #tpu.memory_space<vmem>>, vector<128x384xf32>
      %cst_27 = arith.constant dense<0.000000e+00> : vector<8x384xf32>
      %30 = tpu.matmul %28, %29, %cst_27 {dimension_numbers = #tpu.dot_dimension_numbers<[1], [0], [0], [1], [0, 0, 1, 1], [], []>} : vector<8x128xf32>, vector<128x384xf32>, vector<8x384xf32> -> vector<8x384xf32>
      %c0_28 = arith.constant 0 : index
      %c0_29 = arith.constant 0 : index
      %31 = vector.load %arg5[%c0_28, %c0_29] : memref<1x384xf32, #tpu.memory_space<vmem>>, vector<1x384xf32>
      %32 = vector.broadcast %31 : vector<1x384xf32> to vector<8x384xf32>
      %33 = arith.addf %30, %32 : vector<8x384xf32>
      %34 = vector.extract_strided_slice %arg16 {offsets = [8, 0], sizes = [8, 128], strides = [1, 1]} : vector<16x128xf32> to vector<8x128xf32>
      %c0_30 = arith.constant 0 : index
      %c0_31 = arith.constant 0 : index
      %35 = vector.load %arg7[%c0_30, %c0_31] : memref<128x384xf32, #tpu.memory_space<vmem>>, vector<128x384xf32>
      %cst_32 = arith.constant dense<0.000000e+00> : vector<8x384xf32>
      %36 = tpu.matmul %34, %35, %cst_32 {dimension_numbers = #tpu.dot_dimension_numbers<[1], [0], [0], [1], [0, 0, 1, 1], [], []>} : vector<8x128xf32>, vector<128x384xf32>, vector<8x384xf32> -> vector<8x384xf32>
      %c0_33 = arith.constant 0 : index
      %c0_34 = arith.constant 0 : index
      %37 = vector.load %arg9[%c0_33, %c0_34] : memref<1x384xf32, #tpu.memory_space<vmem>>, vector<1x384xf32>
      %38 = vector.broadcast %37 : vector<1x384xf32> to vector<8x384xf32>
      %39 = arith.addf %36, %38 : vector<8x384xf32>
      %40 = arith.index_cast %arg15 : i32 to index
      %c0_35 = arith.constant 0 : index
      %c0_36 = arith.constant 0 : index
      %41 = vector.load %arg13[%40, %c0_35, %c0_36] : memref<8x8x384xf32, #tpu.memory_space<vmem>>, vector<1x8x384xf32>
      %42 = vector.shape_cast %41 : vector<1x8x384xf32> to vector<8x384xf32>
      %43 = arith.index_cast %21 : i32 to index
      %c0_37 = arith.constant 0 : index
      %c0_38 = arith.constant 0 : index
      %44 = vector.load %arg14[%43, %c0_37, %c0_38] : memref<8x8x384xf32, #tpu.memory_space<vmem>>, vector<1x8x384xf32>
      %45 = vector.shape_cast %44 : vector<1x8x384xf32> to vector<8x384xf32>
      %46 = tpu.concatenate %42, %45 in 0 : vector<8x384xf32>, vector<8x384xf32> -> vector<16x384xf32>
      %47 = tpu.concatenate %33, %39 in 0 : vector<8x384xf32>, vector<8x384xf32> -> vector<16x384xf32>
      %48 = vector.extract_strided_slice %46 {offsets = [0, 0], sizes = [16, 128], strides = [1, 1]} : vector<16x384xf32> to vector<16x128xf32>
      %49 = vector.extract_strided_slice %47 {offsets = [0, 0], sizes = [16, 128], strides = [1, 1]} : vector<16x384xf32> to vector<16x128xf32>
      %50 = arith.addf %48, %49 : vector<16x128xf32>
      %51 = arith.negf %50 : vector<16x128xf32>
      %52 = math.exp %51 : vector<16x128xf32>
      %cst_39 = arith.constant 1.000000e+00 : f32
      %53 = vector.broadcast %cst_39 : f32 to vector<16x128xf32>
      %54 = arith.addf %53, %52 : vector<16x128xf32>
      %55 = arith.divf %53, %54 : vector<16x128xf32>
      %56 = vector.extract_strided_slice %46 {offsets = [0, 128], sizes = [16, 128], strides = [1, 1]} : vector<16x384xf32> to vector<16x128xf32>
      %57 = vector.extract_strided_slice %47 {offsets = [0, 128], sizes = [16, 128], strides = [1, 1]} : vector<16x384xf32> to vector<16x128xf32>
      %58 = arith.addf %56, %57 : vector<16x128xf32>
      %59 = arith.negf %58 : vector<16x128xf32>
      %60 = math.exp %59 : vector<16x128xf32>
      %cst_40 = arith.constant 1.000000e+00 : f32
      %61 = vector.broadcast %cst_40 : f32 to vector<16x128xf32>
      %62 = arith.addf %61, %60 : vector<16x128xf32>
      %63 = arith.divf %61, %62 : vector<16x128xf32>
      %64 = vector.extract_strided_slice %46 {offsets = [0, 256], sizes = [16, 128], strides = [1, 1]} : vector<16x384xf32> to vector<16x128xf32>
      %65 = vector.extract_strided_slice %47 {offsets = [0, 256], sizes = [16, 128], strides = [1, 1]} : vector<16x384xf32> to vector<16x128xf32>
      %66 = arith.mulf %55, %65 : vector<16x128xf32>
      %67 = arith.addf %64, %66 : vector<16x128xf32>
      %68 = math.tanh %67 : vector<16x128xf32>
      %cst_41 = arith.constant 1.000000e+00 : f32
      %69 = vector.broadcast %cst_41 : f32 to vector<16x128xf32>
      %70 = arith.subf %69, %63 : vector<16x128xf32>
      %71 = arith.mulf %70, %68 : vector<16x128xf32>
      %72 = arith.mulf %63, %arg16 : vector<16x128xf32>
      %73 = arith.addf %71, %72 : vector<16x128xf32>
      %74 = tpu.concatenate %24, %27 in 0 : vector<8x1xf32>, vector<8x1xf32> -> vector<16x1xf32>
      %75 = vector.broadcast %74 : vector<16x1xf32> to vector<16x128xf32>
      %76 = arith.mulf %75, %73 : vector<16x128xf32>
      %cst_42 = arith.constant 1.000000e+00 : f32
      %77 = vector.broadcast %cst_42 : f32 to vector<16x1xf32>
      %78 = arith.subf %77, %74 : vector<16x1xf32>
      %79 = vector.broadcast %78 : vector<16x1xf32> to vector<16x128xf32>
      %80 = arith.mulf %79, %arg16 : vector<16x128xf32>
      %81 = arith.addf %76, %80 : vector<16x128xf32>
      %82 = vector.extract_strided_slice %81 {offsets = [0, 0], sizes = [8, 128], strides = [1, 1]} : vector<16x128xf32> to vector<8x128xf32>
      %83 = vector.broadcast %24 : vector<8x1xf32> to vector<8x128xf32>
      %84 = arith.mulf %82, %83 : vector<8x128xf32>
      %85 = arith.index_cast %arg15 : i32 to index
      %c0_43 = arith.constant 0 : index
      %c0_44 = arith.constant 0 : index
      %86 = vector.load %arg10[%85, %c0_43, %c0_44] : memref<8x8x128xf32, #tpu.memory_space<vmem>>, vector<1x8x128xf32>
      %87 = vector.shape_cast %86 : vector<1x8x128xf32> to vector<8x128xf32>
      %88 = vector.shape_cast %84 : vector<8x128xf32> to vector<1x8x128xf32>
      tpu.vector_store %arg10[%85, %c0_43, %c0_44], %88 {strides = array<i32>} : memref<8x8x128xf32, #tpu.memory_space<vmem>>, vector<1x8x128xf32>,
      %89 = vector.extract_strided_slice %81 {offsets = [8, 0], sizes = [8, 128], strides = [1, 1]} : vector<16x128xf32> to vector<8x128xf32>
      %90 = vector.broadcast %27 : vector<8x1xf32> to vector<8x128xf32>
      %91 = arith.mulf %89, %90 : vector<8x128xf32>
      %92 = arith.index_cast %21 : i32 to index
      %c0_45 = arith.constant 0 : index
      %c0_46 = arith.constant 0 : index
      %93 = vector.load %arg11[%92, %c0_45, %c0_46] : memref<8x8x128xf32, #tpu.memory_space<vmem>>, vector<1x8x128xf32>
      %94 = vector.shape_cast %93 : vector<1x8x128xf32> to vector<8x128xf32>
      %95 = vector.shape_cast %91 : vector<8x128xf32> to vector<1x8x128xf32>
      tpu.vector_store %arg11[%92, %c0_45, %c0_46], %95 {strides = array<i32>} : memref<8x8x128xf32, #tpu.memory_space<vmem>>, vector<1x8x128xf32>,
      scf.yield %81 : vector<16x128xf32>
    }
    %c8_i32_18 = arith.constant 8 : i32
    %19 = vector.extract_strided_slice %18 {offsets = [8, 0], sizes = [8, 128], strides = [1, 1]} : vector<16x128xf32> to vector<8x128xf32>
    %c0_19 = arith.constant 0 : index
    %c0_20 = arith.constant 0 : index
    %20 = vector.load %arg12[%c0_19, %c0_20] : memref<8x128xf32, #tpu.memory_space<vmem>>, vector<8x128xf32>
    tpu.vector_store %arg12[%c0_19, %c0_20], %19 {strides = array<i32>} : memref<8x128xf32, #tpu.memory_space<vmem>>, vector<8x128xf32>,
    return
  }
}

module attributes {stable_mosaic.version = 11 : i64} {
  func.func @matmul_bias_kernel(%arg0: i32, %arg1: i32, %arg2: memref<64x128xf32, #tpu.memory_space<vmem>>, %arg3: memref<128x128xf32, #tpu.memory_space<vmem>>, %arg4: memref<1x128xf32, #tpu.memory_space<vmem>>, %arg5: memref<64x128xf32, #tpu.memory_space<vmem>>) attributes {dimension_semantics = [#tpu.dimension_semantics<parallel>, #tpu.dimension_semantics<parallel>], iteration_bounds = array<i64: 1, 3>, scalar_prefetch = 0 : i64, scratch_operands = 0 : i64, tpu.core_type = #tpu.core_type<tc>, window_params = [{transform_indices = @transform_0, window_bounds = array<i64: 64, 128>}, {transform_indices = @transform_1, window_bounds = array<i64: 128, 128>}, {transform_indices = @transform_2, window_bounds = array<i64: 1, 128>}, {transform_indices = @transform_3, window_bounds = array<i64: 64, 128>}]} {
    %c0 = arith.constant 0 : index
    %c0_0 = arith.constant 0 : index
    %0 = vector.load %arg2[%c0, %c0_0] : memref<64x128xf32, #tpu.memory_space<vmem>>, vector<64x128xf32>
    %c0_1 = arith.constant 0 : index
    %c0_2 = arith.constant 0 : index
    %1 = vector.load %arg3[%c0_1, %c0_2] : memref<128x128xf32, #tpu.memory_space<vmem>>, vector<128x128xf32>
    %cst = arith.constant dense<0.000000e+00> : vector<64x128xf32>
    %2 = tpu.matmul %0, %1, %cst {dimension_numbers = #tpu.dot_dimension_numbers<[1], [0], [0], [1], [0, 0, 1, 1], [], []>} : vector<64x128xf32>, vector<128x128xf32>, vector<64x128xf32> -> vector<64x128xf32>
    %c0_3 = arith.constant 0 : index
    %c0_4 = arith.constant 0 : index
    %3 = vector.load %arg4[%c0_3, %c0_4] : memref<1x128xf32, #tpu.memory_space<vmem>>, vector<1x128xf32>
    %4 = vector.broadcast %3 : vector<1x128xf32> to vector<64x128xf32>
    %5 = arith.addf %2, %4 : vector<64x128xf32>
    %c0_5 = arith.constant 0 : index
    %c0_6 = arith.constant 0 : index
    %6 = vector.load %arg5[%c0_5, %c0_6] : memref<64x128xf32, #tpu.memory_space<vmem>>, vector<64x128xf32>
    tpu.vector_store %arg5[%c0_5, %c0_6], %5 {strides = array<i32>} : memref<64x128xf32, #tpu.memory_space<vmem>>, vector<64x128xf32>,
    return
  }
  func.func @transform_0(%arg0: i32, %arg1: i32) -> (i32, i32) {
    %c0_i32 = arith.constant 0 : i32
    %c0_i32_0 = arith.constant 0 : i32
    return %arg0, %c0_i32 : i32, i32
  }
  func.func @transform_1(%arg0: i32, %arg1: i32) -> (i32, i32) {
    %c0_i32 = arith.constant 0 : i32
    %c0_i32_0 = arith.constant 0 : i32
    return %c0_i32, %arg1 : i32, i32
  }
  func.func @transform_2(%arg0: i32, %arg1: i32) -> (i32, i32) {
    %c0_i32 = arith.constant 0 : i32
    %c0_i32_0 = arith.constant 0 : i32
    return %c0_i32, %arg1 : i32, i32
  }
  func.func @transform_3(%arg0: i32, %arg1: i32) -> (i32, i32) {
    %c0_i32 = arith.constant 0 : i32
    return %arg0, %arg1 : i32, i32
  }
}

module attributes {stable_mosaic.version = 11 : i64} {
  func.func @decoder_kernel(%arg0: i32, %arg1: memref<1x8x384xf32, #tpu.memory_space<vmem>>, %arg2: memref<8x128xf32, #tpu.memory_space<vmem>>, %arg3: memref<8x8x256xf32, #tpu.memory_space<vmem>>, %arg4: memref<8x1x8xf32, #tpu.memory_space<vmem>>, %arg5: memref<128x128xf32, #tpu.memory_space<vmem>>, %arg6: memref<1x128xf32, #tpu.memory_space<vmem>>, %arg7: memref<128x384xf32, #tpu.memory_space<vmem>>, %arg8: memref<1x384xf32, #tpu.memory_space<vmem>>, %arg9: memref<128x256xf32, #tpu.memory_space<vmem>>, %arg10: memref<128x128xf32, #tpu.memory_space<vmem>>, %arg11: memref<256x128xf32, #tpu.memory_space<vmem>>, %arg12: memref<1x128xf32, #tpu.memory_space<vmem>>, %arg13: memref<1x8x128xf32, #tpu.memory_space<vmem>>, %arg14: memref<8x128xf32, #tpu.memory_space<vmem>>) attributes {dimension_semantics = [#tpu.dimension_semantics<arbitrary>], iteration_bounds = array<i64: 8>, scalar_prefetch = 0 : i64, scratch_operands = 1 : i64, tpu.core_type = #tpu.core_type<tc>, window_params = [{transform_indices = @transform_0, window_bounds = array<i64: 1, 8, 384>}, {pipeline_mode = #tpu.pipeline_mode<synchronous>, transform_indices = @transform_1, window_bounds = array<i64: 8, 128>}, {pipeline_mode = #tpu.pipeline_mode<synchronous>, transform_indices = @transform_2, window_bounds = array<i64: 8, 8, 256>}, {pipeline_mode = #tpu.pipeline_mode<synchronous>, transform_indices = @transform_3, window_bounds = array<i64: 8, 1, 8>}, {pipeline_mode = #tpu.pipeline_mode<synchronous>, transform_indices = @transform_4, window_bounds = array<i64: 128, 128>}, {pipeline_mode = #tpu.pipeline_mode<synchronous>, transform_indices = @transform_5, window_bounds = array<i64: 1, 128>}, {pipeline_mode = #tpu.pipeline_mode<synchronous>, transform_indices = @transform_6, window_bounds = array<i64: 128, 384>}, {pipeline_mode = #tpu.pipeline_mode<synchronous>, transform_indices = @transform_7, window_bounds = array<i64: 1, 384>}, {pipeline_mode = #tpu.pipeline_mode<synchronous>, transform_indices = @transform_8, window_bounds = array<i64: 128, 256>}, {pipeline_mode = #tpu.pipeline_mode<synchronous>, transform_indices = @transform_9, window_bounds = array<i64: 128, 128>}, {pipeline_mode = #tpu.pipeline_mode<synchronous>, transform_indices = @transform_10, window_bounds = array<i64: 256, 128>}, {pipeline_mode = #tpu.pipeline_mode<synchronous>, transform_indices = @transform_11, window_bounds = array<i64: 1, 128>}, {transform_indices = @transform_12, window_bounds = array<i64: 1, 8, 128>}]} {
    %c0_i32 = arith.constant 0 : i32
    %0 = arith.cmpi eq, %arg0, %c0_i32 : i32
    %1 = arith.extui %0 : i1 to i32
    %c0_i32_0 = arith.constant 0 : i32
    %2 = arith.cmpi ne, %1, %c0_i32_0 : i32
    scf.if %2 {
      %c0_39 = arith.constant 0 : index
      %c0_40 = arith.constant 0 : index
      %69 = vector.load %arg2[%c0_39, %c0_40] : memref<8x128xf32, #tpu.memory_space<vmem>>, vector<8x128xf32>
      %c0_41 = arith.constant 0 : index
      %c0_42 = arith.constant 0 : index
      %70 = vector.load %arg5[%c0_41, %c0_42] : memref<128x128xf32, #tpu.memory_space<vmem>>, vector<128x128xf32>
      %cst_43 = arith.constant dense<0.000000e+00> : vector<8x128xf32>
      %71 = tpu.matmul %69, %70, %cst_43 {dimension_numbers = #tpu.dot_dimension_numbers<[1], [0], [0], [1], [0, 0, 1, 1], [], []>} : vector<8x128xf32>, vector<128x128xf32>, vector<8x128xf32> -> vector<8x128xf32>
      %c0_44 = arith.constant 0 : index
      %c0_45 = arith.constant 0 : index
      %72 = vector.load %arg6[%c0_44, %c0_45] : memref<1x128xf32, #tpu.memory_space<vmem>>, vector<1x128xf32>
      %73 = vector.broadcast %72 : vector<1x128xf32> to vector<8x128xf32>
      %74 = arith.addf %71, %73 : vector<8x128xf32>
      %75 = math.tanh %74 : vector<8x128xf32>
      %c0_46 = arith.constant 0 : index
      %c0_47 = arith.constant 0 : index
      %76 = vector.load %arg14[%c0_46, %c0_47] : memref<8x128xf32, #tpu.memory_space<vmem>>, vector<8x128xf32>
      tpu.vector_store %arg14[%c0_46, %c0_47], %75 {strides = array<i32>} : memref<8x128xf32, #tpu.memory_space<vmem>>, vector<8x128xf32>,
    } else {
    }
    %c0 = arith.constant 0 : index
    %c0_1 = arith.constant 0 : index
    %3 = vector.load %arg14[%c0, %c0_1] : memref<8x128xf32, #tpu.memory_space<vmem>>, vector<8x128xf32>
    %c0_2 = arith.constant 0 : index
    %c0_3 = arith.constant 0 : index
    %c0_4 = arith.constant 0 : index
    %4 = vector.load %arg1[%c0_2, %c0_3, %c0_4] : memref<1x8x384xf32, #tpu.memory_space<vmem>>, vector<1x8x384xf32>
    %5 = vector.shape_cast %4 : vector<1x8x384xf32> to vector<8x384xf32>
    %c0_5 = arith.constant 0 : index
    %c0_6 = arith.constant 0 : index
    %6 = vector.load %arg7[%c0_5, %c0_6] : memref<128x384xf32, #tpu.memory_space<vmem>>, vector<128x384xf32>
    %cst = arith.constant dense<0.000000e+00> : vector<8x384xf32>
    %7 = tpu.matmul %3, %6, %cst {dimension_numbers = #tpu.dot_dimension_numbers<[1], [0], [0], [1], [0, 0, 1, 1], [], []>} : vector<8x128xf32>, vector<128x384xf32>, vector<8x384xf32> -> vector<8x384xf32>
    %c0_7 = arith.constant 0 : index
    %c0_8 = arith.constant 0 : index
    %8 = vector.load %arg8[%c0_7, %c0_8] : memref<1x384xf32, #tpu.memory_space<vmem>>, vector<1x384xf32>
    %9 = vector.broadcast %8 : vector<1x384xf32> to vector<8x384xf32>
    %10 = arith.addf %7, %9 : vector<8x384xf32>
    %11 = vector.extract_strided_slice %5 {offsets = [0, 0], sizes = [8, 128], strides = [1, 1]} : vector<8x384xf32> to vector<8x128xf32>
    %12 = vector.extract_strided_slice %10 {offsets = [0, 0], sizes = [8, 128], strides = [1, 1]} : vector<8x384xf32> to vector<8x128xf32>
    %13 = arith.addf %11, %12 : vector<8x128xf32>
    %14 = arith.negf %13 : vector<8x128xf32>
    %15 = math.exp %14 : vector<8x128xf32>
    %cst_9 = arith.constant 1.000000e+00 : f32
    %16 = vector.broadcast %cst_9 : f32 to vector<8x128xf32>
    %17 = arith.addf %16, %15 : vector<8x128xf32>
    %18 = arith.divf %16, %17 : vector<8x128xf32>
    %19 = vector.extract_strided_slice %5 {offsets = [0, 128], sizes = [8, 128], strides = [1, 1]} : vector<8x384xf32> to vector<8x128xf32>
    %20 = vector.extract_strided_slice %10 {offsets = [0, 128], sizes = [8, 128], strides = [1, 1]} : vector<8x384xf32> to vector<8x128xf32>
    %21 = arith.addf %19, %20 : vector<8x128xf32>
    %22 = arith.negf %21 : vector<8x128xf32>
    %23 = math.exp %22 : vector<8x128xf32>
    %cst_10 = arith.constant 1.000000e+00 : f32
    %24 = vector.broadcast %cst_10 : f32 to vector<8x128xf32>
    %25 = arith.addf %24, %23 : vector<8x128xf32>
    %26 = arith.divf %24, %25 : vector<8x128xf32>
    %27 = vector.extract_strided_slice %5 {offsets = [0, 256], sizes = [8, 128], strides = [1, 1]} : vector<8x384xf32> to vector<8x128xf32>
    %28 = vector.extract_strided_slice %10 {offsets = [0, 256], sizes = [8, 128], strides = [1, 1]} : vector<8x384xf32> to vector<8x128xf32>
    %29 = arith.mulf %18, %28 : vector<8x128xf32>
    %30 = arith.addf %27, %29 : vector<8x128xf32>
    %31 = math.tanh %30 : vector<8x128xf32>
    %cst_11 = arith.constant 1.000000e+00 : f32
    %32 = vector.broadcast %cst_11 : f32 to vector<8x128xf32>
    %33 = arith.subf %32, %26 : vector<8x128xf32>
    %34 = arith.mulf %33, %31 : vector<8x128xf32>
    %35 = arith.mulf %26, %3 : vector<8x128xf32>
    %36 = arith.addf %34, %35 : vector<8x128xf32>
    %c0_12 = arith.constant 0 : index
    %c0_13 = arith.constant 0 : index
    %37 = vector.load %arg14[%c0_12, %c0_13] : memref<8x128xf32, #tpu.memory_space<vmem>>, vector<8x128xf32>
    tpu.vector_store %arg14[%c0_12, %c0_13], %36 {strides = array<i32>} : memref<8x128xf32, #tpu.memory_space<vmem>>, vector<8x128xf32>,
    %c0_14 = arith.constant 0 : index
    %c0_15 = arith.constant 0 : index
    %c0_16 = arith.constant 0 : index
    %38 = vector.load %arg3[%c0_14, %c0_15, %c0_16] : memref<8x8x256xf32, #tpu.memory_space<vmem>>, vector<8x8x256xf32>
    %c0_17 = arith.constant 0 : index
    %c0_18 = arith.constant 0 : index
    %39 = vector.load %arg9[%c0_17, %c0_18] : memref<128x256xf32, #tpu.memory_space<vmem>>, vector<128x256xf32>
    %cst_19 = arith.constant dense<0.000000e+00> : vector<8x256xf32>
    %40 = tpu.matmul %36, %39, %cst_19 {dimension_numbers = #tpu.dot_dimension_numbers<[1], [0], [0], [1], [0, 0, 1, 1], [], []>} : vector<8x128xf32>, vector<128x256xf32>, vector<8x256xf32> -> vector<8x256xf32>
    %41 = vector.shape_cast %40 : vector<8x256xf32> to vector<8x1x256xf32>
    "tpu.trace_start"() <{level = 10 : i32, message = "bqd,bsd->bqs"}> : () -> ()
    %cst_20 = arith.constant dense<0.000000e+00> : vector<8x1x8xf32>
    %42 = tpu.matmul %41, %38, %cst_20 {dimension_numbers = #tpu.dot_dimension_numbers<[2], [2], [1], [1], [0, 0, 0, 1, 1, 1], [0], [0]>} : vector<8x1x256xf32>, vector<8x8x256xf32>, vector<8x1x8xf32> -> vector<8x1x8xf32>
    "tpu.trace_stop"() : () -> ()
    %c0_21 = arith.constant 0 : index
    %c0_22 = arith.constant 0 : index
    %c0_23 = arith.constant 0 : index
    %43 = vector.load %arg4[%c0_21, %c0_22, %c0_23] : memref<8x1x8xf32, #tpu.memory_space<vmem>>, vector<8x1x8xf32>
    %44 = arith.addf %42, %43 : vector<8x1x8xf32>
    %cst_24 = arith.constant dense<0xFF800000> : vector<8x1xf32>
    %45 = vector.multi_reduction <maximumf>, %44, %cst_24 [2] : vector<8x1x8xf32> to vector<8x1xf32>
    %46 = vector.shape_cast %45 : vector<8x1xf32> to vector<8x1x1xf32>
    %47 = vector.broadcast %46 : vector<8x1x1xf32> to vector<8x1x8xf32>
    %48 = arith.subf %44, %47 : vector<8x1x8xf32>
    %49 = math.exp %48 : vector<8x1x8xf32>
    %cst_25 = arith.constant dense<0.000000e+00> : vector<8x1xf32>
    %50 = vector.multi_reduction <add>, %49, %cst_25 [2] : vector<8x1x8xf32> to vector<8x1xf32>
    %51 = vector.shape_cast %50 : vector<8x1xf32> to vector<8x1x1xf32>
    %52 = tpu.reciprocal %51 {approx = true} : vector<8x1x1xf32> -> vector<8x1x1xf32>
    %53 = vector.broadcast %52 : vector<8x1x1xf32> to vector<8x1x8xf32>
    %54 = arith.mulf %49, %53 : vector<8x1x8xf32>
    "tpu.trace_start"() <{level = 10 : i32, message = "bqs,bsd->bqd"}> : () -> ()
    %cst_26 = arith.constant dense<0.000000e+00> : vector<8x1x256xf32>
    %55 = tpu.matmul %54, %38, %cst_26 {dimension_numbers = #tpu.dot_dimension_numbers<[2], [1], [1], [2], [0, 0, 0, 1, 1, 2], [0], [0]>} : vector<8x1x8xf32>, vector<8x8x256xf32>, vector<8x1x256xf32> -> vector<8x1x256xf32>
    "tpu.trace_stop"() : () -> ()
    %cst_27 = arith.constant dense<0.000000e+00> : vector<8x256xf32>
    %56 = vector.multi_reduction <add>, %55, %cst_27 [1] : vector<8x1x256xf32> to vector<8x256xf32>
    %c0_28 = arith.constant 0 : index
    %c0_29 = arith.constant 0 : index
    %57 = vector.load %arg10[%c0_28, %c0_29] : memref<128x128xf32, #tpu.memory_space<vmem>>, vector<128x128xf32>
    %cst_30 = arith.constant dense<0.000000e+00> : vector<8x128xf32>
    %58 = tpu.matmul %36, %57, %cst_30 {dimension_numbers = #tpu.dot_dimension_numbers<[1], [0], [0], [1], [0, 0, 1, 1], [], []>} : vector<8x128xf32>, vector<128x128xf32>, vector<8x128xf32> -> vector<8x128xf32>
    %c0_31 = arith.constant 0 : index
    %c0_32 = arith.constant 0 : index
    %59 = vector.load %arg11[%c0_31, %c0_32] : memref<256x128xf32, #tpu.memory_space<vmem>>, vector<256x128xf32>
    %cst_33 = arith.constant dense<0.000000e+00> : vector<8x128xf32>
    %60 = tpu.matmul %56, %59, %cst_33 {dimension_numbers = #tpu.dot_dimension_numbers<[1], [0], [0], [1], [0, 0, 1, 1], [], []>} : vector<8x256xf32>, vector<256x128xf32>, vector<8x128xf32> -> vector<8x128xf32>
    %61 = arith.addf %58, %60 : vector<8x128xf32>
    %c0_34 = arith.constant 0 : index
    %c0_35 = arith.constant 0 : index
    %62 = vector.load %arg12[%c0_34, %c0_35] : memref<1x128xf32, #tpu.memory_space<vmem>>, vector<1x128xf32>
    %63 = vector.broadcast %62 : vector<1x128xf32> to vector<8x128xf32>
    %64 = arith.addf %61, %63 : vector<8x128xf32>
    %65 = math.tanh %64 : vector<8x128xf32>
    %c0_36 = arith.constant 0 : index
    %c0_37 = arith.constant 0 : index
    %c0_38 = arith.constant 0 : index
    %66 = vector.load %arg13[%c0_36, %c0_37, %c0_38] : memref<1x8x128xf32, #tpu.memory_space<vmem>>, vector<1x8x128xf32>
    %67 = vector.shape_cast %66 : vector<1x8x128xf32> to vector<8x128xf32>
    %68 = vector.shape_cast %65 : vector<8x128xf32> to vector<1x8x128xf32>
    tpu.vector_store %arg13[%c0_36, %c0_37, %c0_38], %68 {strides = array<i32>} : memref<1x8x128xf32, #tpu.memory_space<vmem>>, vector<1x8x128xf32>,
    return
  }
  func.func @transform_0(%arg0: i32) -> (i32, i32, i32) {
    %c0_i32 = arith.constant 0 : i32
    %c0_i32_0 = arith.constant 0 : i32
    %c0_i32_1 = arith.constant 0 : i32
    return %arg0, %c0_i32, %c0_i32_0 : i32, i32, i32
  }
  func.func @transform_1(%arg0: i32) -> (i32, i32) {
    %c0_i32 = arith.constant 0 : i32
    %c0_i32_0 = arith.constant 0 : i32
    %c0_i32_1 = arith.constant 0 : i32
    return %c0_i32, %c0_i32_0 : i32, i32
  }
  func.func @transform_2(%arg0: i32) -> (i32, i32, i32) {
    %c0_i32 = arith.constant 0 : i32
    %c0_i32_0 = arith.constant 0 : i32
    %c0_i32_1 = arith.constant 0 : i32
    %c0_i32_2 = arith.constant 0 : i32
    return %c0_i32, %c0_i32_0, %c0_i32_1 : i32, i32, i32
  }
  func.func @transform_3(%arg0: i32) -> (i32, i32, i32) {
    %c0_i32 = arith.constant 0 : i32
    %c0_i32_0 = arith.constant 0 : i32
    %c0_i32_1 = arith.constant 0 : i32
    %c0_i32_2 = arith.constant 0 : i32
    return %c0_i32, %c0_i32_0, %c0_i32_1 : i32, i32, i32
  }
  func.func @transform_4(%arg0: i32) -> (i32, i32) {
    %c0_i32 = arith.constant 0 : i32
    %c0_i32_0 = arith.constant 0 : i32
    %c0_i32_1 = arith.constant 0 : i32
    return %c0_i32, %c0_i32_0 : i32, i32
  }
  func.func @transform_5(%arg0: i32) -> (i32, i32) {
    %c0_i32 = arith.constant 0 : i32
    %c0_i32_0 = arith.constant 0 : i32
    %c0_i32_1 = arith.constant 0 : i32
    return %c0_i32, %c0_i32_0 : i32, i32
  }
  func.func @transform_6(%arg0: i32) -> (i32, i32) {
    %c0_i32 = arith.constant 0 : i32
    %c0_i32_0 = arith.constant 0 : i32
    %c0_i32_1 = arith.constant 0 : i32
    return %c0_i32, %c0_i32_0 : i32, i32
  }
  func.func @transform_7(%arg0: i32) -> (i32, i32) {
    %c0_i32 = arith.constant 0 : i32
    %c0_i32_0 = arith.constant 0 : i32
    %c0_i32_1 = arith.constant 0 : i32
    return %c0_i32, %c0_i32_0 : i32, i32
  }
  func.func @transform_8(%arg0: i32) -> (i32, i32) {
    %c0_i32 = arith.constant 0 : i32
    %c0_i32_0 = arith.constant 0 : i32
    %c0_i32_1 = arith.constant 0 : i32
    return %c0_i32, %c0_i32_0 : i32, i32
  }
  func.func @transform_9(%arg0: i32) -> (i32, i32) {
    %c0_i32 = arith.constant 0 : i32
    %c0_i32_0 = arith.constant 0 : i32
    %c0_i32_1 = arith.constant 0 : i32
    return %c0_i32, %c0_i32_0 : i32, i32
  }
  func.func @transform_10(%arg0: i32) -> (i32, i32) {
    %c0_i32 = arith.constant 0 : i32
    %c0_i32_0 = arith.constant 0 : i32
    %c0_i32_1 = arith.constant 0 : i32
    return %c0_i32, %c0_i32_0 : i32, i32
  }
  func.func @transform_11(%arg0: i32) -> (i32, i32) {
    %c0_i32 = arith.constant 0 : i32
    %c0_i32_0 = arith.constant 0 : i32
    %c0_i32_1 = arith.constant 0 : i32
    return %c0_i32, %c0_i32_0 : i32, i32
  }
  func.func @transform_12(%arg0: i32) -> (i32, i32, i32) {
    %c0_i32 = arith.constant 0 : i32
    %c0_i32_0 = arith.constant 0 : i32
    %c0_i32_1 = arith.constant 0 : i32
    return %arg0, %c0_i32, %c0_i32_0 : i32, i32, i32
  }
}

module attributes {stable_mosaic.version = 11 : i64} {
  func.func @matmul_bias_kernel(%arg0: i32, %arg1: i32, %arg2: memref<64x128xf32, #tpu.memory_space<vmem>>, %arg3: memref<128x128xf32, #tpu.memory_space<vmem>>, %arg4: memref<1x128xf32, #tpu.memory_space<vmem>>, %arg5: memref<64x128xf32, #tpu.memory_space<vmem>>) attributes {dimension_semantics = [#tpu.dimension_semantics<parallel>, #tpu.dimension_semantics<parallel>], iteration_bounds = array<i64: 1, 1>, scalar_prefetch = 0 : i64, scratch_operands = 0 : i64, tpu.core_type = #tpu.core_type<tc>, window_params = [{transform_indices = @transform_0, window_bounds = array<i64: 64, 128>}, {transform_indices = @transform_1, window_bounds = array<i64: 128, 128>}, {transform_indices = @transform_2, window_bounds = array<i64: 1, 128>}, {transform_indices = @transform_3, window_bounds = array<i64: 64, 128>}]} {
    %c0 = arith.constant 0 : index
    %c0_0 = arith.constant 0 : index
    %0 = vector.load %arg2[%c0, %c0_0] : memref<64x128xf32, #tpu.memory_space<vmem>>, vector<64x128xf32>
    %c0_1 = arith.constant 0 : index
    %c0_2 = arith.constant 0 : index
    %1 = vector.load %arg3[%c0_1, %c0_2] : memref<128x128xf32, #tpu.memory_space<vmem>>, vector<128x128xf32>
    %cst = arith.constant dense<0.000000e+00> : vector<64x128xf32>
    %2 = tpu.matmul %0, %1, %cst {dimension_numbers = #tpu.dot_dimension_numbers<[1], [0], [0], [1], [0, 0, 1, 1], [], []>} : vector<64x128xf32>, vector<128x128xf32>, vector<64x128xf32> -> vector<64x128xf32>
    %c0_3 = arith.constant 0 : index
    %c0_4 = arith.constant 0 : index
    %3 = vector.load %arg4[%c0_3, %c0_4] : memref<1x128xf32, #tpu.memory_space<vmem>>, vector<1x128xf32>
    %4 = vector.broadcast %3 : vector<1x128xf32> to vector<64x128xf32>
    %5 = arith.addf %2, %4 : vector<64x128xf32>
    %c0_5 = arith.constant 0 : index
    %c0_6 = arith.constant 0 : index
    %6 = vector.load %arg5[%c0_5, %c0_6] : memref<64x128xf32, #tpu.memory_space<vmem>>, vector<64x128xf32>
    tpu.vector_store %arg5[%c0_5, %c0_6], %5 {strides = array<i32>} : memref<64x128xf32, #tpu.memory_space<vmem>>, vector<64x128xf32>,
    return
  }
  func.func @transform_0(%arg0: i32, %arg1: i32) -> (i32, i32) {
    %c0_i32 = arith.constant 0 : i32
    %c0_i32_0 = arith.constant 0 : i32
    return %arg0, %c0_i32 : i32, i32
  }
  func.func @transform_1(%arg0: i32, %arg1: i32) -> (i32, i32) {
    %c0_i32 = arith.constant 0 : i32
    %c0_i32_0 = arith.constant 0 : i32
    return %c0_i32, %arg1 : i32, i32
  }
  func.func @transform_2(%arg0: i32, %arg1: i32) -> (i32, i32) {
    %c0_i32 = arith.constant 0 : i32
    %c0_i32_0 = arith.constant 0 : i32
    return %c0_i32, %arg1 : i32, i32
  }
  func.func @transform_3(%arg0: i32, %arg1: i32) -> (i32, i32) {
    %c0_i32 = arith.constant 0 : i32
    return %arg0, %arg1 : i32, i32
  }
}

</mosaic_0001>

<llo_original>
// kernel: seq2seq_forward.5
$region0: #{seq2seq_forward.5}
  #allocation0 [shape = 'u32[]', space=smem, size = 0x4, offset = 0x4, fixed_abs, tag = 'smem constant byte address 0x4 - core index']
  #allocation1 [shape = 'u32[144,128]{1,0:T(1,128)}', space=vmem, size = 0x12000, scoped, tag = 'internal scratch']
  %s0 = inlined_call_operand.vmem [shape: f32[64,128], index: 0, kind: input, shape index: {}]
  %s1 = inlined_call_operand.vmem [shape: f32[128,384], index: 1, kind: input, shape index: {}]
  %s2 = inlined_call_operand.vmem [shape: f32[1,384], index: 2, kind: input, shape index: {}]
  %s3 = inlined_call_operand.vmem [shape: f32[64,384], index: 3, kind: output, shape index: {}]
  %s4 = sld [smem:[#allocation0]]
  $region117: #{seq2seq_forward.5} parent=0
    _
  %s6 = ssub.s32 1, %s4
  %s7 = scalar_select 0, %s6, %s4
  $region1: #{seq2seq_forward.5} parent=0
    #allocation2 [shape = 'u8[131072]{0}', space=vmem, size = 0x20000, scoped, tag = 'input window, operand 1']
    #allocation3 [shape = 'u8[65536]{0}', space=vmem, size = 0x10000, scoped, tag = 'output window, operand 0']
    loop: start=0, step=1, limit=5
    $region2: #{seq2seq_forward.5} parent=1 // loop_pre_header
      _
    $region3: #{seq2seq_forward.5} parent=1 // loop_header
      %s9 = sphi 0, %s13
      %p10 = scmp.ge.s32.totalorder %s9, 5
      %s16 = sphi 0, %s28
      %s17 = sphi 0, %s24
      %s18 = sphi 0, %s16
      %s19 = sphi 0, %s17
      %s20 = sphi 0, %s18
      %s21 = sphi 0, %s19
      %s31 = sphi 0, %s33
      %s34 = sphi 0, %s31
      %s35 = sphi 0, %s34
      %s51 = sphi 0, %s35
      %s57 = sphi 0, %s59
      %s60 = sphi 0, %s57
      %s61 = sphi 0, %s60
      %s77 = sphi 0, %s61
      %s83 = sphi 0, %s85
      %s86 = sphi 0, %s83
      %s87 = sphi 0, %s86
      %s103 = sphi 0, %s87
      %s111 = sphi 0, %s113
      %s114 = sphi 0, %s111
      %s115 = sphi 0, %s114
      %s131 = sphi 0, %s115
    $region4: #{seq2seq_forward.5} parent=1 // loop_header_branch
      %12 = sbr.rel (%p10) target = $region8
    $region5: #{seq2seq_forward.5} parent=1 // loop_body
      %s14 = ssub.s32 %s9, 1
      %s15 = ssub.s32 %s9, 2
      %s22 = sadd.s32 1, %s17
      %p23 = scmp.ge.s32.totalorder %s22, 3
      %s24 = scalar_select %p23, 0, %s22
      %s25 = sadd.s32 1, %s16
      %s26 = scalar_select %p23, %s25, %s16
      %p27 = scmp.ge.s32.totalorder %s26, 1
      %s28 = scalar_select %p27, 0, %s26
      %s29 = ssub.s32 %s16, %s28
      %p30 = scmp.eq.s32.totalorder %s29, 0
      %s32 = sadd.s32 %s31, 1
      %s33 = scalar_select %p30, %s31, %s32
      %p36 = pneg %p30
      %p37 = scmp.eq.s32.totalorder %s9, 2
      %p38 = por %p36, %p37
      %p39 = scmp.ne.s32.totalorder %s31, %s34
      %p40 = scmp.eq.s32.totalorder %s9, 0
      %p41 = por %p39, %p40
      %p42 = scmp.ne.s32.totalorder %s31, %s34
      %p43 = scmp.eq.s32.totalorder %s14, 2
      %p44 = por %p42, %p43
      %p45 = scmp.ne.s32.totalorder %s34, %s35
      %p46 = scmp.eq.s32.totalorder %s14, 0
      %p47 = por %p45, %p46
      %p48 = scmp.ne.s32.totalorder %s34, %s35
      %p49 = scmp.eq.s32.totalorder %s15, 2
      %p50 = por %p48, %p49
      %p52 = scmp.ne.s32.totalorder %s35, %s51
      %p53 = scmp.eq.s32.totalorder %s15, 0
      %p54 = por %p52, %p53
      %s55 = ssub.s32 %s17, %s24
      %p56 = scmp.eq.s32.totalorder %s55, 0
      %s58 = sadd.s32 %s57, 1
      %s59 = scalar_select %p56, %s57, %s58
      %p62 = pneg %p56
      %p63 = scmp.eq.s32.totalorder %s9, 2
      %p64 = por %p62, %p63
      %p65 = scmp.ne.s32.totalorder %s57, %s60
      %p66 = scmp.eq.s32.totalorder %s9, 0
      %p67 = por %p65, %p66
      %p68 = scmp.ne.s32.totalorder %s57, %s60
      %p69 = scmp.eq.s32.totalorder %s14, 2
      %p70 = por %p68, %p69
      %p71 = scmp.ne.s32.totalorder %s60, %s61
      %p72 = scmp.eq.s32.totalorder %s14, 0
      %p73 = por %p71, %p72
      %p74 = scmp.ne.s32.totalorder %s60, %s61
      %p75 = scmp.eq.s32.totalorder %s15, 2
      %p76 = por %p74, %p75
      %p78 = scmp.ne.s32.totalorder %s61, %s77
      %p79 = scmp.eq.s32.totalorder %s15, 0
      %p80 = por %p78, %p79
      %s81 = ssub.s32 %s17, %s24
      %p82 = scmp.eq.s32.totalorder %s81, 0
      %s84 = sadd.s32 %s83, 1
      %s85 = scalar_select %p82, %s83, %s84
      %p88 = pneg %p82
      %p89 = scmp.eq.s32.totalorder %s9, 2
      %p90 = por %p88, %p89
      %p91 = scmp.ne.s32.totalorder %s83, %s86
      %p92 = scmp.eq.s32.totalorder %s9, 0
      %p93 = por %p91, %p92
      %p94 = scmp.ne.s32.totalorder %s83, %s86
      %p95 = scmp.eq.s32.totalorder %s14, 2
      %p96 = por %p94, %p95
      %p97 = scmp.ne.s32.totalorder %s86, %s87
      %p98 = scmp.eq.s32.totalorder %s14, 0
      %p99 = por %p97, %p98
      %p100 = scmp.ne.s32.totalorder %s86, %s87
      %p101 = scmp.eq.s32.totalorder %s15, 2
      %p102 = por %p100, %p101
      %p104 = scmp.ne.s32.totalorder %s87, %s103
      %p105 = scmp.eq.s32.totalorder %s15, 0
      %p106 = por %p104, %p105
      %s107 = ssub.s32 %s16, %s28
      %s108 = ssub.s32 %s17, %s24
      %s109 = sor.u32 %s107, %s108
      %p110 = scmp.eq.s32.totalorder %s109, 0
      %s112 = sadd.s32 %s111, 1
      %s113 = scalar_select %p110, %s111, %s112
      %p116 = pneg %p110
      %p117 = scmp.eq.s32.totalorder %s9, 2
      %p118 = por %p116, %p117
      %p119 = scmp.ne.s32.totalorder %s111, %s114
      %p120 = scmp.eq.s32.totalorder %s9, 0
      %p121 = por %p119, %p120
      %p122 = scmp.ne.s32.totalorder %s111, %s114
      %p123 = scmp.eq.s32.totalorder %s14, 2
      %p124 = por %p122, %p123
      %p125 = scmp.ne.s32.totalorder %s114, %s115
      %p126 = scmp.eq.s32.totalorder %s14, 0
      %p127 = por %p125, %p126
      %p128 = scmp.ne.s32.totalorder %s114, %s115
      %p129 = scmp.eq.s32.totalorder %s15, 2
      %p130 = por %p128, %p129
      %p132 = scmp.ne.s32.totalorder %s115, %s131
      %p133 = scmp.eq.s32.totalorder %s15, 0
      %p134 = por %p132, %p133
      %p135 = scmp.le.s32.totalorder 1, %s9
      %p136 = scmp.lt.s32.totalorder %s9, 4
      %p137 = pnand %p135, %p136
      %p138 = pneg %p137
      // Predicated region
      $region9: #{seq2seq_forward.5} parent=5 // pred_check
        _
      $region10: #{seq2seq_forward.5} parent=5 // pred_check_branch
        %140 = sbr.rel (%p137) target = $region12
      $region11: #{seq2seq_forward.5} parent=5 // pred_region
        %s141 = ssub.s32 %s9, 1
        // Predicated region
        $region13: #{seq2seq_forward.5} parent=11 // pred_check
          %p142 = pneg %p47
        $region14: #{seq2seq_forward.5} parent=11 // pred_check_branch
          %144 = sbr.rel (%p142) target = $region16
        $region15: #{seq2seq_forward.5} parent=11 // pred_region
          %s145 = smul.u32 8, %s18
          %p146 = scmp.lt.s32.totalorder %s145, 7
          %s147 = scalar_select %p146, %s145, 7
          %s148 = smul.addr %s147, 8
          %s149 = scalar_lea.vmem %s0, %s148
          %s150 = smul.u32 8, %s18
        $region16: #{seq2seq_forward.5} parent=11 // pred_fallthru
          _
      $region12: #{seq2seq_forward.5} parent=5 // pred_fallthru
        _
      %p151 = scmp.lt.s32.totalorder %s9, 3
      // Predicated region
      $region17: #{seq2seq_forward.5} parent=5 // pred_check
        %p152 = pneg %p151
      $region18: #{seq2seq_forward.5} parent=5 // pred_check_branch
        %154 = sbr.rel (%p152) target = $region20
      $region19: #{seq2seq_forward.5} parent=5 // pred_region
        // Predicated region
        $region21: #{seq2seq_forward.5} parent=19 // pred_check
          %p155 = pneg %p67
        $region22: #{seq2seq_forward.5} parent=19 // pred_check_branch
          %157 = sbr.rel (%p155) target = $region24
        $region23: #{seq2seq_forward.5} parent=19 // pred_region
          %s158 = sand.u32 %s57, 1
          %s159 = sand.u32 %s57, 1
          %s160 = smul.addr %s159, 128
          %s161 = scalar_lea.vmem [#allocation2], %s160
          %s162 = smul.addr %s17, 8
          %s163 = scalar_lea.vmem %s1, %s162
          // Predicated region
          $region25: #{seq2seq_forward.5} parent=23 // pred_check
            _
          $region26: #{seq2seq_forward.5} parent=23 // pred_check_branch
            %165 = sbr.rel (0) target = $region28
          $region27: #{seq2seq_forward.5} parent=23 // pred_region
            // Predicated region
            $region29: #{seq2seq_forward.5} parent=27 // pred_check
              _
            $region30: #{seq2seq_forward.5} parent=27 // pred_check_branch
              %167 = sbr.rel (0) target = $region32
            $region31: #{seq2seq_forward.5} parent=27 // pred_region
              // Predicated region
              $region44: #{seq2seq_forward.5} parent=31 // pred_check
                _
              $region45: #{seq2seq_forward.5} parent=31 // pred_check_branch
                %213 = sbr.rel (0) target = $region47
              $region46: #{seq2seq_forward.5} parent=31 // pred_region
                loop: start=0, step=1, limit=1
                $region48: #{seq2seq_forward.5} parent=46 // loop_pre_header
                  _
                $region49: #{seq2seq_forward.5} parent=46 // loop_header
                  %s215 = sphi 0, %s219
                  %p216 = scmp.ge.s32.totalorder %s215, 1
                  %s220 = sphi %s163, %s163
                  %s221 = sphi %s161, %s161
                $region50: #{seq2seq_forward.5} parent=46 // loop_header_branch
                  %218 = sbr.rel (%p216) target = $region54
                $region51: #{seq2seq_forward.5} parent=46 // loop_body
                  %v222 = vld [vmem:[%s220] sm:$0xff]
                  %223 = vst [vmem:[%s221] sm:$0xff] %v222
                  %v224 = vld [vmem:[%s220 + $0x18] sm:$0xff]
                  %225 = vst [vmem:[%s221 + $0x8] sm:$0xff] %v224
                  %v226 = vld [vmem:[%s220 + $0x30] sm:$0xff]
                  %227 = vst [vmem:[%s221 + $0x10] sm:$0xff] %v226
                  %v228 = vld [vmem:[%s220 + $0x48] sm:$0xff]
                  %229 = vst [vmem:[%s221 + $0x18] sm:$0xff] %v228
                  %v230 = vld [vmem:[%s220 + $0x60] sm:$0xff]
                  %231 = vst [vmem:[%s221 + $0x20] sm:$0xff] %v230
                  %v232 = vld [vmem:[%s220 + $0x78] sm:$0xff]
                  %233 = vst [vmem:[%s221 + $0x28] sm:$0xff] %v232
                  %v234 = vld [vmem:[%s220 + $0x90] sm:$0xff]
                  %235 = vst [vmem:[%s221 + $0x30] sm:$0xff] %v234
                  %v236 = vld [vmem:[%s220 + $0xa8] sm:$0xff]
                  %237 = vst [vmem:[%s221 + $0x38] sm:$0xff] %v236
                  %v238 = vld [vmem:[%s220 + $0xc0] sm:$0xff]
                  %239 = vst [vmem:[%s221 + $0x40] sm:$0xff] %v238
                  %v240 = vld [vmem:[%s220 + $0xd8] sm:$0xff]
                  %241 = vst [vmem:[%s221 + $0x48] sm:$0xff] %v240
                  %v242 = vld [vmem:[%s220 + $0xf0] sm:$0xff]
                  %243 = vst [vmem:[%s221 + $0x50] sm:$0xff] %v242
                  %v244 = vld [vmem:[%s220 + $0x108] sm:$0xff]
                  %245 = vst [vmem:[%s221 + $0x58] sm:$0xff] %v244
                  %v246 = vld [vmem:[%s220 + $0x120] sm:$0xff]
                  %247 = vst [vmem:[%s221 + $0x60] sm:$0xff] %v246
                  %v248 = vld [vmem:[%s220 + $0x138] sm:$0xff]
                  %249 = vst [vmem:[%s221 + $0x68] sm:$0xff] %v248
                  %v250 = vld [vmem:[%s220 + $0x150] sm:$0xff]
                  %251 = vst [vmem:[%s221 + $0x70] sm:$0xff] %v250
                  %v252 = vld [vmem:[%s220 + $0x168] sm:$0xff]
                  %253 = vst [vmem:[%s221 + $0x78] sm:$0xff] %v252
                $region52: #{seq2seq_forward.5} parent=46 // loop_footer
                  %s219 = sadd.s32 1, %s215
                $region53: #{seq2seq_forward.5} parent=46 // loop_footer_branch
                  %214 = sbr.rel target = $region49
                $region54: #{seq2seq_forward.5} parent=46 // loop_exit
                  _
              $region47: #{seq2seq_forward.5} parent=31 // pred_fallthru
                _
              // Predicated region
              $region55: #{seq2seq_forward.5} parent=31 // pred_check
                _
              $region56: #{seq2seq_forward.5} parent=31 // pred_check_branch
                %255 = sbr.rel target = $region58
              $region57: #{seq2seq_forward.5} parent=31 // pred_region
                _
              $region58: #{seq2seq_forward.5} parent=31 // pred_fallthru
                _
            $region32: #{seq2seq_forward.5} parent=27 // pred_fallthru
              _
            // Predicated region
            $region33: #{seq2seq_forward.5} parent=27 // pred_check
              _
            $region34: #{seq2seq_forward.5} parent=27 // pred_check_branch
              %169 = sbr.rel target = $region36
            $region35: #{seq2seq_forward.5} parent=27 // pred_region
              %s171 = ssub.s32 256, 1
              loop: start=0, step=1, limit=1
              $region37: #{seq2seq_forward.5} parent=35 // loop_pre_header
                _
              $region38: #{seq2seq_forward.5} parent=35 // loop_header
                %s173 = sphi 0, %s177
                %p174 = scmp.ge.s32.totalorder %s173, 1
                %s178 = sphi %s163, %s163
                %s179 = sphi %s161, %s161
              $region39: #{seq2seq_forward.5} parent=35 // loop_header_branch
                %176 = sbr.rel (%p174) target = $region43
              $region40: #{seq2seq_forward.5} parent=35 // loop_body
                %v180 = vld [vmem:[%s178] sm:%s171]
                %181 = vst [vmem:[%s179] sm:%s171] %v180
                %v182 = vld [vmem:[%s178 + $0x18] sm:%s171]
                %183 = vst [vmem:[%s179 + $0x8] sm:%s171] %v182
                %v184 = vld [vmem:[%s178 + $0x30] sm:%s171]
                %185 = vst [vmem:[%s179 + $0x10] sm:%s171] %v184
                %v186 = vld [vmem:[%s178 + $0x48] sm:%s171]
                %187 = vst [vmem:[%s179 + $0x18] sm:%s171] %v186
                %v188 = vld [vmem:[%s178 + $0x60] sm:%s171]
                %189 = vst [vmem:[%s179 + $0x20] sm:%s171] %v188
                %v190 = vld [vmem:[%s178 + $0x78] sm:%s171]
                %191 = vst [vmem:[%s179 + $0x28] sm:%s171] %v190
                %v192 = vld [vmem:[%s178 + $0x90] sm:%s171]
                %193 = vst [vmem:[%s179 + $0x30] sm:%s171] %v192
                %v194 = vld [vmem:[%s178 + $0xa8] sm:%s171]
                %195 = vst [vmem:[%s179 + $0x38] sm:%s171] %v194
                %v196 = vld [vmem:[%s178 + $0xc0] sm:%s171]
                %197 = vst [vmem:[%s179 + $0x40] sm:%s171] %v196
                %v198 = vld [vmem:[%s178 + $0xd8] sm:%s171]
                %199 = vst [vmem:[%s179 + $0x48] sm:%s171] %v198
                %v200 = vld [vmem:[%s178 + $0xf0] sm:%s171]
                %201 = vst [vmem:[%s179 + $0x50] sm:%s171] %v200
                %v202 = vld [vmem:[%s178 + $0x108] sm:%s171]
                %203 = vst [vmem:[%s179 + $0x58] sm:%s171] %v202
                %v204 = vld [vmem:[%s178 + $0x120] sm:%s171]
                %205 = vst [vmem:[%s179 + $0x60] sm:%s171] %v204
                %v206 = vld [vmem:[%s178 + $0x138] sm:%s171]
                %207 = vst [vmem:[%s179 + $0x68] sm:%s171] %v206
                %v208 = vld [vmem:[%s178 + $0x150] sm:%s171]
                %209 = vst [vmem:[%s179 + $0x70] sm:%s171] %v208
                %v210 = vld [vmem:[%s178 + $0x168] sm:%s171]
                %211 = vst [vmem:[%s179 + $0x78] sm:%s171] %v210
              $region41: #{seq2seq_forward.5} parent=35 // loop_footer
                %s177 = sadd.s32 1, %s173
              $region42: #{seq2seq_forward.5} parent=35 // loop_footer_branch
                %172 = sbr.rel target = $region38
              $region43: #{seq2seq_forward.5} parent=35 // loop_exit
                _
            $region36: #{seq2seq_forward.5} parent=27 // pred_fallthru
              _
          $region28: #{seq2seq_forward.5} parent=23 // pred_fallthru
            _
          %256 = vnop
        $region24: #{seq2seq_forward.5} parent=19 // pred_fallthru
          _
        // Predicated region
        $region59: #{seq2seq_forward.5} parent=19 // pred_check
          %p257 = pneg %p93
        $region60: #{seq2seq_forward.5} parent=19 // pred_check_branch
          %259 = sbr.rel (%p257) target = $region62
        $region61: #{seq2seq_forward.5} parent=19 // pred_region
          %p260 = scmp.lt.s32.totalorder %s17, 2
          %s261 = scalar_select %p260, %s17, 2
          %s262 = scalar_lea.vmem %s2, %s261
        $region62: #{seq2seq_forward.5} parent=19 // pred_fallthru
          _
      $region20: #{seq2seq_forward.5} parent=5 // pred_fallthru
        _
      %p263 = scmp.le.s32.totalorder 1, %s9
      %p264 = scmp.lt.s32.totalorder %s9, 4
      %p265 = pnand %p263, %p264
      %p266 = pneg %p265
      // Predicated region
      $region63: #{seq2seq_forward.5} parent=5 // pred_check
        _
      $region64: #{seq2seq_forward.5} parent=5 // pred_check_branch
        %268 = sbr.rel (%p265) target = $region66
      $region65: #{seq2seq_forward.5} parent=5 // pred_region
        %s269 = ssub.s32 %s9, 1
        %s270 = sand.u32 %s60, 1
        %s271 = sand.u32 %s60, 1
        %s272 = smul.addr %s271, 128
        %s273 = scalar_lea.vmem [#allocation2], %s272
        // Predicated region
        $region67: #{seq2seq_forward.5} parent=65 // pred_check
          %p274 = pneg %p73
        $region68: #{seq2seq_forward.5} parent=65 // pred_check_branch
          %276 = sbr.rel (%p274) target = $region70
        $region69: #{seq2seq_forward.5} parent=65 // pred_region
          _
        $region70: #{seq2seq_forward.5} parent=65 // pred_fallthru
          _
        %s277 = smul.u32 8, %s18
        %p278 = scmp.lt.s32.totalorder %s277, 7
        %s279 = scalar_select %p278, %s277, 7
        %s280 = smul.addr %s279, 8
        %s281 = scalar_lea.vmem %s0, %s280
        %p282 = pneg %p47
        %p283 = pneg %p44
        %s284 = sand.u32 %s60, 1
        %s285 = sand.u32 %s60, 1
        %s286 = smul.addr %s285, 128
        %s287 = scalar_lea.vmem [#allocation2], %s286
        %p288 = pneg %p73
        %p289 = pneg %p70
        %p290 = scmp.lt.s32.totalorder %s19, 2
        %s291 = scalar_select %p290, %s19, 2
        %s292 = scalar_lea.vmem %s2, %s291
        %p293 = pneg %p99
        %p294 = pneg %p96
        %p295 = pneg %p127
        %p296 = pneg %p124
        %s297 = sand.u32 %s114, 1
        %s298 = sand.u32 %s114, 1
        %s299 = smul.addr %s298, 64
        %s300 = scalar_lea.vmem [#allocation3], %s299
        %s301 = smul.u32 8, %s18
        %p302 = scmp.lt.s32.totalorder %s301, 7
        %s303 = scalar_select %p302, %s301, 7
        %s304 = smul.addr %s303, 8
        %s305 = scalar_lea.vmem %s0, %s304
        %s306 = smul.u32 8, %s18
        %p307 = scmp.lt.s32.totalorder %s19, 2
        %s308 = scalar_select %p307, %s19, 2
        %s309 = scalar_lea.vmem %s2, %s308
        %s310 = smul.u32 8, %s18
        %v311 = vld [vmem:[%s305] sm:$0xff]
        %v312 = vld [vmem:[%s305 + $0x8] sm:$0xff]
        %v313 = vld [vmem:[%s305 + $0x10] sm:$0xff]
        %v314 = vld [vmem:[%s305 + $0x18] sm:$0xff]
        %v315 = vld [vmem:[%s305 + $0x20] sm:$0xff]
        %v316 = vld [vmem:[%s305 + $0x28] sm:$0xff]
        %v317 = vld [vmem:[%s305 + $0x30] sm:$0xff]
        %v318 = vld [vmem:[%s305 + $0x38] sm:$0xff]
        %v319 = vld [vmem:[%s273] sm:$0xff]
        %v320 = vld [vmem:[%s273 + $0x8] sm:$0xff]
        %v321 = vld [vmem:[%s273 + $0x10] sm:$0xff]
        %v322 = vld [vmem:[%s273 + $0x18] sm:$0xff]
        %v323 = vld [vmem:[%s273 + $0x20] sm:$0xff]
        %v324 = vld [vmem:[%s273 + $0x28] sm:$0xff]
        %v325 = vld [vmem:[%s273 + $0x30] sm:$0xff]
        %v326 = vld [vmem:[%s273 + $0x38] sm:$0xff]
        %v327 = vld [vmem:[%s273 + $0x40] sm:$0xff]
        %v328 = vld [vmem:[%s273 + $0x48] sm:$0xff]
        %v329 = vld [vmem:[%s273 + $0x50] sm:$0xff]
        %v330 = vld [vmem:[%s273 + $0x58] sm:$0xff]
        %v331 = vld [vmem:[%s273 + $0x60] sm:$0xff]
        %v332 = vld [vmem:[%s273 + $0x68] sm:$0xff]
        %v333 = vld [vmem:[%s273 + $0x70] sm:$0xff]
        %v334 = vld [vmem:[%s273 + $0x78] sm:$0xff]
        %v335 = vld [vmem:[%s309] sm:$0x1]
        %v337 = vlaneseq
        %v338 = vshrl.u32 %v337, 7
        %v339 = vsub.s32 0, %v338
        %v340 = vrot.slane %v335, %v339
        %342 = vmatprep.subr.mxu0 0.0
        %343 = vmatpush1.msra.mxu0 %v334
        %344 = vmatprep.subr.mxu0 0.0
        %345 = vmatpush1.msra.mxu0 %v333
        %346 = vmatprep.subr.mxu0 0.0
        %347 = vmatpush1.msra.mxu0 %v332
        %348 = vmatprep.subr.mxu0 0.0
        %349 = vmatpush1.msra.mxu0 %v331
        %350 = vmatprep.subr.mxu0 0.0
        %351 = vmatpush1.msra.mxu0 %v330
        %352 = vmatprep.subr.mxu0 0.0
        %353 = vmatpush1.msra.mxu0 %v329
        %354 = vmatprep.subr.mxu0 0.0
        %355 = vmatpush1.msra.mxu0 %v328
        %356 = vmatprep.subr.mxu0 0.0
        %357 = vmatpush1.msra.mxu0 %v327
        %358 = vmatprep.subr.mxu0 0.0
        %359 = vmatpush1.msra.mxu0 %v326
        %360 = vmatprep.subr.mxu0 0.0
        %361 = vmatpush1.msra.mxu0 %v325
        %362 = vmatprep.subr.mxu0 0.0
        %363 = vmatpush1.msra.mxu0 %v324
        %364 = vmatprep.subr.mxu0 0.0
        %365 = vmatpush1.msra.mxu0 %v323
        %366 = vmatprep.subr.mxu0 0.0
        %367 = vmatpush1.msra.mxu0 %v322
        %368 = vmatprep.subr.mxu0 0.0
        %369 = vmatpush1.msra.mxu0 %v321
        %370 = vmatprep.subr.mxu0 0.0
        %371 = vmatpush1.msra.mxu0 %v320
        %372 = vmatprep.subr.mxu0 0.0
        %373 = vmatpush1.msra.mxu0 %v319
        %374 = vmatprep.subr.mxu0 0.0
        %375 = vmatpush2.msra.mxu0 0.0
        %376 = vmatprep.subr.mxu0 0.0
        %377 = vmatpush2.msra.mxu0 0.0
        %378 = vmatprep.subr.mxu0 0.0
        %379 = vmatpush2.msra.mxu0 0.0
        %380 = vmatprep.subr.mxu0 0.0
        %381 = vmatpush2.msra.mxu0 0.0
        %382 = vmatprep.subr.mxu0 0.0
        %383 = vmatpush2.msra.mxu0 0.0
        %384 = vmatprep.subr.mxu0 0.0
        %385 = vmatpush2.msra.mxu0 0.0
        %386 = vmatprep.subr.mxu0 0.0
        %387 = vmatpush2.msra.mxu0 0.0
        %388 = vmatprep.subr.mxu0 0.0
        %389 = vmatpush2.msra.mxu0 0.0
        %390 = vmatprep.subr.mxu0 0.0
        %391 = vmatpush2.msra.mxu0 0.0
        %392 = vmatprep.subr.mxu0 0.0
        %393 = vmatpush2.msra.mxu0 0.0
        %394 = vmatprep.subr.mxu0 0.0
        %395 = vmatpush2.msra.mxu0 0.0
        %396 = vmatprep.subr.mxu0 0.0
        %397 = vmatpush2.msra.mxu0 0.0
        %398 = vmatprep.subr.mxu0 0.0
        %399 = vmatpush2.msra.mxu0 0.0
        %400 = vmatprep.subr.mxu0 0.0
        %401 = vmatpush2.msra.mxu0 0.0
        %402 = vmatprep.subr.mxu0 0.0
        %403 = vmatpush2.msra.mxu0 0.0
        %404 = vmatprep.subr.mxu0 0.0
        %405 = vmatpush2.msra.mxu0 0.0
        %406 = vmatprep.mubr.f32.mxu0 0.0
        %407 = vmatmul.mubr.f32.gmra.mxu0 %v311
        %v408 = vpop.f32.mrf.mxu0
        %v409 = vadd.f32 %v340, %v408
        %v410 = vpop.f32.mrf.mxu0
        %411 = vmatprep.mubr.f32.mxu0 0.0
        %412 = vmatmul.mubr.f32.gmra.mxu0 %v312
        %v413 = vpop.f32.mrf.mxu0
        %v414 = vadd.f32 %v340, %v413
        %v415 = vpop.f32.mrf.mxu0
        %416 = vmatprep.mubr.f32.mxu0 0.0
        %417 = vmatmul.mubr.f32.gmra.mxu0 %v313
        %v418 = vpop.f32.mrf.mxu0
        %v419 = vadd.f32 %v340, %v418
        %v420 = vpop.f32.mrf.mxu0
        %421 = vmatprep.mubr.f32.mxu0 0.0
        %422 = vmatmul.mubr.f32.gmra.mxu0 %v314
        %v423 = vpop.f32.mrf.mxu0
        %v424 = vadd.f32 %v340, %v423
        %v425 = vpop.f32.mrf.mxu0
        %426 = vmatprep.mubr.f32.mxu0 0.0
        %427 = vmatmul.mubr.f32.gmra.mxu0 %v315
        %v428 = vpop.f32.mrf.mxu0
        %v429 = vadd.f32 %v340, %v428
        %v430 = vpop.f32.mrf.mxu0
        %431 = vmatprep.mubr.f32.mxu0 0.0
        %432 = vmatmul.mubr.f32.gmra.mxu0 %v316
        %v433 = vpop.f32.mrf.mxu0
        %v434 = vadd.f32 %v340, %v433
        %v435 = vpop.f32.mrf.mxu0
        %436 = vmatprep.mubr.f32.mxu0 0.0
        %437 = vmatmul.mubr.f32.gmra.mxu0 %v317
        %v438 = vpop.f32.mrf.mxu0
        %v439 = vadd.f32 %v340, %v438
        %v440 = vpop.f32.mrf.mxu0
        %441 = vmatprep.mubr.f32.mxu0 0.0
        %442 = vmatmul.mubr.f32.gmra.mxu0 %v318
        %v443 = vpop.f32.mrf.mxu0
        %v444 = vadd.f32 %v340, %v443
        %v445 = vpop.f32.mrf.mxu0
        %446 = vdwg.mxu0
        %447 = vst [vmem:[%s300] sm:$0xff] %v409
        %448 = vst [vmem:[%s300 + $0x8] sm:$0xff] %v414
        %449 = vst [vmem:[%s300 + $0x10] sm:$0xff] %v419
        %450 = vst [vmem:[%s300 + $0x18] sm:$0xff] %v424
        %451 = vst [vmem:[%s300 + $0x20] sm:$0xff] %v429
        %452 = vst [vmem:[%s300 + $0x28] sm:$0xff] %v434
        %453 = vst [vmem:[%s300 + $0x30] sm:$0xff] %v439
        %454 = vst [vmem:[%s300 + $0x38] sm:$0xff] %v444
        %s455 = sand.u32 %s114, 1
        %s456 = sand.u32 %s114, 1
        %s457 = smul.addr %s456, 64
        %s458 = scalar_lea.vmem [#allocation3], %s457
        // Predicated region
        $region71: #{seq2seq_forward.5} parent=65 // pred_check
          %p459 = pneg %p124
        $region72: #{seq2seq_forward.5} parent=65 // pred_check_branch
          %461 = sbr.rel (%p459) target = $region74
        $region73: #{seq2seq_forward.5} parent=65 // pred_region
          %s462 = smul.u32 8, %s18
          %s463 = smul.addr %s462, 3
          %s464 = sadd.s32 %s19, %s463
          %s465 = smul.addr %s464, 8
          %s466 = scalar_lea.vmem %s3, %s465
          // Predicated region
          $region75: #{seq2seq_forward.5} parent=73 // pred_check
            _
          $region76: #{seq2seq_forward.5} parent=73 // pred_check_branch
            %468 = sbr.rel (0) target = $region78
          $region77: #{seq2seq_forward.5} parent=73 // pred_region
            // Predicated region
            $region79: #{seq2seq_forward.5} parent=77 // pred_check
              _
            $region80: #{seq2seq_forward.5} parent=77 // pred_check_branch
              %470 = sbr.rel (0) target = $region82
            $region81: #{seq2seq_forward.5} parent=77 // pred_region
              // Predicated region
              $region94: #{seq2seq_forward.5} parent=81 // pred_check
                _
              $region95: #{seq2seq_forward.5} parent=81 // pred_check_branch
                %500 = sbr.rel (0) target = $region97
              $region96: #{seq2seq_forward.5} parent=81 // pred_region
                loop: start=0, step=1, limit=1
                $region98: #{seq2seq_forward.5} parent=96 // loop_pre_header
                  _
                $region99: #{seq2seq_forward.5} parent=96 // loop_header
                  %s502 = sphi 0, %s506
                  %p503 = scmp.ge.s32.totalorder %s502, 1
                  %s507 = sphi %s458, %s458
                  %s508 = sphi %s466, %s466
                $region100: #{seq2seq_forward.5} parent=96 // loop_header_branch
                  %505 = sbr.rel (%p503) target = $region104
                $region101: #{seq2seq_forward.5} parent=96 // loop_body
                  %v509 = vld [vmem:[%s507] sm:$0xff]
                  %510 = vst [vmem:[%s508] sm:$0xff] %v509
                  %v511 = vld [vmem:[%s507 + $0x8] sm:$0xff]
                  %512 = vst [vmem:[%s508 + $0x18] sm:$0xff] %v511
                  %v513 = vld [vmem:[%s507 + $0x10] sm:$0xff]
                  %514 = vst [vmem:[%s508 + $0x30] sm:$0xff] %v513
                  %v515 = vld [vmem:[%s507 + $0x18] sm:$0xff]
                  %516 = vst [vmem:[%s508 + $0x48] sm:$0xff] %v515
                  %v517 = vld [vmem:[%s507 + $0x20] sm:$0xff]
                  %518 = vst [vmem:[%s508 + $0x60] sm:$0xff] %v517
                  %v519 = vld [vmem:[%s507 + $0x28] sm:$0xff]
                  %520 = vst [vmem:[%s508 + $0x78] sm:$0xff] %v519
                  %v521 = vld [vmem:[%s507 + $0x30] sm:$0xff]
                  %522 = vst [vmem:[%s508 + $0x90] sm:$0xff] %v521
                  %v523 = vld [vmem:[%s507 + $0x38] sm:$0xff]
                  %524 = vst [vmem:[%s508 + $0xa8] sm:$0xff] %v523
                $region102: #{seq2seq_forward.5} parent=96 // loop_footer
                  %s506 = sadd.s32 1, %s502
                $region103: #{seq2seq_forward.5} parent=96 // loop_footer_branch
                  %501 = sbr.rel target = $region99
                $region104: #{seq2seq_forward.5} parent=96 // loop_exit
                  _
              $region97: #{seq2seq_forward.5} parent=81 // pred_fallthru
                _
              // Predicated region
              $region105: #{seq2seq_forward.5} parent=81 // pred_check
                _
              $region106: #{seq2seq_forward.5} parent=81 // pred_check_branch
                %526 = sbr.rel target = $region108
              $region107: #{seq2seq_forward.5} parent=81 // pred_region
                _
              $region108: #{seq2seq_forward.5} parent=81 // pred_fallthru
                _
            $region82: #{seq2seq_forward.5} parent=77 // pred_fallthru
              _
            // Predicated region
            $region83: #{seq2seq_forward.5} parent=77 // pred_check
              _
            $region84: #{seq2seq_forward.5} parent=77 // pred_check_branch
              %472 = sbr.rel target = $region86
            $region85: #{seq2seq_forward.5} parent=77 // pred_region
              %s474 = ssub.s32 256, 1
              loop: start=0, step=1, limit=1
              $region87: #{seq2seq_forward.5} parent=85 // loop_pre_header
                _
              $region88: #{seq2seq_forward.5} parent=85 // loop_header
                %s476 = sphi 0, %s480
                %p477 = scmp.ge.s32.totalorder %s476, 1
                %s481 = sphi %s458, %s458
                %s482 = sphi %s466, %s466
              $region89: #{seq2seq_forward.5} parent=85 // loop_header_branch
                %479 = sbr.rel (%p477) target = $region93
              $region90: #{seq2seq_forward.5} parent=85 // loop_body
                %v483 = vld [vmem:[%s481] sm:%s474]
                %484 = vst [vmem:[%s482] sm:%s474] %v483
                %v485 = vld [vmem:[%s481 + $0x8] sm:%s474]
                %486 = vst [vmem:[%s482 + $0x18] sm:%s474] %v485
                %v487 = vld [vmem:[%s481 + $0x10] sm:%s474]
                %488 = vst [vmem:[%s482 + $0x30] sm:%s474] %v487
                %v489 = vld [vmem:[%s481 + $0x18] sm:%s474]
                %490 = vst [vmem:[%s482 + $0x48] sm:%s474] %v489
                %v491 = vld [vmem:[%s481 + $0x20] sm:%s474]
                %492 = vst [vmem:[%s482 + $0x60] sm:%s474] %v491
                %v493 = vld [vmem:[%s481 + $0x28] sm:%s474]
                %494 = vst [vmem:[%s482 + $0x78] sm:%s474] %v493
                %v495 = vld [vmem:[%s481 + $0x30] sm:%s474]
                %496 = vst [vmem:[%s482 + $0x90] sm:%s474] %v495
                %v497 = vld [vmem:[%s481 + $0x38] sm:%s474]
                %498 = vst [vmem:[%s482 + $0xa8] sm:%s474] %v497
              $region91: #{seq2seq_forward.5} parent=85 // loop_footer
                %s480 = sadd.s32 1, %s476
              $region92: #{seq2seq_forward.5} parent=85 // loop_footer_branch
                %475 = sbr.rel target = $region88
              $region93: #{seq2seq_forward.5} parent=85 // loop_exit
                _
            $region86: #{seq2seq_forward.5} parent=77 // pred_fallthru
              _
          $region78: #{seq2seq_forward.5} parent=73 // pred_fallthru
            _
          %527 = vnop
        $region74: #{seq2seq_forward.5} parent=65 // pred_fallthru
          _
      $region66: #{seq2seq_forward.5} parent=5 // pred_fallthru
        _
      %p528 = scmp.le.s32.totalorder 2, %s9
      // Predicated region
      $region109: #{seq2seq_forward.5} parent=5 // pred_check
        %p529 = pneg %p528
      $region110: #{seq2seq_forward.5} parent=5 // pred_check_branch
        %531 = sbr.rel (%p529) target = $region112
      $region111: #{seq2seq_forward.5} parent=5 // pred_region
        %s532 = ssub.s32 %s9, 2
        // Predicated region
        $region113: #{seq2seq_forward.5} parent=111 // pred_check
          %p533 = pneg %p130
        $region114: #{seq2seq_forward.5} parent=111 // pred_check_branch
          %535 = sbr.rel (%p533) target = $region116
        $region115: #{seq2seq_forward.5} parent=111 // pred_region
          %s536 = sand.u32 %s115, 1
          %s537 = sand.u32 %s115, 1
          %s538 = smul.addr %s537, 64
          %s539 = scalar_lea.vmem [#allocation3], %s538
        $region116: #{seq2seq_forward.5} parent=111 // pred_fallthru
          _
      $region112: #{seq2seq_forward.5} parent=5 // pred_fallthru
        _
    $region6: #{seq2seq_forward.5} parent=1 // loop_footer
      %s13 = sadd.s32 1, %s9
    $region7: #{seq2seq_forward.5} parent=1 // loop_footer_branch
      %8 = sbr.rel target = $region3
    $region8: #{seq2seq_forward.5} parent=1 // loop_exit
      _

// kernel: seq2seq_forward.7
$region0: #{seq2seq_forward.7}
  #allocation0 [shape = 'u32[]', space=smem, size = 0x4, offset = 0x4, fixed_abs, tag = 'smem constant byte address 0x4 - core index']
  #allocation1 [shape = 'u32[144,128]{1,0:T(1,128)}', space=vmem, size = 0x12000, scoped, tag = 'internal scratch']
  %s0 = inlined_call_operand.vmem [shape: f32[64,128], index: 0, kind: input, shape index: {}]
  %s1 = inlined_call_operand.vmem [shape: f32[128,128], index: 1, kind: input, shape index: {}]
  %s2 = inlined_call_operand.vmem [shape: f32[1,128], index: 2, kind: input, shape index: {}]
  %s3 = inlined_call_operand.vmem [shape: f32[64,128], index: 3, kind: output, shape index: {}]
  %s4 = sld [smem:[#allocation0]]
  $region22: #{seq2seq_forward.7} parent=0
    _
  %s6 = ssub.s32 1, %s4
  %s7 = scalar_select 0, %s6, %s4
  // Predicated region
  $region2: #{seq2seq_forward.7} parent=0 // pred_check
    _
  $region3: #{seq2seq_forward.7} parent=0 // pred_check_branch
    %9 = sbr.rel (0) target = $region5
  $region4: #{seq2seq_forward.7} parent=0 // pred_region
    _
  $region5: #{seq2seq_forward.7} parent=0 // pred_fallthru
    _
  // Predicated region
  $region6: #{seq2seq_forward.7} parent=0 // pred_check
    _
  $region7: #{seq2seq_forward.7} parent=0 // pred_check_branch
    %11 = sbr.rel (0) target = $region9
  $region8: #{seq2seq_forward.7} parent=0 // pred_region
    _
  $region9: #{seq2seq_forward.7} parent=0 // pred_fallthru
    _
  // Predicated region
  $region10: #{seq2seq_forward.7} parent=0 // pred_check
    _
  $region11: #{seq2seq_forward.7} parent=0 // pred_check_branch
    %13 = sbr.rel (0) target = $region13
  $region12: #{seq2seq_forward.7} parent=0 // pred_region
    _
  $region13: #{seq2seq_forward.7} parent=0 // pred_fallthru
    _
  %v14 = vld [vmem:[%s0] sm:$0xff]
  %v15 = vld [vmem:[%s0 + $0x8] sm:$0xff]
  %v16 = vld [vmem:[%s0 + $0x10] sm:$0xff]
  %v17 = vld [vmem:[%s0 + $0x18] sm:$0xff]
  %v18 = vld [vmem:[%s0 + $0x20] sm:$0xff]
  %v19 = vld [vmem:[%s0 + $0x28] sm:$0xff]
  %v20 = vld [vmem:[%s0 + $0x30] sm:$0xff]
  %v21 = vld [vmem:[%s0 + $0x38] sm:$0xff]
  %v22 = vld [vmem:[%s1] sm:$0xff]
  %v23 = vld [vmem:[%s1 + $0x8] sm:$0xff]
  %v24 = vld [vmem:[%s1 + $0x10] sm:$0xff]
  %v25 = vld [vmem:[%s1 + $0x18] sm:$0xff]
  %v26 = vld [vmem:[%s1 + $0x20] sm:$0xff]
  %v27 = vld [vmem:[%s1 + $0x28] sm:$0xff]
  %v28 = vld [vmem:[%s1 + $0x30] sm:$0xff]
  %v29 = vld [vmem:[%s1 + $0x38] sm:$0xff]
  %v30 = vld [vmem:[%s1 + $0x40] sm:$0xff]
  %v31 = vld [vmem:[%s1 + $0x48] sm:$0xff]
  %v32 = vld [vmem:[%s1 + $0x50] sm:$0xff]
  %v33 = vld [vmem:[%s1 + $0x58] sm:$0xff]
  %v34 = vld [vmem:[%s1 + $0x60] sm:$0xff]
  %v35 = vld [vmem:[%s1 + $0x68] sm:$0xff]
  %v36 = vld [vmem:[%s1 + $0x70] sm:$0xff]
  %v37 = vld [vmem:[%s1 + $0x78] sm:$0xff]
  %v38 = vld [vmem:[%s2] sm:$0x1]
  %v40 = vlaneseq
  %v41 = vshrl.u32 %v40, 7
  %v42 = vsub.s32 0, %v41
  %v43 = vrot.slane %v38, %v42
  %45 = vmatprep.subr.mxu0 0.0
  %46 = vmatpush1.msra.mxu0 %v37
  %47 = vmatprep.subr.mxu0 0.0
  %48 = vmatpush1.msra.mxu0 %v36
  %49 = vmatprep.subr.mxu0 0.0
  %50 = vmatpush1.msra.mxu0 %v35
  %51 = vmatprep.subr.mxu0 0.0
  %52 = vmatpush1.msra.mxu0 %v34
  %53 = vmatprep.subr.mxu0 0.0
  %54 = vmatpush1.msra.mxu0 %v33
  %55 = vmatprep.subr.mxu0 0.0
  %56 = vmatpush1.msra.mxu0 %v32
  %57 = vmatprep.subr.mxu0 0.0
  %58 = vmatpush1.msra.mxu0 %v31
  %59 = vmatprep.subr.mxu0 0.0
  %60 = vmatpush1.msra.mxu0 %v30
  %61 = vmatprep.subr.mxu0 0.0
  %62 = vmatpush1.msra.mxu0 %v29
  %63 = vmatprep.subr.mxu0 0.0
  %64 = vmatpush1.msra.mxu0 %v28
  %65 = vmatprep.subr.mxu0 0.0
  %66 = vmatpush1.msra.mxu0 %v27
  %67 = vmatprep.subr.mxu0 0.0
  %68 = vmatpush1.msra.mxu0 %v26
  %69 = vmatprep.subr.mxu0 0.0
  %70 = vmatpush1.msra.mxu0 %v25
  %71 = vmatprep.subr.mxu0 0.0
  %72 = vmatpush1.msra.mxu0 %v24
  %73 = vmatprep.subr.mxu0 0.0
  %74 = vmatpush1.msra.mxu0 %v23
  %75 = vmatprep.subr.mxu0 0.0
  %76 = vmatpush1.msra.mxu0 %v22
  %77 = vmatprep.subr.mxu0 0.0
  %78 = vmatpush2.msra.mxu0 0.0
  %79 = vmatprep.subr.mxu0 0.0
  %80 = vmatpush2.msra.mxu0 0.0
  %81 = vmatprep.subr.mxu0 0.0
  %82 = vmatpush2.msra.mxu0 0.0
  %83 = vmatprep.subr.mxu0 0.0
  %84 = vmatpush2.msra.mxu0 0.0
  %85 = vmatprep.subr.mxu0 0.0
  %86 = vmatpush2.msra.mxu0 0.0
  %87 = vmatprep.subr.mxu0 0.0
  %88 = vmatpush2.msra.mxu0 0.0
  %89 = vmatprep.subr.mxu0 0.0
  %90 = vmatpush2.msra.mxu0 0.0
  %91 = vmatprep.subr.mxu0 0.0
  %92 = vmatpush2.msra.mxu0 0.0
  %93 = vmatprep.subr.mxu0 0.0
  %94 = vmatpush2.msra.mxu0 0.0
  %95 = vmatprep.subr.mxu0 0.0
  %96 = vmatpush2.msra.mxu0 0.0
  %97 = vmatprep.subr.mxu0 0.0
  %98 = vmatpush2.msra.mxu0 0.0
  %99 = vmatprep.subr.mxu0 0.0
  %100 = vmatpush2.msra.mxu0 0.0
  %101 = vmatprep.subr.mxu0 0.0
  %102 = vmatpush2.msra.mxu0 0.0
  %103 = vmatprep.subr.mxu0 0.0
  %104 = vmatpush2.msra.mxu0 0.0
  %105 = vmatprep.subr.mxu0 0.0
  %106 = vmatpush2.msra.mxu0 0.0
  %107 = vmatprep.subr.mxu0 0.0
  %108 = vmatpush2.msra.mxu0 0.0
  %109 = vmatprep.mubr.f32.mxu0 0.0
  %110 = vmatmul.mubr.f32.gmra.mxu0 %v14
  %v111 = vpop.f32.mrf.mxu0
  %v112 = vadd.f32 %v43, %v111
  %v113 = vpop.f32.mrf.mxu0
  %114 = vmatprep.mubr.f32.mxu0 0.0
  %115 = vmatmul.mubr.f32.gmra.mxu0 %v15
  %v116 = vpop.f32.mrf.mxu0
  %v117 = vadd.f32 %v43, %v116
  %v118 = vpop.f32.mrf.mxu0
  %119 = vmatprep.mubr.f32.mxu0 0.0
  %120 = vmatmul.mubr.f32.gmra.mxu0 %v16
  %v121 = vpop.f32.mrf.mxu0
  %v122 = vadd.f32 %v43, %v121
  %v123 = vpop.f32.mrf.mxu0
  %124 = vmatprep.mubr.f32.mxu0 0.0
  %125 = vmatmul.mubr.f32.gmra.mxu0 %v17
  %v126 = vpop.f32.mrf.mxu0
  %v127 = vadd.f32 %v43, %v126
  %v128 = vpop.f32.mrf.mxu0
  %129 = vmatprep.mubr.f32.mxu0 0.0
  %130 = vmatmul.mubr.f32.gmra.mxu0 %v18
  %v131 = vpop.f32.mrf.mxu0
  %v132 = vadd.f32 %v43, %v131
  %v133 = vpop.f32.mrf.mxu0
  %134 = vmatprep.mubr.f32.mxu0 0.0
  %135 = vmatmul.mubr.f32.gmra.mxu0 %v19
  %v136 = vpop.f32.mrf.mxu0
  %v137 = vadd.f32 %v43, %v136
  %v138 = vpop.f32.mrf.mxu0
  %139 = vmatprep.mubr.f32.mxu0 0.0
  %140 = vmatmul.mubr.f32.gmra.mxu0 %v20
  %v141 = vpop.f32.mrf.mxu0
  %v142 = vadd.f32 %v43, %v141
  %v143 = vpop.f32.mrf.mxu0
  %144 = vmatprep.mubr.f32.mxu0 0.0
  %145 = vmatmul.mubr.f32.gmra.mxu0 %v21
  %v146 = vpop.f32.mrf.mxu0
  %v147 = vadd.f32 %v43, %v146
  %v148 = vpop.f32.mrf.mxu0
  %149 = vdwg.mxu0
  %150 = vst [vmem:[%s3] sm:$0xff] %v112
  %151 = vst [vmem:[%s3 + $0x8] sm:$0xff] %v117
  %152 = vst [vmem:[%s3 + $0x10] sm:$0xff] %v122
  %153 = vst [vmem:[%s3 + $0x18] sm:$0xff] %v127
  %154 = vst [vmem:[%s3 + $0x20] sm:$0xff] %v132
  %155 = vst [vmem:[%s3 + $0x28] sm:$0xff] %v137
  %156 = vst [vmem:[%s3 + $0x30] sm:$0xff] %v142
  %157 = vst [vmem:[%s3 + $0x38] sm:$0xff] %v147
  // Predicated region
  $region14: #{seq2seq_forward.7} parent=0 // pred_check
    _
  $region15: #{seq2seq_forward.7} parent=0 // pred_check_branch
    %159 = sbr.rel (0) target = $region17
  $region16: #{seq2seq_forward.7} parent=0 // pred_region
    _
  $region17: #{seq2seq_forward.7} parent=0 // pred_fallthru
    _
  // Predicated region
  $region18: #{seq2seq_forward.7} parent=0 // pred_check
    _
  $region19: #{seq2seq_forward.7} parent=0 // pred_check_branch
    %161 = sbr.rel (0) target = $region21
  $region20: #{seq2seq_forward.7} parent=0 // pred_region
    _
  $region21: #{seq2seq_forward.7} parent=0 // pred_fallthru
    _

// kernel: seq2seq_forward.4
$region0: #{seq2seq_forward.4}
  #allocation0 [shape = 'u32[]', space=smem, size = 0x4, offset = 0x4, fixed_abs, tag = 'smem constant byte address 0x4 - core index']
  #allocation1 [shape = 'u32[144,128]{1,0:T(1,128)}', space=vmem, size = 0x12000, scoped, tag = 'internal scratch']
  #allocation2 [shape = 'f32[8,8,384]{2,1,0:T(8,128)}', space=vmem, size = 0x18000, scoped, tag = 'scratch operand']
  #allocation3 [shape = 'f32[8,8,384]{2,1,0:T(8,128)}', space=vmem, size = 0x18000, scoped, tag = 'scratch operand']
  %s0 = inlined_call_operand.vmem [shape: f32[8,8,128], index: 0, kind: input, shape index: {}]
  %s1 = inlined_call_operand.vmem [shape: f32[8,8,1], index: 1, kind: input, shape index: {}]
  %s2 = inlined_call_operand.vmem [shape: f32[128,384], index: 2, kind: input, shape index: {}]
  %s3 = inlined_call_operand.vmem [shape: f32[128,384], index: 3, kind: input, shape index: {}]
  %s4 = inlined_call_operand.vmem [shape: f32[1,384], index: 4, kind: input, shape index: {}]
  %s5 = inlined_call_operand.vmem [shape: f32[1,384], index: 5, kind: input, shape index: {}]
  %s6 = inlined_call_operand.vmem [shape: f32[128,384], index: 6, kind: input, shape index: {}]
  %s7 = inlined_call_operand.vmem [shape: f32[128,384], index: 7, kind: input, shape index: {}]
  %s8 = inlined_call_operand.vmem [shape: f32[1,384], index: 8, kind: input, shape index: {}]
  %s9 = inlined_call_operand.vmem [shape: f32[1,384], index: 9, kind: input, shape index: {}]
  %s10 = inlined_call_operand.vmem [shape: f32[8,8,128], index: 10, kind: output, shape index: {0}]
  %s11 = inlined_call_operand.vmem [shape: f32[8,8,128], index: 11, kind: output, shape index: {1}]
  %s12 = inlined_call_operand.vmem [shape: f32[8,128], index: 12, kind: output, shape index: {2}]
  %13 = xla_tuple %s10, %s11, %s12
  %s14 = sld [smem:[#allocation0]]
  $region73: #{seq2seq_forward.4} parent=0
    _
  %s16 = ssub.s32 1, %s14
  %s17 = scalar_select 0, %s16, %s14
  // Predicated region
  $region2: #{seq2seq_forward.4} parent=0 // pred_check
    _
  $region3: #{seq2seq_forward.4} parent=0 // pred_check_branch
    %19 = sbr.rel (0) target = $region5
  $region4: #{seq2seq_forward.4} parent=0 // pred_region
    _
  $region5: #{seq2seq_forward.4} parent=0 // pred_fallthru
    _
  // Predicated region
  $region6: #{seq2seq_forward.4} parent=0 // pred_check
    _
  $region7: #{seq2seq_forward.4} parent=0 // pred_check_branch
    %21 = sbr.rel (0) target = $region9
  $region8: #{seq2seq_forward.4} parent=0 // pred_region
    _
  $region9: #{seq2seq_forward.4} parent=0 // pred_fallthru
    _
  // Predicated region
  $region10: #{seq2seq_forward.4} parent=0 // pred_check
    _
  $region11: #{seq2seq_forward.4} parent=0 // pred_check_branch
    %23 = sbr.rel (0) target = $region13
  $region12: #{seq2seq_forward.4} parent=0 // pred_region
    _
  $region13: #{seq2seq_forward.4} parent=0 // pred_fallthru
    _
  // Predicated region
  $region14: #{seq2seq_forward.4} parent=0 // pred_check
    _
  $region15: #{seq2seq_forward.4} parent=0 // pred_check_branch
    %25 = sbr.rel (0) target = $region17
  $region16: #{seq2seq_forward.4} parent=0 // pred_region
    _
  $region17: #{seq2seq_forward.4} parent=0 // pred_fallthru
    _
  // Predicated region
  $region18: #{seq2seq_forward.4} parent=0 // pred_check
    _
  $region19: #{seq2seq_forward.4} parent=0 // pred_check_branch
    %27 = sbr.rel (0) target = $region21
  $region20: #{seq2seq_forward.4} parent=0 // pred_region
    _
  $region21: #{seq2seq_forward.4} parent=0 // pred_fallthru
    _
  // Predicated region
  $region22: #{seq2seq_forward.4} parent=0 // pred_check
    _
  $region23: #{seq2seq_forward.4} parent=0 // pred_check_branch
    %29 = sbr.rel (0) target = $region25
  $region24: #{seq2seq_forward.4} parent=0 // pred_region
    _
  $region25: #{seq2seq_forward.4} parent=0 // pred_fallthru
    _
  // Predicated region
  $region26: #{seq2seq_forward.4} parent=0 // pred_check
    _
  $region27: #{seq2seq_forward.4} parent=0 // pred_check_branch
    %31 = sbr.rel (0) target = $region29
  $region28: #{seq2seq_forward.4} parent=0 // pred_region
    _
  $region29: #{seq2seq_forward.4} parent=0 // pred_fallthru
    _
  // Predicated region
  $region30: #{seq2seq_forward.4} parent=0 // pred_check
    _
  $region31: #{seq2seq_forward.4} parent=0 // pred_check_branch
    %33 = sbr.rel (0) target = $region33
  $region32: #{seq2seq_forward.4} parent=0 // pred_region
    _
  $region33: #{seq2seq_forward.4} parent=0 // pred_fallthru
    _
  // Predicated region
  $region34: #{seq2seq_forward.4} parent=0 // pred_check
    _
  $region35: #{seq2seq_forward.4} parent=0 // pred_check_branch
    %35 = sbr.rel (0) target = $region37
  $region36: #{seq2seq_forward.4} parent=0 // pred_region
    _
  $region37: #{seq2seq_forward.4} parent=0 // pred_fallthru
    _
  // Predicated region
  $region38: #{seq2seq_forward.4} parent=0 // pred_check
    _
  $region39: #{seq2seq_forward.4} parent=0 // pred_check_branch
    %37 = sbr.rel (0) target = $region41
  $region40: #{seq2seq_forward.4} parent=0 // pred_region
    _
  $region41: #{seq2seq_forward.4} parent=0 // pred_fallthru
    _
  %v38 = vld [vmem:[%s0] sm:$0xff]
  %v39 = vld [vmem:[%s0 + $0x8] sm:$0xff]
  %v40 = vld [vmem:[%s0 + $0x10] sm:$0xff]
  %v41 = vld [vmem:[%s0 + $0x18] sm:$0xff]
  %v42 = vld [vmem:[%s0 + $0x20] sm:$0xff]
  %v43 = vld [vmem:[%s0 + $0x28] sm:$0xff]
  %v44 = vld [vmem:[%s0 + $0x30] sm:$0xff]
  %v45 = vld [vmem:[%s0 + $0x38] sm:$0xff]
  %v46 = vld [vmem:[%s2] sm:$0xff]
  %v47 = vld [vmem:[%s2 + $0x8] sm:$0xff]
  %v48 = vld [vmem:[%s2 + $0x10] sm:$0xff]
  %v49 = vld [vmem:[%s2 + $0x18] sm:$0xff]
  %v50 = vld [vmem:[%s2 + $0x20] sm:$0xff]
  %v51 = vld [vmem:[%s2 + $0x28] sm:$0xff]
  %v52 = vld [vmem:[%s2 + $0x30] sm:$0xff]
  %v53 = vld [vmem:[%s2 + $0x38] sm:$0xff]
  %v54 = vld [vmem:[%s2 + $0x40] sm:$0xff]
  %v55 = vld [vmem:[%s2 + $0x48] sm:$0xff]
  %v56 = vld [vmem:[%s2 + $0x50] sm:$0xff]
  %v57 = vld [vmem:[%s2 + $0x58] sm:$0xff]
  %v58 = vld [vmem:[%s2 + $0x60] sm:$0xff]
  %v59 = vld [vmem:[%s2 + $0x68] sm:$0xff]
  %v60 = vld [vmem:[%s2 + $0x70] sm:$0xff]
  %v61 = vld [vmem:[%s2 + $0x78] sm:$0xff]
  %v62 = vld [vmem:[%s2 + $0x80] sm:$0xff]
  %v63 = vld [vmem:[%s2 + $0x88] sm:$0xff]
  %v64 = vld [vmem:[%s2 + $0x90] sm:$0xff]
  %v65 = vld [vmem:[%s2 + $0x98] sm:$0xff]
  %v66 = vld [vmem:[%s2 + $0xa0] sm:$0xff]
  %v67 = vld [vmem:[%s2 + $0xa8] sm:$0xff]
  %v68 = vld [vmem:[%s2 + $0xb0] sm:$0xff]
  %v69 = vld [vmem:[%s2 + $0xb8] sm:$0xff]
  %v70 = vld [vmem:[%s2 + $0xc0] sm:$0xff]
  %v71 = vld [vmem:[%s2 + $0xc8] sm:$0xff]
  %v72 = vld [vmem:[%s2 + $0xd0] sm:$0xff]
  %v73 = vld [vmem:[%s2 + $0xd8] sm:$0xff]
  %v74 = vld [vmem:[%s2 + $0xe0] sm:$0xff]
  %v75 = vld [vmem:[%s2 + $0xe8] sm:$0xff]
  %v76 = vld [vmem:[%s2 + $0xf0] sm:$0xff]
  %v77 = vld [vmem:[%s2 + $0xf8] sm:$0xff]
  %v78 = vld [vmem:[%s2 + $0x100] sm:$0xff]
  %v79 = vld [vmem:[%s2 + $0x108] sm:$0xff]
  %v80 = vld [vmem:[%s2 + $0x110] sm:$0xff]
  %v81 = vld [vmem:[%s2 + $0x118] sm:$0xff]
  %v82 = vld [vmem:[%s2 + $0x120] sm:$0xff]
  %v83 = vld [vmem:[%s2 + $0x128] sm:$0xff]
  %v84 = vld [vmem:[%s2 + $0x130] sm:$0xff]
  %v85 = vld [vmem:[%s2 + $0x138] sm:$0xff]
  %v86 = vld [vmem:[%s2 + $0x140] sm:$0xff]
  %v87 = vld [vmem:[%s2 + $0x148] sm:$0xff]
  %v88 = vld [vmem:[%s2 + $0x150] sm:$0xff]
  %v89 = vld [vmem:[%s2 + $0x158] sm:$0xff]
  %v90 = vld [vmem:[%s2 + $0x160] sm:$0xff]
  %v91 = vld [vmem:[%s2 + $0x168] sm:$0xff]
  %v92 = vld [vmem:[%s2 + $0x170] sm:$0xff]
  %v93 = vld [vmem:[%s2 + $0x178] sm:$0xff]
  %v94 = vld [vmem:[%s4] sm:$0x7]
  %v96 = vlaneseq
  %v97 = vshrl.u32 %v96, 7
  %v98 = vsub.s32 0, %v97
  %v99 = vrot.slane %v94, %v98
  %v100 = vlaneseq
  %v101 = vshrl.u32 %v100, 7
  %v102 = vsub.s32 1, %v101
  %v103 = vrot.slane %v94, %v102
  %v104 = vlaneseq
  %v105 = vshrl.u32 %v104, 7
  %v106 = vsub.s32 2, %v105
  %v107 = vrot.slane %v94, %v106
  %111 = vmatprep.subr.mxu0 %v92
  %112 = vmatpush1.msra.mxu0 %v91
  %113 = vmatprep.subr.mxu0 %v89
  %114 = vmatpush1.msra.mxu0 %v88
  %115 = vmatprep.subr.mxu0 %v86
  %116 = vmatpush1.msra.mxu0 %v85
  %117 = vmatprep.subr.mxu0 %v83
  %118 = vmatpush1.msra.mxu0 %v82
  %119 = vmatprep.subr.mxu0 %v80
  %120 = vmatpush1.msra.mxu0 %v79
  %121 = vmatprep.subr.mxu0 %v77
  %122 = vmatpush1.msra.mxu0 %v76
  %123 = vmatprep.subr.mxu0 %v74
  %124 = vmatpush1.msra.mxu0 %v73
  %125 = vmatprep.subr.mxu0 %v71
  %126 = vmatpush1.msra.mxu0 %v70
  %127 = vmatprep.subr.mxu0 %v68
  %128 = vmatpush1.msra.mxu0 %v67
  %129 = vmatprep.subr.mxu0 %v65
  %130 = vmatpush1.msra.mxu0 %v64
  %131 = vmatprep.subr.mxu0 %v62
  %132 = vmatpush1.msra.mxu0 %v61
  %133 = vmatprep.subr.mxu0 %v59
  %134 = vmatpush1.msra.mxu0 %v58
  %135 = vmatprep.subr.mxu0 %v56
  %136 = vmatpush1.msra.mxu0 %v55
  %137 = vmatprep.subr.mxu0 %v53
  %138 = vmatpush1.msra.mxu0 %v52
  %139 = vmatprep.subr.mxu0 %v50
  %140 = vmatpush1.msra.mxu0 %v49
  %141 = vmatprep.subr.mxu0 %v47
  %142 = vmatpush1.msra.mxu0 %v46
  %143 = vmatprep.subr.mxu0 0.0
  %144 = vmatpush2.msra.mxu0 0.0
  %145 = vmatprep.subr.mxu0 0.0
  %146 = vmatpush2.msra.mxu0 0.0
  %147 = vmatprep.subr.mxu0 0.0
  %148 = vmatpush2.msra.mxu0 0.0
  %149 = vmatprep.subr.mxu0 0.0
  %150 = vmatpush2.msra.mxu0 0.0
  %151 = vmatprep.subr.mxu0 0.0
  %152 = vmatpush2.msra.mxu0 0.0
  %153 = vmatprep.subr.mxu0 0.0
  %154 = vmatpush2.msra.mxu0 0.0
  %155 = vmatprep.subr.mxu0 0.0
  %156 = vmatpush2.msra.mxu0 0.0
  %157 = vmatprep.subr.mxu0 0.0
  %158 = vmatpush2.msra.mxu0 0.0
  %159 = vmatprep.subr.mxu0 0.0
  %160 = vmatpush2.msra.mxu0 0.0
  %161 = vmatprep.subr.mxu0 0.0
  %162 = vmatpush2.msra.mxu0 0.0
  %163 = vmatprep.subr.mxu0 0.0
  %164 = vmatpush2.msra.mxu0 0.0
  %165 = vmatprep.subr.mxu0 0.0
  %166 = vmatpush2.msra.mxu0 0.0
  %167 = vmatprep.subr.mxu0 0.0
  %168 = vmatpush2.msra.mxu0 0.0
  %169 = vmatprep.subr.mxu0 0.0
  %170 = vmatpush2.msra.mxu0 0.0
  %171 = vmatprep.subr.mxu0 0.0
  %172 = vmatpush2.msra.mxu0 0.0
  %173 = vmatprep.subr.mxu0 0.0
  %174 = vmatpush2.msra.mxu0 0.0
  %175 = vmatprep.mubr.f32.mxu0 0.0
  %176 = vmatmul.mubr.f32.gmra.mxu0 %v38
  %v177 = vpop.f32.mrf.mxu0
  %v178 = vadd.f32 %v99, %v177
  %v179 = vpop.f32.mrf.mxu0
  %v180 = vadd.f32 %v103, %v179
  %181 = vmatprep.mubr.f32.mxu0 0.0
  %182 = vmatmul.mubr.f32.gmra.mxu0 %v39
  %v183 = vpop.f32.mrf.mxu0
  %v184 = vadd.f32 %v99, %v183
  %v185 = vpop.f32.mrf.mxu0
  %v186 = vadd.f32 %v103, %v185
  %187 = vmatprep.mubr.f32.mxu0 0.0
  %188 = vmatmul.mubr.f32.gmra.mxu0 %v40
  %v189 = vpop.f32.mrf.mxu0
  %v190 = vadd.f32 %v99, %v189
  %v191 = vpop.f32.mrf.mxu0
  %v192 = vadd.f32 %v103, %v191
  %193 = vmatprep.mubr.f32.mxu0 0.0
  %194 = vmatmul.mubr.f32.gmra.mxu0 %v41
  %v195 = vpop.f32.mrf.mxu0
  %v196 = vadd.f32 %v99, %v195
  %v197 = vpop.f32.mrf.mxu0
  %v198 = vadd.f32 %v103, %v197
  %199 = vmatprep.mubr.f32.mxu0 0.0
  %200 = vmatmul.mubr.f32.gmra.mxu0 %v42
  %v201 = vpop.f32.mrf.mxu0
  %v202 = vadd.f32 %v99, %v201
  %v203 = vpop.f32.mrf.mxu0
  %v204 = vadd.f32 %v103, %v203
  %205 = vmatprep.mubr.f32.mxu0 0.0
  %206 = vmatmul.mubr.f32.gmra.mxu0 %v43
  %v207 = vpop.f32.mrf.mxu0
  %v208 = vadd.f32 %v99, %v207
  %v209 = vpop.f32.mrf.mxu0
  %v210 = vadd.f32 %v103, %v209
  %211 = vmatprep.mubr.f32.mxu0 0.0
  %212 = vmatmul.mubr.f32.gmra.mxu0 %v44
  %v213 = vpop.f32.mrf.mxu0
  %v214 = vadd.f32 %v99, %v213
  %v215 = vpop.f32.mrf.mxu0
  %v216 = vadd.f32 %v103, %v215
  %217 = vmatprep.mubr.f32.mxu0 0.0
  %218 = vmatmul.mubr.f32.gmra.mxu0 %v45
  %v219 = vpop.f32.mrf.mxu0
  %v220 = vadd.f32 %v99, %v219
  %v221 = vpop.f32.mrf.mxu0
  %v222 = vadd.f32 %v103, %v221
  %223 = vdwg.mxu0
  %224 = vmatprep.subr.mxu0 0.0
  %225 = vmatpush1.msra.mxu0 %v93
  %226 = vmatprep.subr.mxu0 0.0
  %227 = vmatpush1.msra.mxu0 %v90
  %228 = vmatprep.subr.mxu0 0.0
  %229 = vmatpush1.msra.mxu0 %v87
  %230 = vmatprep.subr.mxu0 0.0
  %231 = vmatpush1.msra.mxu0 %v84
  %232 = vmatprep.subr.mxu0 0.0
  %233 = vmatpush1.msra.mxu0 %v81
  %234 = vmatprep.subr.mxu0 0.0
  %235 = vmatpush1.msra.mxu0 %v78
  %236 = vmatprep.subr.mxu0 0.0
  %237 = vmatpush1.msra.mxu0 %v75
  %238 = vmatprep.subr.mxu0 0.0
  %239 = vmatpush1.msra.mxu0 %v72
  %240 = vmatprep.subr.mxu0 0.0
  %241 = vmatpush1.msra.mxu0 %v69
  %242 = vmatprep.subr.mxu0 0.0
  %243 = vmatpush1.msra.mxu0 %v66
  %244 = vmatprep.subr.mxu0 0.0
  %245 = vmatpush1.msra.mxu0 %v63
  %246 = vmatprep.subr.mxu0 0.0
  %247 = vmatpush1.msra.mxu0 %v60
  %248 = vmatprep.subr.mxu0 0.0
  %249 = vmatpush1.msra.mxu0 %v57
  %250 = vmatprep.subr.mxu0 0.0
  %251 = vmatpush1.msra.mxu0 %v54
  %252 = vmatprep.subr.mxu0 0.0
  %253 = vmatpush1.msra.mxu0 %v51
  %254 = vmatprep.subr.mxu0 0.0
  %255 = vmatpush1.msra.mxu0 %v48
  %256 = vmatprep.subr.mxu0 0.0
  %257 = vmatpush2.msra.mxu0 0.0
  %258 = vmatprep.subr.mxu0 0.0
  %259 = vmatpush2.msra.mxu0 0.0
  %260 = vmatprep.subr.mxu0 0.0
  %261 = vmatpush2.msra.mxu0 0.0
  %262 = vmatprep.subr.mxu0 0.0
  %263 = vmatpush2.msra.mxu0 0.0
  %264 = vmatprep.subr.mxu0 0.0
  %265 = vmatpush2.msra.mxu0 0.0
  %266 = vmatprep.subr.mxu0 0.0
  %267 = vmatpush2.msra.mxu0 0.0
  %268 = vmatprep.subr.mxu0 0.0
  %269 = vmatpush2.msra.mxu0 0.0
  %270 = vmatprep.subr.mxu0 0.0
  %271 = vmatpush2.msra.mxu0 0.0
  %272 = vmatprep.subr.mxu0 0.0
  %273 = vmatpush2.msra.mxu0 0.0
  %274 = vmatprep.subr.mxu0 0.0
  %275 = vmatpush2.msra.mxu0 0.0
  %276 = vmatprep.subr.mxu0 0.0
  %277 = vmatpush2.msra.mxu0 0.0
  %278 = vmatprep.subr.mxu0 0.0
  %279 = vmatpush2.msra.mxu0 0.0
  %280 = vmatprep.subr.mxu0 0.0
  %281 = vmatpush2.msra.mxu0 0.0
  %282 = vmatprep.subr.mxu0 0.0
  %283 = vmatpush2.msra.mxu0 0.0
  %284 = vmatprep.subr.mxu0 0.0
  %285 = vmatpush2.msra.mxu0 0.0
  %286 = vmatprep.subr.mxu0 0.0
  %287 = vmatpush2.msra.mxu0 0.0
  %288 = vmatprep.mubr.f32.mxu0 0.0
  %289 = vmatmul.mubr.f32.gmra.mxu0 %v38
  %v290 = vpop.f32.mrf.mxu0
  %v291 = vadd.f32 %v107, %v290
  %v292 = vpop.f32.mrf.mxu0
  %293 = vmatprep.mubr.f32.mxu0 0.0
  %294 = vmatmul.mubr.f32.gmra.mxu0 %v39
  %v295 = vpop.f32.mrf.mxu0
  %v296 = vadd.f32 %v107, %v295
  %v297 = vpop.f32.mrf.mxu0
  %298 = vmatprep.mubr.f32.mxu0 0.0
  %299 = vmatmul.mubr.f32.gmra.mxu0 %v40
  %v300 = vpop.f32.mrf.mxu0
  %v301 = vadd.f32 %v107, %v300
  %v302 = vpop.f32.mrf.mxu0
  %303 = vmatprep.mubr.f32.mxu0 0.0
  %304 = vmatmul.mubr.f32.gmra.mxu0 %v41
  %v305 = vpop.f32.mrf.mxu0
  %v306 = vadd.f32 %v107, %v305
  %v307 = vpop.f32.mrf.mxu0
  %308 = vmatprep.mubr.f32.mxu0 0.0
  %309 = vmatmul.mubr.f32.gmra.mxu0 %v42
  %v310 = vpop.f32.mrf.mxu0
  %v311 = vadd.f32 %v107, %v310
  %v312 = vpop.f32.mrf.mxu0
  %313 = vmatprep.mubr.f32.mxu0 0.0
  %314 = vmatmul.mubr.f32.gmra.mxu0 %v43
  %v315 = vpop.f32.mrf.mxu0
  %v316 = vadd.f32 %v107, %v315
  %v317 = vpop.f32.mrf.mxu0
  %318 = vmatprep.mubr.f32.mxu0 0.0
  %319 = vmatmul.mubr.f32.gmra.mxu0 %v44
  %v320 = vpop.f32.mrf.mxu0
  %v321 = vadd.f32 %v107, %v320
  %v322 = vpop.f32.mrf.mxu0
  %323 = vmatprep.mubr.f32.mxu0 0.0
  %324 = vmatmul.mubr.f32.gmra.mxu0 %v45
  %v325 = vpop.f32.mrf.mxu0
  %v326 = vadd.f32 %v107, %v325
  %v327 = vpop.f32.mrf.mxu0
  %328 = vdwg.mxu0
  %329 = vst [vmem:[#allocation2] sm:$0xff] %v178
  %330 = vst [vmem:[#allocation2 + $0x8] sm:$0xff] %v180
  %331 = vst [vmem:[#allocation2 + $0x10] sm:$0xff] %v291
  %332 = vst [vmem:[#allocation2 + $0x18] sm:$0xff] %v184
  %333 = vst [vmem:[#allocation2 + $0x20] sm:$0xff] %v186
  %334 = vst [vmem:[#allocation2 + $0x28] sm:$0xff] %v296
  %335 = vst [vmem:[#allocation2 + $0x30] sm:$0xff] %v190
  %336 = vst [vmem:[#allocation2 + $0x38] sm:$0xff] %v192
  %337 = vst [vmem:[#allocation2 + $0x40] sm:$0xff] %v301
  %338 = vst [vmem:[#allocation2 + $0x48] sm:$0xff] %v196
  %339 = vst [vmem:[#allocation2 + $0x50] sm:$0xff] %v198
  %340 = vst [vmem:[#allocation2 + $0x58] sm:$0xff] %v306
  %341 = vst [vmem:[#allocation2 + $0x60] sm:$0xff] %v202
  %342 = vst [vmem:[#allocation2 + $0x68] sm:$0xff] %v204
  %343 = vst [vmem:[#allocation2 + $0x70] sm:$0xff] %v311
  %344 = vst [vmem:[#allocation2 + $0x78] sm:$0xff] %v208
  %345 = vst [vmem:[#allocation2 + $0x80] sm:$0xff] %v210
  %346 = vst [vmem:[#allocation2 + $0x88] sm:$0xff] %v316
  %347 = vst [vmem:[#allocation2 + $0x90] sm:$0xff] %v214
  %348 = vst [vmem:[#allocation2 + $0x98] sm:$0xff] %v216
  %349 = vst [vmem:[#allocation2 + $0xa0] sm:$0xff] %v321
  %350 = vst [vmem:[#allocation2 + $0xa8] sm:$0xff] %v220
  %351 = vst [vmem:[#allocation2 + $0xb0] sm:$0xff] %v222
  %352 = vst [vmem:[#allocation2 + $0xb8] sm:$0xff] %v326
  %v353 = vld [vmem:[%s6] sm:$0xff]
  %v354 = vld [vmem:[%s6 + $0x8] sm:$0xff]
  %v355 = vld [vmem:[%s6 + $0x10] sm:$0xff]
  %v356 = vld [vmem:[%s6 + $0x18] sm:$0xff]
  %v357 = vld [vmem:[%s6 + $0x20] sm:$0xff]
  %v358 = vld [vmem:[%s6 + $0x28] sm:$0xff]
  %v359 = vld [vmem:[%s6 + $0x30] sm:$0xff]
  %v360 = vld [vmem:[%s6 + $0x38] sm:$0xff]
  %v361 = vld [vmem:[%s6 + $0x40] sm:$0xff]
  %v362 = vld [vmem:[%s6 + $0x48] sm:$0xff]
  %v363 = vld [vmem:[%s6 + $0x50] sm:$0xff]
  %v364 = vld [vmem:[%s6 + $0x58] sm:$0xff]
  %v365 = vld [vmem:[%s6 + $0x60] sm:$0xff]
  %v366 = vld [vmem:[%s6 + $0x68] sm:$0xff]
  %v367 = vld [vmem:[%s6 + $0x70] sm:$0xff]
  %v368 = vld [vmem:[%s6 + $0x78] sm:$0xff]
  %v369 = vld [vmem:[%s6 + $0x80] sm:$0xff]
  %v370 = vld [vmem:[%s6 + $0x88] sm:$0xff]
  %v371 = vld [vmem:[%s6 + $0x90] sm:$0xff]
  %v372 = vld [vmem:[%s6 + $0x98] sm:$0xff]
  %v373 = vld [vmem:[%s6 + $0xa0] sm:$0xff]
  %v374 = vld [vmem:[%s6 + $0xa8] sm:$0xff]
  %v375 = vld [vmem:[%s6 + $0xb0] sm:$0xff]
  %v376 = vld [vmem:[%s6 + $0xb8] sm:$0xff]
  %v377 = vld [vmem:[%s6 + $0xc0] sm:$0xff]
  %v378 = vld [vmem:[%s6 + $0xc8] sm:$0xff]
  %v379 = vld [vmem:[%s6 + $0xd0] sm:$0xff]
  %v380 = vld [vmem:[%s6 + $0xd8] sm:$0xff]
  %v381 = vld [vmem:[%s6 + $0xe0] sm:$0xff]
  %v382 = vld [vmem:[%s6 + $0xe8] sm:$0xff]
  %v383 = vld [vmem:[%s6 + $0xf0] sm:$0xff]
  %v384 = vld [vmem:[%s6 + $0xf8] sm:$0xff]
  %v385 = vld [vmem:[%s6 + $0x100] sm:$0xff]
  %v386 = vld [vmem:[%s6 + $0x108] sm:$0xff]
  %v387 = vld [vmem:[%s6 + $0x110] sm:$0xff]
  %v388 = vld [vmem:[%s6 + $0x118] sm:$0xff]
  %v389 = vld [vmem:[%s6 + $0x120] sm:$0xff]
  %v390 = vld [vmem:[%s6 + $0x128] sm:$0xff]
  %v391 = vld [vmem:[%s6 + $0x130] sm:$0xff]
  %v392 = vld [vmem:[%s6 + $0x138] sm:$0xff]
  %v393 = vld [vmem:[%s6 + $0x140] sm:$0xff]
  %v394 = vld [vmem:[%s6 + $0x148] sm:$0xff]
  %v395 = vld [vmem:[%s6 + $0x150] sm:$0xff]
  %v396 = vld [vmem:[%s6 + $0x158] sm:$0xff]
  %v397 = vld [vmem:[%s6 + $0x160] sm:$0xff]
  %v398 = vld [vmem:[%s6 + $0x168] sm:$0xff]
  %v399 = vld [vmem:[%s6 + $0x170] sm:$0xff]
  %v400 = vld [vmem:[%s6 + $0x178] sm:$0xff]
  %v401 = vld [vmem:[%s8] sm:$0x7]
  %v403 = vlaneseq
  %v404 = vshrl.u32 %v403, 7
  %v405 = vsub.s32 0, %v404
  %v406 = vrot.slane %v401, %v405
  %v407 = vlaneseq
  %v408 = vshrl.u32 %v407, 7
  %v409 = vsub.s32 1, %v408
  %v410 = vrot.slane %v401, %v409
  %v411 = vlaneseq
  %v412 = vshrl.u32 %v411, 7
  %v413 = vsub.s32 2, %v412
  %v414 = vrot.slane %v401, %v413
  %418 = vmatprep.subr.mxu0 %v399
  %419 = vmatpush1.msra.mxu0 %v398
  %420 = vmatprep.subr.mxu0 %v396
  %421 = vmatpush1.msra.mxu0 %v395
  %422 = vmatprep.subr.mxu0 %v393
  %423 = vmatpush1.msra.mxu0 %v392
  %424 = vmatprep.subr.mxu0 %v390
  %425 = vmatpush1.msra.mxu0 %v389
  %426 = vmatprep.subr.mxu0 %v387
  %427 = vmatpush1.msra.mxu0 %v386
  %428 = vmatprep.subr.mxu0 %v384
  %429 = vmatpush1.msra.mxu0 %v383
  %430 = vmatprep.subr.mxu0 %v381
  %431 = vmatpush1.msra.mxu0 %v380
  %432 = vmatprep.subr.mxu0 %v378
  %433 = vmatpush1.msra.mxu0 %v377
  %434 = vmatprep.subr.mxu0 %v375
  %435 = vmatpush1.msra.mxu0 %v374
  %436 = vmatprep.subr.mxu0 %v372
  %437 = vmatpush1.msra.mxu0 %v371
  %438 = vmatprep.subr.mxu0 %v369
  %439 = vmatpush1.msra.mxu0 %v368
  %440 = vmatprep.subr.mxu0 %v366
  %441 = vmatpush1.msra.mxu0 %v365
  %442 = vmatprep.subr.mxu0 %v363
  %443 = vmatpush1.msra.mxu0 %v362
  %444 = vmatprep.subr.mxu0 %v360
  %445 = vmatpush1.msra.mxu0 %v359
  %446 = vmatprep.subr.mxu0 %v357
  %447 = vmatpush1.msra.mxu0 %v356
  %448 = vmatprep.subr.mxu0 %v354
  %449 = vmatpush1.msra.mxu0 %v353
  %450 = vmatprep.subr.mxu0 0.0
  %451 = vmatpush2.msra.mxu0 0.0
  %452 = vmatprep.subr.mxu0 0.0
  %453 = vmatpush2.msra.mxu0 0.0
  %454 = vmatprep.subr.mxu0 0.0
  %455 = vmatpush2.msra.mxu0 0.0
  %456 = vmatprep.subr.mxu0 0.0
  %457 = vmatpush2.msra.mxu0 0.0
  %458 = vmatprep.subr.mxu0 0.0
  %459 = vmatpush2.msra.mxu0 0.0
  %460 = vmatprep.subr.mxu0 0.0
  %461 = vmatpush2.msra.mxu0 0.0
  %462 = vmatprep.subr.mxu0 0.0
  %463 = vmatpush2.msra.mxu0 0.0
  %464 = vmatprep.subr.mxu0 0.0
  %465 = vmatpush2.msra.mxu0 0.0
  %466 = vmatprep.subr.mxu0 0.0
  %467 = vmatpush2.msra.mxu0 0.0
  %468 = vmatprep.subr.mxu0 0.0
  %469 = vmatpush2.msra.mxu0 0.0
  %470 = vmatprep.subr.mxu0 0.0
  %471 = vmatpush2.msra.mxu0 0.0
  %472 = vmatprep.subr.mxu0 0.0
  %473 = vmatpush2.msra.mxu0 0.0
  %474 = vmatprep.subr.mxu0 0.0
  %475 = vmatpush2.msra.mxu0 0.0
  %476 = vmatprep.subr.mxu0 0.0
  %477 = vmatpush2.msra.mxu0 0.0
  %478 = vmatprep.subr.mxu0 0.0
  %479 = vmatpush2.msra.mxu0 0.0
  %480 = vmatprep.subr.mxu0 0.0
  %481 = vmatpush2.msra.mxu0 0.0
  %482 = vmatprep.mubr.f32.mxu0 0.0
  %483 = vmatmul.mubr.f32.gmra.mxu0 %v38
  %v484 = vpop.f32.mrf.mxu0
  %v485 = vadd.f32 %v406, %v484
  %v486 = vpop.f32.mrf.mxu0
  %v487 = vadd.f32 %v410, %v486
  %488 = vmatprep.mubr.f32.mxu0 0.0
  %489 = vmatmul.mubr.f32.gmra.mxu0 %v39
  %v490 = vpop.f32.mrf.mxu0
  %v491 = vadd.f32 %v406, %v490
  %v492 = vpop.f32.mrf.mxu0
  %v493 = vadd.f32 %v410, %v492
  %494 = vmatprep.mubr.f32.mxu0 0.0
  %495 = vmatmul.mubr.f32.gmra.mxu0 %v40
  %v496 = vpop.f32.mrf.mxu0
  %v497 = vadd.f32 %v406, %v496
  %v498 = vpop.f32.mrf.mxu0
  %v499 = vadd.f32 %v410, %v498
  %500 = vmatprep.mubr.f32.mxu0 0.0
  %501 = vmatmul.mubr.f32.gmra.mxu0 %v41
  %v502 = vpop.f32.mrf.mxu0
  %v503 = vadd.f32 %v406, %v502
  %v504 = vpop.f32.mrf.mxu0
  %v505 = vadd.f32 %v410, %v504
  %506 = vmatprep.mubr.f32.mxu0 0.0
  %507 = vmatmul.mubr.f32.gmra.mxu0 %v42
  %v508 = vpop.f32.mrf.mxu0
  %v509 = vadd.f32 %v406, %v508
  %v510 = vpop.f32.mrf.mxu0
  %v511 = vadd.f32 %v410, %v510
  %512 = vmatprep.mubr.f32.mxu0 0.0
  %513 = vmatmul.mubr.f32.gmra.mxu0 %v43
  %v514 = vpop.f32.mrf.mxu0
  %v515 = vadd.f32 %v406, %v514
  %v516 = vpop.f32.mrf.mxu0
  %v517 = vadd.f32 %v410, %v516
  %518 = vmatprep.mubr.f32.mxu0 0.0
  %519 = vmatmul.mubr.f32.gmra.mxu0 %v44
  %v520 = vpop.f32.mrf.mxu0
  %v521 = vadd.f32 %v406, %v520
  %v522 = vpop.f32.mrf.mxu0
  %v523 = vadd.f32 %v410, %v522
  %524 = vmatprep.mubr.f32.mxu0 0.0
  %525 = vmatmul.mubr.f32.gmra.mxu0 %v45
  %v526 = vpop.f32.mrf.mxu0
  %v527 = vadd.f32 %v406, %v526
  %v528 = vpop.f32.mrf.mxu0
  %v529 = vadd.f32 %v410, %v528
  %530 = vdwg.mxu0
  %531 = vmatprep.subr.mxu0 0.0
  %532 = vmatpush1.msra.mxu0 %v400
  %533 = vmatprep.subr.mxu0 0.0
  %534 = vmatpush1.msra.mxu0 %v397
  %535 = vmatprep.subr.mxu0 0.0
  %536 = vmatpush1.msra.mxu0 %v394
  %537 = vmatprep.subr.mxu0 0.0
  %538 = vmatpush1.msra.mxu0 %v391
  %539 = vmatprep.subr.mxu0 0.0
  %540 = vmatpush1.msra.mxu0 %v388
  %541 = vmatprep.subr.mxu0 0.0
  %542 = vmatpush1.msra.mxu0 %v385
  %543 = vmatprep.subr.mxu0 0.0
  %544 = vmatpush1.msra.mxu0 %v382
  %545 = vmatprep.subr.mxu0 0.0
  %546 = vmatpush1.msra.mxu0 %v379
  %547 = vmatprep.subr.mxu0 0.0
  %548 = vmatpush1.msra.mxu0 %v376
  %549 = vmatprep.subr.mxu0 0.0
  %550 = vmatpush1.msra.mxu0 %v373
  %551 = vmatprep.subr.mxu0 0.0
  %552 = vmatpush1.msra.mxu0 %v370
  %553 = vmatprep.subr.mxu0 0.0
  %554 = vmatpush1.msra.mxu0 %v367
  %555 = vmatprep.subr.mxu0 0.0
  %556 = vmatpush1.msra.mxu0 %v364
  %557 = vmatprep.subr.mxu0 0.0
  %558 = vmatpush1.msra.mxu0 %v361
  %559 = vmatprep.subr.mxu0 0.0
  %560 = vmatpush1.msra.mxu0 %v358
  %561 = vmatprep.subr.mxu0 0.0
  %562 = vmatpush1.msra.mxu0 %v355
  %563 = vmatprep.subr.mxu0 0.0
  %564 = vmatpush2.msra.mxu0 0.0
  %565 = vmatprep.subr.mxu0 0.0
  %566 = vmatpush2.msra.mxu0 0.0
  %567 = vmatprep.subr.mxu0 0.0
  %568 = vmatpush2.msra.mxu0 0.0
  %569 = vmatprep.subr.mxu0 0.0
  %570 = vmatpush2.msra.mxu0 0.0
  %571 = vmatprep.subr.mxu0 0.0
  %572 = vmatpush2.msra.mxu0 0.0
  %573 = vmatprep.subr.mxu0 0.0
  %574 = vmatpush2.msra.mxu0 0.0
  %575 = vmatprep.subr.mxu0 0.0
  %576 = vmatpush2.msra.mxu0 0.0
  %577 = vmatprep.subr.mxu0 0.0
  %578 = vmatpush2.msra.mxu0 0.0
  %579 = vmatprep.subr.mxu0 0.0
  %580 = vmatpush2.msra.mxu0 0.0
  %581 = vmatprep.subr.mxu0 0.0
  %582 = vmatpush2.msra.mxu0 0.0
  %583 = vmatprep.subr.mxu0 0.0
  %584 = vmatpush2.msra.mxu0 0.0
  %585 = vmatprep.subr.mxu0 0.0
  %586 = vmatpush2.msra.mxu0 0.0
  %587 = vmatprep.subr.mxu0 0.0
  %588 = vmatpush2.msra.mxu0 0.0
  %589 = vmatprep.subr.mxu0 0.0
  %590 = vmatpush2.msra.mxu0 0.0
  %591 = vmatprep.subr.mxu0 0.0
  %592 = vmatpush2.msra.mxu0 0.0
  %593 = vmatprep.subr.mxu0 0.0
  %594 = vmatpush2.msra.mxu0 0.0
  %595 = vmatprep.mubr.f32.mxu0 0.0
  %596 = vmatmul.mubr.f32.gmra.mxu0 %v38
  %v597 = vpop.f32.mrf.mxu0
  %v598 = vadd.f32 %v414, %v597
  %v599 = vpop.f32.mrf.mxu0
  %600 = vmatprep.mubr.f32.mxu0 0.0
  %601 = vmatmul.mubr.f32.gmra.mxu0 %v39
  %v602 = vpop.f32.mrf.mxu0
  %v603 = vadd.f32 %v414, %v602
  %v604 = vpop.f32.mrf.mxu0
  %605 = vmatprep.mubr.f32.mxu0 0.0
  %606 = vmatmul.mubr.f32.gmra.mxu0 %v40
  %v607 = vpop.f32.mrf.mxu0
  %v608 = vadd.f32 %v414, %v607
  %v609 = vpop.f32.mrf.mxu0
  %610 = vmatprep.mubr.f32.mxu0 0.0
  %611 = vmatmul.mubr.f32.gmra.mxu0 %v41
  %v612 = vpop.f32.mrf.mxu0
  %v613 = vadd.f32 %v414, %v612
  %v614 = vpop.f32.mrf.mxu0
  %615 = vmatprep.mubr.f32.mxu0 0.0
  %616 = vmatmul.mubr.f32.gmra.mxu0 %v42
  %v617 = vpop.f32.mrf.mxu0
  %v618 = vadd.f32 %v414, %v617
  %v619 = vpop.f32.mrf.mxu0
  %620 = vmatprep.mubr.f32.mxu0 0.0
  %621 = vmatmul.mubr.f32.gmra.mxu0 %v43
  %v622 = vpop.f32.mrf.mxu0
  %v623 = vadd.f32 %v414, %v622
  %v624 = vpop.f32.mrf.mxu0
  %625 = vmatprep.mubr.f32.mxu0 0.0
  %626 = vmatmul.mubr.f32.gmra.mxu0 %v44
  %v627 = vpop.f32.mrf.mxu0
  %v628 = vadd.f32 %v414, %v627
  %v629 = vpop.f32.mrf.mxu0
  %630 = vmatprep.mubr.f32.mxu0 0.0
  %631 = vmatmul.mubr.f32.gmra.mxu0 %v45
  %v632 = vpop.f32.mrf.mxu0
  %v633 = vadd.f32 %v414, %v632
  %v634 = vpop.f32.mrf.mxu0
  %635 = vdwg.mxu0
  %636 = vst [vmem:[#allocation3] sm:$0xff] %v485
  %637 = vst [vmem:[#allocation3 + $0x8] sm:$0xff] %v487
  %638 = vst [vmem:[#allocation3 + $0x10] sm:$0xff] %v598
  %639 = vst [vmem:[#allocation3 + $0x18] sm:$0xff] %v491
  %640 = vst [vmem:[#allocation3 + $0x20] sm:$0xff] %v493
  %641 = vst [vmem:[#allocation3 + $0x28] sm:$0xff] %v603
  %642 = vst [vmem:[#allocation3 + $0x30] sm:$0xff] %v497
  %643 = vst [vmem:[#allocation3 + $0x38] sm:$0xff] %v499
  %644 = vst [vmem:[#allocation3 + $0x40] sm:$0xff] %v608
  %645 = vst [vmem:[#allocation3 + $0x48] sm:$0xff] %v503
  %646 = vst [vmem:[#allocation3 + $0x50] sm:$0xff] %v505
  %647 = vst [vmem:[#allocation3 + $0x58] sm:$0xff] %v613
  %648 = vst [vmem:[#allocation3 + $0x60] sm:$0xff] %v509
  %649 = vst [vmem:[#allocation3 + $0x68] sm:$0xff] %v511
  %650 = vst [vmem:[#allocation3 + $0x70] sm:$0xff] %v618
  %651 = vst [vmem:[#allocation3 + $0x78] sm:$0xff] %v515
  %652 = vst [vmem:[#allocation3 + $0x80] sm:$0xff] %v517
  %653 = vst [vmem:[#allocation3 + $0x88] sm:$0xff] %v623
  %654 = vst [vmem:[#allocation3 + $0x90] sm:$0xff] %v521
  %655 = vst [vmem:[#allocation3 + $0x98] sm:$0xff] %v523
  %656 = vst [vmem:[#allocation3 + $0xa0] sm:$0xff] %v628
  %657 = vst [vmem:[#allocation3 + $0xa8] sm:$0xff] %v527
  %658 = vst [vmem:[#allocation3 + $0xb0] sm:$0xff] %v529
  %659 = vst [vmem:[#allocation3 + $0xb8] sm:$0xff] %v633
  loop: start=0, step=1, limit=8
  $region42: #{seq2seq_forward.4} parent=0 // loop_pre_header
    _
  $region43: #{seq2seq_forward.4} parent=0 // loop_header
    %s661 = sphi 0, %s665
    %p662 = scmp.ge.s32.totalorder %s661, 8
    %v666 = vphi 0.0, %v1167
    %v667 = vphi 0.0, %v1168
  $region44: #{seq2seq_forward.4} parent=0 // loop_header_branch
    %664 = sbr.rel (%p662) target = $region48
  $region45: #{seq2seq_forward.4} parent=0 // loop_body
    %s668 = ssub.s32 7, %s661
    %s669 = smul.u32 %s661, 8
    %s670 = scalar_lea.vmem %s1, %s669
    %v671 = vld [vmem:[%s670] sm:$0xff]
    %s672 = smul.u32 %s668, 8
    %s673 = scalar_lea.vmem %s1, %s672
    %v674 = vld [vmem:[%s673] sm:$0xff]
    %v675 = vld [vmem:[%s3] sm:$0xff]
    %v676 = vld [vmem:[%s3 + $0x8] sm:$0xff]
    %v677 = vld [vmem:[%s3 + $0x10] sm:$0xff]
    %v678 = vld [vmem:[%s3 + $0x18] sm:$0xff]
    %v679 = vld [vmem:[%s3 + $0x20] sm:$0xff]
    %v680 = vld [vmem:[%s3 + $0x28] sm:$0xff]
    %v681 = vld [vmem:[%s3 + $0x30] sm:$0xff]
    %v682 = vld [vmem:[%s3 + $0x38] sm:$0xff]
    %v683 = vld [vmem:[%s3 + $0x40] sm:$0xff]
    %v684 = vld [vmem:[%s3 + $0x48] sm:$0xff]
    %v685 = vld [vmem:[%s3 + $0x50] sm:$0xff]
    %v686 = vld [vmem:[%s3 + $0x58] sm:$0xff]
    %v687 = vld [vmem:[%s3 + $0x60] sm:$0xff]
    %v688 = vld [vmem:[%s3 + $0x68] sm:$0xff]
    %v689 = vld [vmem:[%s3 + $0x70] sm:$0xff]
    %v690 = vld [vmem:[%s3 + $0x78] sm:$0xff]
    %v691 = vld [vmem:[%s3 + $0x80] sm:$0xff]
    %v692 = vld [vmem:[%s3 + $0x88] sm:$0xff]
    %v693 = vld [vmem:[%s3 + $0x90] sm:$0xff]
    %v694 = vld [vmem:[%s3 + $0x98] sm:$0xff]
    %v695 = vld [vmem:[%s3 + $0xa0] sm:$0xff]
    %v696 = vld [vmem:[%s3 + $0xa8] sm:$0xff]
    %v697 = vld [vmem:[%s3 + $0xb0] sm:$0xff]
    %v698 = vld [vmem:[%s3 + $0xb8] sm:$0xff]
    %v699 = vld [vmem:[%s3 + $0xc0] sm:$0xff]
    %v700 = vld [vmem:[%s3 + $0xc8] sm:$0xff]
    %v701 = vld [vmem:[%s3 + $0xd0] sm:$0xff]
    %v702 = vld [vmem:[%s3 + $0xd8] sm:$0xff]
    %v703 = vld [vmem:[%s3 + $0xe0] sm:$0xff]
    %v704 = vld [vmem:[%s3 + $0xe8] sm:$0xff]
    %v705 = vld [vmem:[%s3 + $0xf0] sm:$0xff]
    %v706 = vld [vmem:[%s3 + $0xf8] sm:$0xff]
    %v707 = vld [vmem:[%s3 + $0x100] sm:$0xff]
    %v708 = vld [vmem:[%s3 + $0x108] sm:$0xff]
    %v709 = vld [vmem:[%s3 + $0x110] sm:$0xff]
    %v710 = vld [vmem:[%s3 + $0x118] sm:$0xff]
    %v711 = vld [vmem:[%s3 + $0x120] sm:$0xff]
    %v712 = vld [vmem:[%s3 + $0x128] sm:$0xff]
    %v713 = vld [vmem:[%s3 + $0x130] sm:$0xff]
    %v714 = vld [vmem:[%s3 + $0x138] sm:$0xff]
    %v715 = vld [vmem:[%s3 + $0x140] sm:$0xff]
    %v716 = vld [vmem:[%s3 + $0x148] sm:$0xff]
    %v717 = vld [vmem:[%s3 + $0x150] sm:$0xff]
    %v718 = vld [vmem:[%s3 + $0x158] sm:$0xff]
    %v719 = vld [vmem:[%s3 + $0x160] sm:$0xff]
    %v720 = vld [vmem:[%s3 + $0x168] sm:$0xff]
    %v721 = vld [vmem:[%s3 + $0x170] sm:$0xff]
    %v722 = vld [vmem:[%s3 + $0x178] sm:$0xff]
    %v723 = vld [vmem:[%s5] sm:$0x7]
    %v725 = vlaneseq
    %v726 = vshrl.u32 %v725, 7
    %v727 = vsub.s32 0, %v726
    %v728 = vrot.slane %v723, %v727
    %v729 = vlaneseq
    %v730 = vshrl.u32 %v729, 7
    %v731 = vsub.s32 1, %v730
    %v732 = vrot.slane %v723, %v731
    %v733 = vlaneseq
    %v734 = vshrl.u32 %v733, 7
    %v735 = vsub.s32 2, %v734
    %v736 = vrot.slane %v723, %v735
    %740 = vmatprep.subr.mxu0 %v721
    %741 = vmatpush1.msra.mxu0 %v720
    %742 = vmatprep.subr.mxu0 %v718
    %743 = vmatpush1.msra.mxu0 %v717
    %744 = vmatprep.subr.mxu0 %v715
    %745 = vmatpush1.msra.mxu0 %v714
    %746 = vmatprep.subr.mxu0 %v712
    %747 = vmatpush1.msra.mxu0 %v711
    %748 = vmatprep.subr.mxu0 %v709
    %749 = vmatpush1.msra.mxu0 %v708
    %750 = vmatprep.subr.mxu0 %v706
    %751 = vmatpush1.msra.mxu0 %v705
    %752 = vmatprep.subr.mxu0 %v703
    %753 = vmatpush1.msra.mxu0 %v702
    %754 = vmatprep.subr.mxu0 %v700
    %755 = vmatpush1.msra.mxu0 %v699
    %756 = vmatprep.subr.mxu0 %v697
    %757 = vmatpush1.msra.mxu0 %v696
    %758 = vmatprep.subr.mxu0 %v694
    %759 = vmatpush1.msra.mxu0 %v693
    %760 = vmatprep.subr.mxu0 %v691
    %761 = vmatpush1.msra.mxu0 %v690
    %762 = vmatprep.subr.mxu0 %v688
    %763 = vmatpush1.msra.mxu0 %v687
    %764 = vmatprep.subr.mxu0 %v685
    %765 = vmatpush1.msra.mxu0 %v684
    %766 = vmatprep.subr.mxu0 %v682
    %767 = vmatpush1.msra.mxu0 %v681
    %768 = vmatprep.subr.mxu0 %v679
    %769 = vmatpush1.msra.mxu0 %v678
    %770 = vmatprep.subr.mxu0 %v676
    %771 = vmatpush1.msra.mxu0 %v675
    %772 = vmatprep.subr.mxu0 0.0
    %773 = vmatpush2.msra.mxu0 0.0
    %774 = vmatprep.subr.mxu0 0.0
    %775 = vmatpush2.msra.mxu0 0.0
    %776 = vmatprep.subr.mxu0 0.0
    %777 = vmatpush2.msra.mxu0 0.0
    %778 = vmatprep.subr.mxu0 0.0
    %779 = vmatpush2.msra.mxu0 0.0
    %780 = vmatprep.subr.mxu0 0.0
    %781 = vmatpush2.msra.mxu0 0.0
    %782 = vmatprep.subr.mxu0 0.0
    %783 = vmatpush2.msra.mxu0 0.0
    %784 = vmatprep.subr.mxu0 0.0
    %785 = vmatpush2.msra.mxu0 0.0
    %786 = vmatprep.subr.mxu0 0.0
    %787 = vmatpush2.msra.mxu0 0.0
    %788 = vmatprep.subr.mxu0 0.0
    %789 = vmatpush2.msra.mxu0 0.0
    %790 = vmatprep.subr.mxu0 0.0
    %791 = vmatpush2.msra.mxu0 0.0
    %792 = vmatprep.subr.mxu0 0.0
    %793 = vmatpush2.msra.mxu0 0.0
    %794 = vmatprep.subr.mxu0 0.0
    %795 = vmatpush2.msra.mxu0 0.0
    %796 = vmatprep.subr.mxu0 0.0
    %797 = vmatpush2.msra.mxu0 0.0
    %798 = vmatprep.subr.mxu0 0.0
    %799 = vmatpush2.msra.mxu0 0.0
    %800 = vmatprep.subr.mxu0 0.0
    %801 = vmatpush2.msra.mxu0 0.0
    %802 = vmatprep.subr.mxu0 0.0
    %803 = vmatpush2.msra.mxu0 0.0
    %804 = vmatprep.mubr.f32.mxu0 0.0
    %805 = vmatmul.mubr.f32.gmra.mxu0 %v666
    %v806 = vpop.f32.mrf.mxu0
    %v807 = vadd.f32 %v728, %v806
    %v808 = vpop.f32.mrf.mxu0
    %v809 = vadd.f32 %v732, %v808
    %810 = vdwg.mxu0
    %811 = vmatprep.subr.mxu0 0.0
    %812 = vmatpush1.msra.mxu0 %v722
    %813 = vmatprep.subr.mxu0 0.0
    %814 = vmatpush1.msra.mxu0 %v719
    %815 = vmatprep.subr.mxu0 0.0
    %816 = vmatpush1.msra.mxu0 %v716
    %817 = vmatprep.subr.mxu0 0.0
    %818 = vmatpush1.msra.mxu0 %v713
    %819 = vmatprep.subr.mxu0 0.0
    %820 = vmatpush1.msra.mxu0 %v710
    %821 = vmatprep.subr.mxu0 0.0
    %822 = vmatpush1.msra.mxu0 %v707
    %823 = vmatprep.subr.mxu0 0.0
    %824 = vmatpush1.msra.mxu0 %v704
    %825 = vmatprep.subr.mxu0 0.0
    %826 = vmatpush1.msra.mxu0 %v701
    %827 = vmatprep.subr.mxu0 0.0
    %828 = vmatpush1.msra.mxu0 %v698
    %829 = vmatprep.subr.mxu0 0.0
    %830 = vmatpush1.msra.mxu0 %v695
    %831 = vmatprep.subr.mxu0 0.0
    %832 = vmatpush1.msra.mxu0 %v692
    %833 = vmatprep.subr.mxu0 0.0
    %834 = vmatpush1.msra.mxu0 %v689
    %835 = vmatprep.subr.mxu0 0.0
    %836 = vmatpush1.msra.mxu0 %v686
    %837 = vmatprep.subr.mxu0 0.0
    %838 = vmatpush1.msra.mxu0 %v683
    %839 = vmatprep.subr.mxu0 0.0
    %840 = vmatpush1.msra.mxu0 %v680
    %841 = vmatprep.subr.mxu0 0.0
    %842 = vmatpush1.msra.mxu0 %v677
    %843 = vmatprep.subr.mxu0 0.0
    %844 = vmatpush2.msra.mxu0 0.0
    %845 = vmatprep.subr.mxu0 0.0
    %846 = vmatpush2.msra.mxu0 0.0
    %847 = vmatprep.subr.mxu0 0.0
    %848 = vmatpush2.msra.mxu0 0.0
    %849 = vmatprep.subr.mxu0 0.0
    %850 = vmatpush2.msra.mxu0 0.0
    %851 = vmatprep.subr.mxu0 0.0
    %852 = vmatpush2.msra.mxu0 0.0
    %853 = vmatprep.subr.mxu0 0.0
    %854 = vmatpush2.msra.mxu0 0.0
    %855 = vmatprep.subr.mxu0 0.0
    %856 = vmatpush2.msra.mxu0 0.0
    %857 = vmatprep.subr.mxu0 0.0
    %858 = vmatpush2.msra.mxu0 0.0
    %859 = vmatprep.subr.mxu0 0.0
    %860 = vmatpush2.msra.mxu0 0.0
    %861 = vmatprep.subr.mxu0 0.0
    %862 = vmatpush2.msra.mxu0 0.0
    %863 = vmatprep.subr.mxu0 0.0
    %864 = vmatpush2.msra.mxu0 0.0
    %865 = vmatprep.subr.mxu0 0.0
    %866 = vmatpush2.msra.mxu0 0.0
    %867 = vmatprep.subr.mxu0 0.0
    %868 = vmatpush2.msra.mxu0 0.0
    %869 = vmatprep.subr.mxu0 0.0
    %870 = vmatpush2.msra.mxu0 0.0
    %871 = vmatprep.subr.mxu0 0.0
    %872 = vmatpush2.msra.mxu0 0.0
    %873 = vmatprep.subr.mxu0 0.0
    %874 = vmatpush2.msra.mxu0 0.0
    %875 = vmatprep.mubr.f32.mxu0 0.0
    %876 = vmatmul.mubr.f32.gmra.mxu0 %v666
    %v877 = vpop.f32.mrf.mxu0
    %v878 = vadd.f32 %v736, %v877
    %v879 = vpop.f32.mrf.mxu0
    %880 = vdwg.mxu0
    %v881 = vld [vmem:[%s7] sm:$0xff]
    %v882 = vld [vmem:[%s7 + $0x8] sm:$0xff]
    %v883 = vld [vmem:[%s7 + $0x10] sm:$0xff]
    %v884 = vld [vmem:[%s7 + $0x18] sm:$0xff]
    %v885 = vld [vmem:[%s7 + $0x20] sm:$0xff]
    %v886 = vld [vmem:[%s7 + $0x28] sm:$0xff]
    %v887 = vld [vmem:[%s7 + $0x30] sm:$0xff]
    %v888 = vld [vmem:[%s7 + $0x38] sm:$0xff]
    %v889 = vld [vmem:[%s7 + $0x40] sm:$0xff]
    %v890 = vld [vmem:[%s7 + $0x48] sm:$0xff]
    %v891 = vld [vmem:[%s7 + $0x50] sm:$0xff]
    %v892 = vld [vmem:[%s7 + $0x58] sm:$0xff]
    %v893 = vld [vmem:[%s7 + $0x60] sm:$0xff]
    %v894 = vld [vmem:[%s7 + $0x68] sm:$0xff]
    %v895 = vld [vmem:[%s7 + $0x70] sm:$0xff]
    %v896 = vld [vmem:[%s7 + $0x78] sm:$0xff]
    %v897 = vld [vmem:[%s7 + $0x80] sm:$0xff]
    %v898 = vld [vmem:[%s7 + $0x88] sm:$0xff]
    %v899 = vld [vmem:[%s7 + $0x90] sm:$0xff]
    %v900 = vld [vmem:[%s7 + $0x98] sm:$0xff]
    %v901 = vld [vmem:[%s7 + $0xa0] sm:$0xff]
    %v902 = vld [vmem:[%s7 + $0xa8] sm:$0xff]
    %v903 = vld [vmem:[%s7 + $0xb0] sm:$0xff]
    %v904 = vld [vmem:[%s7 + $0xb8] sm:$0xff]
    %v905 = vld [vmem:[%s7 + $0xc0] sm:$0xff]
    %v906 = vld [vmem:[%s7 + $0xc8] sm:$0xff]
    %v907 = vld [vmem:[%s7 + $0xd0] sm:$0xff]
    %v908 = vld [vmem:[%s7 + $0xd8] sm:$0xff]
    %v909 = vld [vmem:[%s7 + $0xe0] sm:$0xff]
    %v910 = vld [vmem:[%s7 + $0xe8] sm:$0xff]
    %v911 = vld [vmem:[%s7 + $0xf0] sm:$0xff]
    %v912 = vld [vmem:[%s7 + $0xf8] sm:$0xff]
    %v913 = vld [vmem:[%s7 + $0x100] sm:$0xff]
    %v914 = vld [vmem:[%s7 + $0x108] sm:$0xff]
    %v915 = vld [vmem:[%s7 + $0x110] sm:$0xff]
    %v916 = vld [vmem:[%s7 + $0x118] sm:$0xff]
    %v917 = vld [vmem:[%s7 + $0x120] sm:$0xff]
    %v918 = vld [vmem:[%s7 + $0x128] sm:$0xff]
    %v919 = vld [vmem:[%s7 + $0x130] sm:$0xff]
    %v920 = vld [vmem:[%s7 + $0x138] sm:$0xff]
    %v921 = vld [vmem:[%s7 + $0x140] sm:$0xff]
    %v922 = vld [vmem:[%s7 + $0x148] sm:$0xff]
    %v923 = vld [vmem:[%s7 + $0x150] sm:$0xff]
    %v924 = vld [vmem:[%s7 + $0x158] sm:$0xff]
    %v925 = vld [vmem:[%s7 + $0x160] sm:$0xff]
    %v926 = vld [vmem:[%s7 + $0x168] sm:$0xff]
    %v927 = vld [vmem:[%s7 + $0x170] sm:$0xff]
    %v928 = vld [vmem:[%s7 + $0x178] sm:$0xff]
    %v929 = vld [vmem:[%s9] sm:$0x7]
    %v931 = vlaneseq
    %v932 = vshrl.u32 %v931, 7
    %v933 = vsub.s32 0, %v932
    %v934 = vrot.slane %v929, %v933
    %v935 = vlaneseq
    %v936 = vshrl.u32 %v935, 7
    %v937 = vsub.s32 1, %v936
    %v938 = vrot.slane %v929, %v937
    %v939 = vlaneseq
    %v940 = vshrl.u32 %v939, 7
    %v941 = vsub.s32 2, %v940
    %v942 = vrot.slane %v929, %v941
    %946 = vmatprep.subr.mxu0 %v927
    %947 = vmatpush1.msra.mxu0 %v926
    %948 = vmatprep.subr.mxu0 %v924
    %949 = vmatpush1.msra.mxu0 %v923
    %950 = vmatprep.subr.mxu0 %v921
    %951 = vmatpush1.msra.mxu0 %v920
    %952 = vmatprep.subr.mxu0 %v918
    %953 = vmatpush1.msra.mxu0 %v917
    %954 = vmatprep.subr.mxu0 %v915
    %955 = vmatpush1.msra.mxu0 %v914
    %956 = vmatprep.subr.mxu0 %v912
    %957 = vmatpush1.msra.mxu0 %v911
    %958 = vmatprep.subr.mxu0 %v909
    %959 = vmatpush1.msra.mxu0 %v908
    %960 = vmatprep.subr.mxu0 %v906
    %961 = vmatpush1.msra.mxu0 %v905
    %962 = vmatprep.subr.mxu0 %v903
    %963 = vmatpush1.msra.mxu0 %v902
    %964 = vmatprep.subr.mxu0 %v900
    %965 = vmatpush1.msra.mxu0 %v899
    %966 = vmatprep.subr.mxu0 %v897
    %967 = vmatpush1.msra.mxu0 %v896
    %968 = vmatprep.subr.mxu0 %v894
    %969 = vmatpush1.msra.mxu0 %v893
    %970 = vmatprep.subr.mxu0 %v891
    %971 = vmatpush1.msra.mxu0 %v890
    %972 = vmatprep.subr.mxu0 %v888
    %973 = vmatpush1.msra.mxu0 %v887
    %974 = vmatprep.subr.mxu0 %v885
    %975 = vmatpush1.msra.mxu0 %v884
    %976 = vmatprep.subr.mxu0 %v882
    %977 = vmatpush1.msra.mxu0 %v881
    %978 = vmatprep.subr.mxu0 0.0
    %979 = vmatpush2.msra.mxu0 0.0
    %980 = vmatprep.subr.mxu0 0.0
    %981 = vmatpush2.msra.mxu0 0.0
    %982 = vmatprep.subr.mxu0 0.0
    %983 = vmatpush2.msra.mxu0 0.0
    %984 = vmatprep.subr.mxu0 0.0
    %985 = vmatpush2.msra.mxu0 0.0
    %986 = vmatprep.subr.mxu0 0.0
    %987 = vmatpush2.msra.mxu0 0.0
    %988 = vmatprep.subr.mxu0 0.0
    %989 = vmatpush2.msra.mxu0 0.0
    %990 = vmatprep.subr.mxu0 0.0
    %991 = vmatpush2.msra.mxu0 0.0
    %992 = vmatprep.subr.mxu0 0.0
    %993 = vmatpush2.msra.mxu0 0.0
    %994 = vmatprep.subr.mxu0 0.0
    %995 = vmatpush2.msra.mxu0 0.0
    %996 = vmatprep.subr.mxu0 0.0
    %997 = vmatpush2.msra.mxu0 0.0
    %998 = vmatprep.subr.mxu0 0.0
    %999 = vmatpush2.msra.mxu0 0.0
    %1000 = vmatprep.subr.mxu0 0.0
    %1001 = vmatpush2.msra.mxu0 0.0
    %1002 = vmatprep.subr.mxu0 0.0
    %1003 = vmatpush2.msra.mxu0 0.0
    %1004 = vmatprep.subr.mxu0 0.0
    %1005 = vmatpush2.msra.mxu0 0.0
    %1006 = vmatprep.subr.mxu0 0.0
    %1007 = vmatpush2.msra.mxu0 0.0
    %1008 = vmatprep.subr.mxu0 0.0
    %1009 = vmatpush2.msra.mxu0 0.0
    %1010 = vmatprep.mubr.f32.mxu0 0.0
    %1011 = vmatmul.mubr.f32.gmra.mxu0 %v667
    %v1012 = vpop.f32.mrf.mxu0
    %v1013 = vadd.f32 %v934, %v1012
    %v1014 = vpop.f32.mrf.mxu0
    %v1015 = vadd.f32 %v938, %v1014
    %1016 = vdwg.mxu0
    %1017 = vmatprep.subr.mxu0 0.0
    %1018 = vmatpush1.msra.mxu0 %v928
    %1019 = vmatprep.subr.mxu0 0.0
    %1020 = vmatpush1.msra.mxu0 %v925
    %1021 = vmatprep.subr.mxu0 0.0
    %1022 = vmatpush1.msra.mxu0 %v922
    %1023 = vmatprep.subr.mxu0 0.0
    %1024 = vmatpush1.msra.mxu0 %v919
    %1025 = vmatprep.subr.mxu0 0.0
    %1026 = vmatpush1.msra.mxu0 %v916
    %1027 = vmatprep.subr.mxu0 0.0
    %1028 = vmatpush1.msra.mxu0 %v913
    %1029 = vmatprep.subr.mxu0 0.0
    %1030 = vmatpush1.msra.mxu0 %v910
    %1031 = vmatprep.subr.mxu0 0.0
    %1032 = vmatpush1.msra.mxu0 %v907
    %1033 = vmatprep.subr.mxu0 0.0
    %1034 = vmatpush1.msra.mxu0 %v904
    %1035 = vmatprep.subr.mxu0 0.0
    %1036 = vmatpush1.msra.mxu0 %v901
    %1037 = vmatprep.subr.mxu0 0.0
    %1038 = vmatpush1.msra.mxu0 %v898
    %1039 = vmatprep.subr.mxu0 0.0
    %1040 = vmatpush1.msra.mxu0 %v895
    %1041 = vmatprep.subr.mxu0 0.0
    %1042 = vmatpush1.msra.mxu0 %v892
    %1043 = vmatprep.subr.mxu0 0.0
    %1044 = vmatpush1.msra.mxu0 %v889
    %1045 = vmatprep.subr.mxu0 0.0
    %1046 = vmatpush1.msra.mxu0 %v886
    %1047 = vmatprep.subr.mxu0 0.0
    %1048 = vmatpush1.msra.mxu0 %v883
    %1049 = vmatprep.subr.mxu0 0.0
    %1050 = vmatpush2.msra.mxu0 0.0
    %1051 = vmatprep.subr.mxu0 0.0
    %1052 = vmatpush2.msra.mxu0 0.0
    %1053 = vmatprep.subr.mxu0 0.0
    %1054 = vmatpush2.msra.mxu0 0.0
    %1055 = vmatprep.subr.mxu0 0.0
    %1056 = vmatpush2.msra.mxu0 0.0
    %1057 = vmatprep.subr.mxu0 0.0
    %1058 = vmatpush2.msra.mxu0 0.0
    %1059 = vmatprep.subr.mxu0 0.0
    %1060 = vmatpush2.msra.mxu0 0.0
    %1061 = vmatprep.subr.mxu0 0.0
    %1062 = vmatpush2.msra.mxu0 0.0
    %1063 = vmatprep.subr.mxu0 0.0
    %1064 = vmatpush2.msra.mxu0 0.0
    %1065 = vmatprep.subr.mxu0 0.0
    %1066 = vmatpush2.msra.mxu0 0.0
    %1067 = vmatprep.subr.mxu0 0.0
    %1068 = vmatpush2.msra.mxu0 0.0
    %1069 = vmatprep.subr.mxu0 0.0
    %1070 = vmatpush2.msra.mxu0 0.0
    %1071 = vmatprep.subr.mxu0 0.0
    %1072 = vmatpush2.msra.mxu0 0.0
    %1073 = vmatprep.subr.mxu0 0.0
    %1074 = vmatpush2.msra.mxu0 0.0
    %1075 = vmatprep.subr.mxu0 0.0
    %1076 = vmatpush2.msra.mxu0 0.0
    %1077 = vmatprep.subr.mxu0 0.0
    %1078 = vmatpush2.msra.mxu0 0.0
    %1079 = vmatprep.subr.mxu0 0.0
    %1080 = vmatpush2.msra.mxu0 0.0
    %1081 = vmatprep.mubr.f32.mxu0 0.0
    %1082 = vmatmul.mubr.f32.gmra.mxu0 %v667
    %v1083 = vpop.f32.mrf.mxu0
    %v1084 = vadd.f32 %v942, %v1083
    %v1085 = vpop.f32.mrf.mxu0
    %1086 = vdwg.mxu0
    %s1087 = smul.u32 %s661, 3
    %s1088 = smul.addr %s1087, 8
    %s1089 = scalar_lea.vmem [#allocation2], %s1088
    %v1090 = vld [vmem:[%s1089] sm:$0xff]
    %v1091 = vld [vmem:[%s1089 + $0x8] sm:$0xff]
    %v1092 = vld [vmem:[%s1089 + $0x10] sm:$0xff]
    %s1093 = smul.u32 %s668, 3
    %s1094 = smul.addr %s1093, 8
    %s1095 = scalar_lea.vmem [#allocation3], %s1094
    %v1096 = vld [vmem:[%s1095] sm:$0xff]
    %v1097 = vld [vmem:[%s1095 + $0x8] sm:$0xff]
    %v1098 = vld [vmem:[%s1095 + $0x10] sm:$0xff]
    %v1099 = vadd.f32 %v1090, %v807
    %v1100 = vadd.f32 %v1096, %v1013
    %v1101 = vxor.u32 %v1099, 2147483648
    %v1102 = vxor.u32 %v1100, 2147483648
    %v1103 = vmul.f32 %v1101, 1.442695
    %v1104 = vpow.pop %v1103
    %v1105 = vmul.f32 %v1102, 1.442695
    %v1106 = vpow.pop %v1105
    %v1107 = vadd.f32 %v1104, 1.0
    %v1108 = vadd.f32 %v1106, 1.0
    %v1109 = vrcp.pop %v1107
    %v1110 = vmul.f32 1.0, %v1109
    %v1111 = vrcp.pop %v1108
    %v1112 = vmul.f32 1.0, %v1111
    %v1113 = vadd.f32 %v1091, %v809
    %v1114 = vadd.f32 %v1097, %v1015
    %v1115 = vxor.u32 %v1113, 2147483648
    %v1116 = vxor.u32 %v1114, 2147483648
    %v1117 = vmul.f32 %v1115, 1.442695
    %v1118 = vpow.pop %v1117
    %v1119 = vmul.f32 %v1116, 1.442695
    %v1120 = vpow.pop %v1119
    %v1121 = vadd.f32 %v1118, 1.0
    %v1122 = vadd.f32 %v1120, 1.0
    %v1123 = vrcp.pop %v1121
    %v1124 = vmul.f32 1.0, %v1123
    %v1125 = vrcp.pop %v1122
    %v1126 = vmul.f32 1.0, %v1125
    %v1127 = vmul.f32 %v1110, %v878
    %v1128 = vmul.f32 %v1112, %v1084
    %v1129 = vadd.f32 %v1092, %v1127
    %v1130 = vadd.f32 %v1098, %v1128
    %v1131 = vtanh.pop %v1129
    %v1132 = vtanh.pop %v1130
    %v1133 = vsub.f32 1.0, %v1124
    %v1134 = vsub.f32 1.0, %v1126
    %v1135 = vmul.f32 %v1133, %v1131
    %v1136 = vmul.f32 %v1134, %v1132
    %v1137 = vmul.f32 %v1124, %v666
    %v1138 = vmul.f32 %v1126, %v667
    %v1139 = vadd.f32 %v1135, %v1137
    %v1140 = vadd.f32 %v1136, %v1138
    %1142 = vset.pattern.permute.xlu0 0
    %1143 = vperm.xlu0 %1142, %v671
    %v1144 = vpop.permute.xlu0 %1143
    %1147 = vset.pattern.permute.xlu0 0
    %1148 = vperm.xlu0 %1147, %v674
    %v1149 = vpop.permute.xlu0 %1148
    %v1151 = vmul.f32 %v1144, %v1139
    %v1152 = vmul.f32 %v1149, %v1140
    %v1153 = vsub.f32 1.0, %v671
    %v1154 = vsub.f32 1.0, %v674
    %1156 = vset.pattern.permute.xlu0 0
    %1157 = vperm.xlu0 %1156, %v1153
    %v1158 = vpop.permute.xlu0 %1157
    %1161 = vset.pattern.permute.xlu0 0
    %1162 = vperm.xlu0 %1161, %v1154
    %v1163 = vpop.permute.xlu0 %1162
    %v1165 = vmul.f32 %v1158, %v666
    %v1166 = vmul.f32 %v1163, %v667
    %v1167 = vadd.f32 %v1151, %v1165
    %v1168 = vadd.f32 %v1152, %v1166
    %v1169 = vmul.f32 %v1167, %v1144
    %s1170 = scalar_lea.vmem %s10, %s669
    %1171 = vst [vmem:[%s1170] sm:$0xff] %v1169
    %v1172 = vmul.f32 %v1168, %v1149
    %s1173 = scalar_lea.vmem %s11, %s672
    %1174 = vst [vmem:[%s1173] sm:$0xff] %v1172
  $region46: #{seq2seq_forward.4} parent=0 // loop_footer
    %s665 = sadd.s32 1, %s661
  $region47: #{seq2seq_forward.4} parent=0 // loop_footer_branch
    %660 = sbr.rel target = $region43
  $region48: #{seq2seq_forward.4} parent=0 // loop_exit
    _
  %1175 = vst [vmem:[%s12] sm:$0xff] %v667
  // Predicated region
  $region49: #{seq2seq_forward.4} parent=0 // pred_check
    _
  $region50: #{seq2seq_forward.4} parent=0 // pred_check_branch
    %1177 = sbr.rel (0) target = $region52
  $region51: #{seq2seq_forward.4} parent=0 // pred_region
    _
  $region52: #{seq2seq_forward.4} parent=0 // pred_fallthru
    _
  // Predicated region
  $region53: #{seq2seq_forward.4} parent=0 // pred_check
    _
  $region54: #{seq2seq_forward.4} parent=0 // pred_check_branch
    %1179 = sbr.rel (0) target = $region56
  $region55: #{seq2seq_forward.4} parent=0 // pred_region
    _
  $region56: #{seq2seq_forward.4} parent=0 // pred_fallthru
    _
  // Predicated region
  $region57: #{seq2seq_forward.4} parent=0 // pred_check
    _
  $region58: #{seq2seq_forward.4} parent=0 // pred_check_branch
    %1181 = sbr.rel (0) target = $region60
  $region59: #{seq2seq_forward.4} parent=0 // pred_region
    _
  $region60: #{seq2seq_forward.4} parent=0 // pred_fallthru
    _
  // Predicated region
  $region61: #{seq2seq_forward.4} parent=0 // pred_check
    _
  $region62: #{seq2seq_forward.4} parent=0 // pred_check_branch
    %1183 = sbr.rel (0) target = $region64
  $region63: #{seq2seq_forward.4} parent=0 // pred_region
    _
  $region64: #{seq2seq_forward.4} parent=0 // pred_fallthru
    _
  // Predicated region
  $region65: #{seq2seq_forward.4} parent=0 // pred_check
    _
  $region66: #{seq2seq_forward.4} parent=0 // pred_check_branch
    %1185 = sbr.rel (0) target = $region68
  $region67: #{seq2seq_forward.4} parent=0 // pred_region
    _
  $region68: #{seq2seq_forward.4} parent=0 // pred_fallthru
    _
  // Predicated region
  $region69: #{seq2seq_forward.4} parent=0 // pred_check
    _
  $region70: #{seq2seq_forward.4} parent=0 // pred_check_branch
    %1187 = sbr.rel (0) target = $region72
  $region71: #{seq2seq_forward.4} parent=0 // pred_region
    _
  $region72: #{seq2seq_forward.4} parent=0 // pred_fallthru
    _

// kernel: seq2seq_forward.6
$region0: #{seq2seq_forward.6}
  #allocation0 [shape = 'u32[]', space=smem, size = 0x4, offset = 0x4, fixed_abs, tag = 'smem constant byte address 0x4 - core index']
  #allocation1 [shape = 'u32[144,128]{1,0:T(1,128)}', space=vmem, size = 0x12000, scoped, tag = 'internal scratch']
  #allocation2 [shape = 'f32[8,128]{1,0:T(8,128)}', space=vmem, size = 0x1000, scoped, tag = 'scratch operand']
  %s0 = inlined_call_operand.vmem [shape: f32[8,8,384], index: 0, kind: input, shape index: {}]
  %s1 = inlined_call_operand.vmem [shape: f32[8,128], index: 1, kind: input, shape index: {}]
  %s2 = inlined_call_operand.vmem [shape: f32[8,8,256], index: 2, kind: input, shape index: {}]
  %s3 = inlined_call_operand.vmem [shape: f32[8,1,8], index: 3, kind: input, shape index: {}]
  %s4 = inlined_call_operand.vmem [shape: f32[128,128], index: 4, kind: input, shape index: {}]
  %s5 = inlined_call_operand.vmem [shape: f32[1,128], index: 5, kind: input, shape index: {}]
  %s6 = inlined_call_operand.vmem [shape: f32[128,384], index: 6, kind: input, shape index: {}]
  %s7 = inlined_call_operand.vmem [shape: f32[1,384], index: 7, kind: input, shape index: {}]
  %s8 = inlined_call_operand.vmem [shape: f32[128,256], index: 8, kind: input, shape index: {}]
  %s9 = inlined_call_operand.vmem [shape: f32[128,128], index: 9, kind: input, shape index: {}]
  %s10 = inlined_call_operand.vmem [shape: f32[256,128], index: 10, kind: input, shape index: {}]
  %s11 = inlined_call_operand.vmem [shape: f32[1,128], index: 11, kind: input, shape index: {}]
  %s12 = inlined_call_operand.vmem [shape: f32[8,8,128], index: 12, kind: output, shape index: {}]
  %s13 = sld [smem:[#allocation0]]
  $region85: #{seq2seq_forward.6} parent=0
    _
  %s15 = ssub.s32 1, %s13
  %s16 = scalar_select 0, %s15, %s13
  loop: start=0, step=1, limit=10
  $region2: #{seq2seq_forward.6} parent=0 // loop_pre_header
    _
  $region3: #{seq2seq_forward.6} parent=0 // loop_header
    %s18 = sphi 0, %s22
    %p19 = scmp.ge.s32.totalorder %s18, 10
    %s28 = sphi 0, %s30
    %s31 = sphi 0, %s28
    %s32 = sphi 0, %s31
    %s48 = sphi 0, %s32
    %s52 = sphi 0, %s52
    %s54 = sphi 0, %s52
    %s55 = sphi 0, %s54
    %s69 = sphi 0, %s55
    %s73 = sphi 0, %s73
    %s75 = sphi 0, %s73
    %s76 = sphi 0, %s75
    %s90 = sphi 0, %s76
    %s94 = sphi 0, %s94
    %s96 = sphi 0, %s94
    %s97 = sphi 0, %s96
    %s111 = sphi 0, %s97
    %s115 = sphi 0, %s115
    %s117 = sphi 0, %s115
    %s118 = sphi 0, %s117
    %s132 = sphi 0, %s118
    %s136 = sphi 0, %s136
    %s138 = sphi 0, %s136
    %s139 = sphi 0, %s138
    %s153 = sphi 0, %s139
    %s157 = sphi 0, %s157
    %s159 = sphi 0, %s157
    %s160 = sphi 0, %s159
    %s174 = sphi 0, %s160
    %s178 = sphi 0, %s178
    %s180 = sphi 0, %s178
    %s181 = sphi 0, %s180
    %s195 = sphi 0, %s181
    %s199 = sphi 0, %s199
    %s201 = sphi 0, %s199
    %s202 = sphi 0, %s201
    %s216 = sphi 0, %s202
    %s220 = sphi 0, %s220
    %s222 = sphi 0, %s220
    %s223 = sphi 0, %s222
    %s237 = sphi 0, %s223
    %s241 = sphi 0, %s241
    %s243 = sphi 0, %s241
    %s244 = sphi 0, %s243
    %s258 = sphi 0, %s244
    %s262 = sphi 0, %s262
    %s264 = sphi 0, %s262
    %s265 = sphi 0, %s264
    %s279 = sphi 0, %s265
    %s285 = sphi 0, %s287
    %s288 = sphi 0, %s285
    %s289 = sphi 0, %s288
    %s305 = sphi 0, %s289
  $region4: #{seq2seq_forward.6} parent=0 // loop_header_branch
    %21 = sbr.rel (%p19) target = $region8
  $region5: #{seq2seq_forward.6} parent=0 // loop_body
    %s23 = ssub.s32 %s18, 1
    %s24 = ssub.s32 %s18, 2
    %s25 = sadd.s32 %s18, 1
    %s26 = ssub.s32 %s18, %s25
    %p27 = scmp.eq.s32.totalorder %s26, 0
    %s29 = sadd.s32 %s28, 1
    %s30 = scalar_select %p27, %s28, %s29
    %p33 = pneg %p27
    %p34 = scmp.eq.s32.totalorder %s18, 7
    %p35 = por %p33, %p34
    %p36 = scmp.ne.s32.totalorder %s28, %s31
    %p37 = scmp.eq.s32.totalorder %s18, 0
    %p38 = por %p36, %p37
    %p39 = scmp.ne.s32.totalorder %s28, %s31
    %p40 = scmp.eq.s32.totalorder %s23, 7
    %p41 = por %p39, %p40
    %p42 = scmp.ne.s32.totalorder %s31, %s32
    %p43 = scmp.eq.s32.totalorder %s23, 0
    %p44 = por %p42, %p43
    %p45 = scmp.ne.s32.totalorder %s31, %s32
    %p46 = scmp.eq.s32.totalorder %s24, 7
    %p47 = por %p45, %p46
    %p49 = scmp.ne.s32.totalorder %s32, %s48
    %p50 = scmp.eq.s32.totalorder %s24, 0
    %p51 = por %p49, %p50
    %s53 = sadd.s32 %s52, 1
    %p56 = scmp.eq.s32.totalorder %s18, 7
    %p57 = scmp.ne.s32.totalorder %s52, %s54
    %p58 = scmp.eq.s32.totalorder %s18, 0
    %p59 = por %p57, %p58
    %p60 = scmp.ne.s32.totalorder %s52, %s54
    %p61 = scmp.eq.s32.totalorder %s23, 7
    %p62 = por %p60, %p61
    %p63 = scmp.ne.s32.totalorder %s54, %s55
    %p64 = scmp.eq.s32.totalorder %s23, 0
    %p65 = por %p63, %p64
    %p66 = scmp.ne.s32.totalorder %s54, %s55
    %p67 = scmp.eq.s32.totalorder %s24, 7
    %p68 = por %p66, %p67
    %p70 = scmp.ne.s32.totalorder %s55, %s69
    %p71 = scmp.eq.s32.totalorder %s24, 0
    %p72 = por %p70, %p71
    %s74 = sadd.s32 %s73, 1
    %p77 = scmp.eq.s32.totalorder %s18, 7
    %p78 = scmp.ne.s32.totalorder %s73, %s75
    %p79 = scmp.eq.s32.totalorder %s18, 0
    %p80 = por %p78, %p79
    %p81 = scmp.ne.s32.totalorder %s73, %s75
    %p82 = scmp.eq.s32.totalorder %s23, 7
    %p83 = por %p81, %p82
    %p84 = scmp.ne.s32.totalorder %s75, %s76
    %p85 = scmp.eq.s32.totalorder %s23, 0
    %p86 = por %p84, %p85
    %p87 = scmp.ne.s32.totalorder %s75, %s76
    %p88 = scmp.eq.s32.totalorder %s24, 7
    %p89 = por %p87, %p88
    %p91 = scmp.ne.s32.totalorder %s76, %s90
    %p92 = scmp.eq.s32.totalorder %s24, 0
    %p93 = por %p91, %p92
    %s95 = sadd.s32 %s94, 1
    %p98 = scmp.eq.s32.totalorder %s18, 7
    %p99 = scmp.ne.s32.totalorder %s94, %s96
    %p100 = scmp.eq.s32.totalorder %s18, 0
    %p101 = por %p99, %p100
    %p102 = scmp.ne.s32.totalorder %s94, %s96
    %p103 = scmp.eq.s32.totalorder %s23, 7
    %p104 = por %p102, %p103
    %p105 = scmp.ne.s32.totalorder %s96, %s97
    %p106 = scmp.eq.s32.totalorder %s23, 0
    %p107 = por %p105, %p106
    %p108 = scmp.ne.s32.totalorder %s96, %s97
    %p109 = scmp.eq.s32.totalorder %s24, 7
    %p110 = por %p108, %p109
    %p112 = scmp.ne.s32.totalorder %s97, %s111
    %p113 = scmp.eq.s32.totalorder %s24, 0
    %p114 = por %p112, %p113
    %s116 = sadd.s32 %s115, 1
    %p119 = scmp.eq.s32.totalorder %s18, 7
    %p120 = scmp.ne.s32.totalorder %s115, %s117
    %p121 = scmp.eq.s32.totalorder %s18, 0
    %p122 = por %p120, %p121
    %p123 = scmp.ne.s32.totalorder %s115, %s117
    %p124 = scmp.eq.s32.totalorder %s23, 7
    %p125 = por %p123, %p124
    %p126 = scmp.ne.s32.totalorder %s117, %s118
    %p127 = scmp.eq.s32.totalorder %s23, 0
    %p128 = por %p126, %p127
    %p129 = scmp.ne.s32.totalorder %s117, %s118
    %p130 = scmp.eq.s32.totalorder %s24, 7
    %p131 = por %p129, %p130
    %p133 = scmp.ne.s32.totalorder %s118, %s132
    %p134 = scmp.eq.s32.totalorder %s24, 0
    %p135 = por %p133, %p134
    %s137 = sadd.s32 %s136, 1
    %p140 = scmp.eq.s32.totalorder %s18, 7
    %p141 = scmp.ne.s32.totalorder %s136, %s138
    %p142 = scmp.eq.s32.totalorder %s18, 0
    %p143 = por %p141, %p142
    %p144 = scmp.ne.s32.totalorder %s136, %s138
    %p145 = scmp.eq.s32.totalorder %s23, 7
    %p146 = por %p144, %p145
    %p147 = scmp.ne.s32.totalorder %s138, %s139
    %p148 = scmp.eq.s32.totalorder %s23, 0
    %p149 = por %p147, %p148
    %p150 = scmp.ne.s32.totalorder %s138, %s139
    %p151 = scmp.eq.s32.totalorder %s24, 7
    %p152 = por %p150, %p151
    %p154 = scmp.ne.s32.totalorder %s139, %s153
    %p155 = scmp.eq.s32.totalorder %s24, 0
    %p156 = por %p154, %p155
    %s158 = sadd.s32 %s157, 1
    %p161 = scmp.eq.s32.totalorder %s18, 7
    %p162 = scmp.ne.s32.totalorder %s157, %s159
    %p163 = scmp.eq.s32.totalorder %s18, 0
    %p164 = por %p162, %p163
    %p165 = scmp.ne.s32.totalorder %s157, %s159
    %p166 = scmp.eq.s32.totalorder %s23, 7
    %p167 = por %p165, %p166
    %p168 = scmp.ne.s32.totalorder %s159, %s160
    %p169 = scmp.eq.s32.totalorder %s23, 0
    %p170 = por %p168, %p169
    %p171 = scmp.ne.s32.totalorder %s159, %s160
    %p172 = scmp.eq.s32.totalorder %s24, 7
    %p173 = por %p171, %p172
    %p175 = scmp.ne.s32.totalorder %s160, %s174
    %p176 = scmp.eq.s32.totalorder %s24, 0
    %p177 = por %p175, %p176
    %s179 = sadd.s32 %s178, 1
    %p182 = scmp.eq.s32.totalorder %s18, 7
    %p183 = scmp.ne.s32.totalorder %s178, %s180
    %p184 = scmp.eq.s32.totalorder %s18, 0
    %p185 = por %p183, %p184
    %p186 = scmp.ne.s32.totalorder %s178, %s180
    %p187 = scmp.eq.s32.totalorder %s23, 7
    %p188 = por %p186, %p187
    %p189 = scmp.ne.s32.totalorder %s180, %s181
    %p190 = scmp.eq.s32.totalorder %s23, 0
    %p191 = por %p189, %p190
    %p192 = scmp.ne.s32.totalorder %s180, %s181
    %p193 = scmp.eq.s32.totalorder %s24, 7
    %p194 = por %p192, %p193
    %p196 = scmp.ne.s32.totalorder %s181, %s195
    %p197 = scmp.eq.s32.totalorder %s24, 0
    %p198 = por %p196, %p197
    %s200 = sadd.s32 %s199, 1
    %p203 = scmp.eq.s32.totalorder %s18, 7
    %p204 = scmp.ne.s32.totalorder %s199, %s201
    %p205 = scmp.eq.s32.totalorder %s18, 0
    %p206 = por %p204, %p205
    %p207 = scmp.ne.s32.totalorder %s199, %s201
    %p208 = scmp.eq.s32.totalorder %s23, 7
    %p209 = por %p207, %p208
    %p210 = scmp.ne.s32.totalorder %s201, %s202
    %p211 = scmp.eq.s32.totalorder %s23, 0
    %p212 = por %p210, %p211
    %p213 = scmp.ne.s32.totalorder %s201, %s202
    %p214 = scmp.eq.s32.totalorder %s24, 7
    %p215 = por %p213, %p214
    %p217 = scmp.ne.s32.totalorder %s202, %s216
    %p218 = scmp.eq.s32.totalorder %s24, 0
    %p219 = por %p217, %p218
    %s221 = sadd.s32 %s220, 1
    %p224 = scmp.eq.s32.totalorder %s18, 7
    %p225 = scmp.ne.s32.totalorder %s220, %s222
    %p226 = scmp.eq.s32.totalorder %s18, 0
    %p227 = por %p225, %p226
    %p228 = scmp.ne.s32.totalorder %s220, %s222
    %p229 = scmp.eq.s32.totalorder %s23, 7
    %p230 = por %p228, %p229
    %p231 = scmp.ne.s32.totalorder %s222, %s223
    %p232 = scmp.eq.s32.totalorder %s23, 0
    %p233 = por %p231, %p232
    %p234 = scmp.ne.s32.totalorder %s222, %s223
    %p235 = scmp.eq.s32.totalorder %s24, 7
    %p236 = por %p234, %p235
    %p238 = scmp.ne.s32.totalorder %s223, %s237
    %p239 = scmp.eq.s32.totalorder %s24, 0
    %p240 = por %p238, %p239
    %s242 = sadd.s32 %s241, 1
    %p245 = scmp.eq.s32.totalorder %s18, 7
    %p246 = scmp.ne.s32.totalorder %s241, %s243
    %p247 = scmp.eq.s32.totalorder %s18, 0
    %p248 = por %p246, %p247
    %p249 = scmp.ne.s32.totalorder %s241, %s243
    %p250 = scmp.eq.s32.totalorder %s23, 7
    %p251 = por %p249, %p250
    %p252 = scmp.ne.s32.totalorder %s243, %s244
    %p253 = scmp.eq.s32.totalorder %s23, 0
    %p254 = por %p252, %p253
    %p255 = scmp.ne.s32.totalorder %s243, %s244
    %p256 = scmp.eq.s32.totalorder %s24, 7
    %p257 = por %p255, %p256
    %p259 = scmp.ne.s32.totalorder %s244, %s258
    %p260 = scmp.eq.s32.totalorder %s24, 0
    %p261 = por %p259, %p260
    %s263 = sadd.s32 %s262, 1
    %p266 = scmp.eq.s32.totalorder %s18, 7
    %p267 = scmp.ne.s32.totalorder %s262, %s264
    %p268 = scmp.eq.s32.totalorder %s18, 0
    %p269 = por %p267, %p268
    %p270 = scmp.ne.s32.totalorder %s262, %s264
    %p271 = scmp.eq.s32.totalorder %s23, 7
    %p272 = por %p270, %p271
    %p273 = scmp.ne.s32.totalorder %s264, %s265
    %p274 = scmp.eq.s32.totalorder %s23, 0
    %p275 = por %p273, %p274
    %p276 = scmp.ne.s32.totalorder %s264, %s265
    %p277 = scmp.eq.s32.totalorder %s24, 7
    %p278 = por %p276, %p277
    %p280 = scmp.ne.s32.totalorder %s265, %s279
    %p281 = scmp.eq.s32.totalorder %s24, 0
    %p282 = por %p280, %p281
    %s283 = ssub.s32 %s18, %s25
    %p284 = scmp.eq.s32.totalorder %s283, 0
    %s286 = sadd.s32 %s285, 1
    %s287 = scalar_select %p284, %s285, %s286
    %p290 = pneg %p284
    %p291 = scmp.eq.s32.totalorder %s18, 7
    %p292 = por %p290, %p291
    %p293 = scmp.ne.s32.totalorder %s285, %s288
    %p294 = scmp.eq.s32.totalorder %s18, 0
    %p295 = por %p293, %p294
    %p296 = scmp.ne.s32.totalorder %s285, %s288
    %p297 = scmp.eq.s32.totalorder %s23, 7
    %p298 = por %p296, %p297
    %p299 = scmp.ne.s32.totalorder %s288, %s289
    %p300 = scmp.eq.s32.totalorder %s23, 0
    %p301 = por %p299, %p300
    %p302 = scmp.ne.s32.totalorder %s288, %s289
    %p303 = scmp.eq.s32.totalorder %s24, 7
    %p304 = por %p302, %p303
    %p306 = scmp.ne.s32.totalorder %s289, %s305
    %p307 = scmp.eq.s32.totalorder %s24, 0
    %p308 = por %p306, %p307
    %p309 = scmp.le.s32.totalorder 1, %s18
    %p310 = scmp.lt.s32.totalorder %s18, 9
    %p311 = pnand %p309, %p310
    %p312 = pneg %p311
    // Predicated region
    $region9: #{seq2seq_forward.6} parent=5 // pred_check
      _
    $region10: #{seq2seq_forward.6} parent=5 // pred_check_branch
      %314 = sbr.rel (%p311) target = $region12
    $region11: #{seq2seq_forward.6} parent=5 // pred_region
      %s315 = ssub.s32 %s18, 1
      // Predicated region
      $region13: #{seq2seq_forward.6} parent=11 // pred_check
        %p316 = pneg %p65
      $region14: #{seq2seq_forward.6} parent=11 // pred_check_branch
        %318 = sbr.rel (%p316) target = $region16
      $region15: #{seq2seq_forward.6} parent=11 // pred_region
        _
      $region16: #{seq2seq_forward.6} parent=11 // pred_fallthru
        _
      // Predicated region
      $region17: #{seq2seq_forward.6} parent=11 // pred_check
        %p319 = pneg %p86
      $region18: #{seq2seq_forward.6} parent=11 // pred_check_branch
        %321 = sbr.rel (%p319) target = $region20
      $region19: #{seq2seq_forward.6} parent=11 // pred_region
        _
      $region20: #{seq2seq_forward.6} parent=11 // pred_fallthru
        _
      // Predicated region
      $region21: #{seq2seq_forward.6} parent=11 // pred_check
        %p322 = pneg %p107
      $region22: #{seq2seq_forward.6} parent=11 // pred_check_branch
        %324 = sbr.rel (%p322) target = $region24
      $region23: #{seq2seq_forward.6} parent=11 // pred_region
        _
      $region24: #{seq2seq_forward.6} parent=11 // pred_fallthru
        _
      // Predicated region
      $region25: #{seq2seq_forward.6} parent=11 // pred_check
        %p325 = pneg %p128
      $region26: #{seq2seq_forward.6} parent=11 // pred_check_branch
        %327 = sbr.rel (%p325) target = $region28
      $region27: #{seq2seq_forward.6} parent=11 // pred_region
        _
      $region28: #{seq2seq_forward.6} parent=11 // pred_fallthru
        _
      // Predicated region
      $region29: #{seq2seq_forward.6} parent=11 // pred_check
        %p328 = pneg %p149
      $region30: #{seq2seq_forward.6} parent=11 // pred_check_branch
        %330 = sbr.rel (%p328) target = $region32
      $region31: #{seq2seq_forward.6} parent=11 // pred_region
        _
      $region32: #{seq2seq_forward.6} parent=11 // pred_fallthru
        _
      // Predicated region
      $region33: #{seq2seq_forward.6} parent=11 // pred_check
        %p331 = pneg %p170
      $region34: #{seq2seq_forward.6} parent=11 // pred_check_branch
        %333 = sbr.rel (%p331) target = $region36
      $region35: #{seq2seq_forward.6} parent=11 // pred_region
        _
      $region36: #{seq2seq_forward.6} parent=11 // pred_fallthru
        _
      // Predicated region
      $region37: #{seq2seq_forward.6} parent=11 // pred_check
        %p334 = pneg %p191
      $region38: #{seq2seq_forward.6} parent=11 // pred_check_branch
        %336 = sbr.rel (%p334) target = $region40
      $region39: #{seq2seq_forward.6} parent=11 // pred_region
        _
      $region40: #{seq2seq_forward.6} parent=11 // pred_fallthru
        _
      // Predicated region
      $region41: #{seq2seq_forward.6} parent=11 // pred_check
        %p337 = pneg %p212
      $region42: #{seq2seq_forward.6} parent=11 // pred_check_branch
        %339 = sbr.rel (%p337) target = $region44
      $region43: #{seq2seq_forward.6} parent=11 // pred_region
        _
      $region44: #{seq2seq_forward.6} parent=11 // pred_fallthru
        _
      // Predicated region
      $region45: #{seq2seq_forward.6} parent=11 // pred_check
        %p340 = pneg %p233
      $region46: #{seq2seq_forward.6} parent=11 // pred_check_branch
        %342 = sbr.rel (%p340) target = $region48
      $region47: #{seq2seq_forward.6} parent=11 // pred_region
        _
      $region48: #{seq2seq_forward.6} parent=11 // pred_fallthru
        _
      // Predicated region
      $region49: #{seq2seq_forward.6} parent=11 // pred_check
        %p343 = pneg %p254
      $region50: #{seq2seq_forward.6} parent=11 // pred_check_branch
        %345 = sbr.rel (%p343) target = $region52
      $region51: #{seq2seq_forward.6} parent=11 // pred_region
        _
      $region52: #{seq2seq_forward.6} parent=11 // pred_fallthru
        _
      // Predicated region
      $region53: #{seq2seq_forward.6} parent=11 // pred_check
        %p346 = pneg %p275
      $region54: #{seq2seq_forward.6} parent=11 // pred_check_branch
        %348 = sbr.rel (%p346) target = $region56
      $region55: #{seq2seq_forward.6} parent=11 // pred_region
        _
      $region56: #{seq2seq_forward.6} parent=11 // pred_fallthru
        _
    $region12: #{seq2seq_forward.6} parent=5 // pred_fallthru
      _
    %p349 = scmp.lt.s32.totalorder %s18, 8
    // Predicated region
    $region57: #{seq2seq_forward.6} parent=5 // pred_check
      %p350 = pneg %p349
    $region58: #{seq2seq_forward.6} parent=5 // pred_check_branch
      %352 = sbr.rel (%p350) target = $region60
    $region59: #{seq2seq_forward.6} parent=5 // pred_region
      // Predicated region
      $region61: #{seq2seq_forward.6} parent=59 // pred_check
        %p353 = pneg %p38
      $region62: #{seq2seq_forward.6} parent=59 // pred_check_branch
        %355 = sbr.rel (%p353) target = $region64
      $region63: #{seq2seq_forward.6} parent=59 // pred_region
        %p356 = scmp.lt.s32.totalorder %s18, 7
        %s357 = scalar_select %p356, %s18, 7
        %s358 = smul.addr %s357, 3
        %s359 = smul.addr %s358, 8
        %s360 = scalar_lea.vmem %s0, %s359
      $region64: #{seq2seq_forward.6} parent=59 // pred_fallthru
        _
    $region60: #{seq2seq_forward.6} parent=5 // pred_fallthru
      _
    %p361 = scmp.le.s32.totalorder 1, %s18
    %p362 = scmp.lt.s32.totalorder %s18, 9
    %p363 = pnand %p361, %p362
    %p364 = pneg %p363
    // Predicated region
    $region65: #{seq2seq_forward.6} parent=5 // pred_check
      _
    $region66: #{seq2seq_forward.6} parent=5 // pred_check_branch
      %366 = sbr.rel (%p363) target = $region68
    $region67: #{seq2seq_forward.6} parent=5 // pred_region
      %s367 = ssub.s32 %s18, 1
      %p368 = scmp.lt.s32.totalorder %s23, 7
      %s369 = scalar_select %p368, %s23, 7
      %s370 = smul.addr %s369, 3
      %s371 = smul.addr %s370, 8
      %s372 = scalar_lea.vmem %s0, %s371
      %p373 = pneg %p44
      %p374 = pneg %p41
      %p375 = pneg %p65
      %p376 = pneg %p62
      %p377 = pneg %p86
      %p378 = pneg %p83
      %p379 = pneg %p107
      %p380 = pneg %p104
      %p381 = pneg %p128
      %p382 = pneg %p125
      %p383 = pneg %p149
      %p384 = pneg %p146
      %p385 = pneg %p170
      %p386 = pneg %p167
      %p387 = pneg %p191
      %p388 = pneg %p188
      %p389 = pneg %p212
      %p390 = pneg %p209
      %p391 = pneg %p233
      %p392 = pneg %p230
      %p393 = pneg %p254
      %p394 = pneg %p251
      %p395 = pneg %p275
      %p396 = pneg %p272
      %p397 = pneg %p301
      %p398 = pneg %p298
      %p399 = scmp.lt.s32.totalorder %s23, 7
      %s400 = scalar_select %p399, %s23, 7
      %s401 = smul.addr %s400, 8
      %s402 = scalar_lea.vmem %s12, %s401
      %p403 = scmp.lt.s32.totalorder %s23, 7
      %s404 = scalar_select %p403, %s23, 7
      %s405 = smul.addr %s404, 3
      %s406 = smul.addr %s405, 8
      %s407 = scalar_lea.vmem %s0, %s406
      %p408 = scmp.lt.s32.totalorder %s23, 7
      %s409 = scalar_select %p408, %s23, 7
      %s410 = smul.addr %s409, 8
      %s411 = scalar_lea.vmem %s12, %s410
      %p412 = scmp.eq.s32.totalorder %s23, 0
      // Predicated region
      $region69: #{seq2seq_forward.6} parent=67 // pred_check
        %p413 = pneg %p412
      $region70: #{seq2seq_forward.6} parent=67 // pred_check_branch
        %415 = sbr.rel (%p413) target = $region72
      $region71: #{seq2seq_forward.6} parent=67 // pred_region
        %v416 = vld [vmem:[%s1] sm:$0xff]
        %v417 = vld [vmem:[%s4] sm:$0xff]
        %v418 = vld [vmem:[%s4 + $0x8] sm:$0xff]
        %v419 = vld [vmem:[%s4 + $0x10] sm:$0xff]
        %v420 = vld [vmem:[%s4 + $0x18] sm:$0xff]
        %v421 = vld [vmem:[%s4 + $0x20] sm:$0xff]
        %v422 = vld [vmem:[%s4 + $0x28] sm:$0xff]
        %v423 = vld [vmem:[%s4 + $0x30] sm:$0xff]
        %v424 = vld [vmem:[%s4 + $0x38] sm:$0xff]
        %v425 = vld [vmem:[%s4 + $0x40] sm:$0xff]
        %v426 = vld [vmem:[%s4 + $0x48] sm:$0xff]
        %v427 = vld [vmem:[%s4 + $0x50] sm:$0xff]
        %v428 = vld [vmem:[%s4 + $0x58] sm:$0xff]
        %v429 = vld [vmem:[%s4 + $0x60] sm:$0xff]
        %v430 = vld [vmem:[%s4 + $0x68] sm:$0xff]
        %v431 = vld [vmem:[%s4 + $0x70] sm:$0xff]
        %v432 = vld [vmem:[%s4 + $0x78] sm:$0xff]
        %v433 = vld [vmem:[%s5] sm:$0x1]
        %v435 = vlaneseq
        %v436 = vshrl.u32 %v435, 7
        %v437 = vsub.s32 0, %v436
        %v438 = vrot.slane %v433, %v437
        %440 = vmatprep.subr.mxu0 0.0
        %441 = vmatpush1.msra.mxu0 %v432
        %442 = vmatprep.subr.mxu0 0.0
        %443 = vmatpush1.msra.mxu0 %v431
        %444 = vmatprep.subr.mxu0 0.0
        %445 = vmatpush1.msra.mxu0 %v430
        %446 = vmatprep.subr.mxu0 0.0
        %447 = vmatpush1.msra.mxu0 %v429
        %448 = vmatprep.subr.mxu0 0.0
        %449 = vmatpush1.msra.mxu0 %v428
        %450 = vmatprep.subr.mxu0 0.0
        %451 = vmatpush1.msra.mxu0 %v427
        %452 = vmatprep.subr.mxu0 0.0
        %453 = vmatpush1.msra.mxu0 %v426
        %454 = vmatprep.subr.mxu0 0.0
        %455 = vmatpush1.msra.mxu0 %v425
        %456 = vmatprep.subr.mxu0 0.0
        %457 = vmatpush1.msra.mxu0 %v424
        %458 = vmatprep.subr.mxu0 0.0
        %459 = vmatpush1.msra.mxu0 %v423
        %460 = vmatprep.subr.mxu0 0.0
        %461 = vmatpush1.msra.mxu0 %v422
        %462 = vmatprep.subr.mxu0 0.0
        %463 = vmatpush1.msra.mxu0 %v421
        %464 = vmatprep.subr.mxu0 0.0
        %465 = vmatpush1.msra.mxu0 %v420
        %466 = vmatprep.subr.mxu0 0.0
        %467 = vmatpush1.msra.mxu0 %v419
        %468 = vmatprep.subr.mxu0 0.0
        %469 = vmatpush1.msra.mxu0 %v418
        %470 = vmatprep.subr.mxu0 0.0
        %471 = vmatpush1.msra.mxu0 %v417
        %472 = vmatprep.subr.mxu0 0.0
        %473 = vmatpush2.msra.mxu0 0.0
        %474 = vmatprep.subr.mxu0 0.0
        %475 = vmatpush2.msra.mxu0 0.0
        %476 = vmatprep.subr.mxu0 0.0
        %477 = vmatpush2.msra.mxu0 0.0
        %478 = vmatprep.subr.mxu0 0.0
        %479 = vmatpush2.msra.mxu0 0.0
        %480 = vmatprep.subr.mxu0 0.0
        %481 = vmatpush2.msra.mxu0 0.0
        %482 = vmatprep.subr.mxu0 0.0
        %483 = vmatpush2.msra.mxu0 0.0
        %484 = vmatprep.subr.mxu0 0.0
        %485 = vmatpush2.msra.mxu0 0.0
        %486 = vmatprep.subr.mxu0 0.0
        %487 = vmatpush2.msra.mxu0 0.0
        %488 = vmatprep.subr.mxu0 0.0
        %489 = vmatpush2.msra.mxu0 0.0
        %490 = vmatprep.subr.mxu0 0.0
        %491 = vmatpush2.msra.mxu0 0.0
        %492 = vmatprep.subr.mxu0 0.0
        %493 = vmatpush2.msra.mxu0 0.0
        %494 = vmatprep.subr.mxu0 0.0
        %495 = vmatpush2.msra.mxu0 0.0
        %496 = vmatprep.subr.mxu0 0.0
        %497 = vmatpush2.msra.mxu0 0.0
        %498 = vmatprep.subr.mxu0 0.0
        %499 = vmatpush2.msra.mxu0 0.0
        %500 = vmatprep.subr.mxu0 0.0
        %501 = vmatpush2.msra.mxu0 0.0
        %502 = vmatprep.subr.mxu0 0.0
        %503 = vmatpush2.msra.mxu0 0.0
        %504 = vmatprep.mubr.f32.mxu0 0.0
        %505 = vmatmul.mubr.f32.gmra.mxu0 %v416
        %v506 = vpop.f32.mrf.mxu0
        %v507 = vadd.f32 %v438, %v506
        %v508 = vpop.f32.mrf.mxu0
        %509 = vdwg.mxu0
        %v510 = vtanh.pop %v507
        %511 = vst [vmem:[#allocation2] sm:$0xff] %v510
      $region72: #{seq2seq_forward.6} parent=67 // pred_fallthru
        _
      %v512 = vld [vmem:[#allocation2] sm:$0xff]
      %v513 = vld [vmem:[%s407] sm:$0xff]
      %v514 = vld [vmem:[%s407 + $0x8] sm:$0xff]
      %v515 = vld [vmem:[%s407 + $0x10] sm:$0xff]
      %v516 = vld [vmem:[%s6] sm:$0xff]
      %v517 = vld [vmem:[%s6 + $0x8] sm:$0xff]
      %v518 = vld [vmem:[%s6 + $0x10] sm:$0xff]
      %v519 = vld [vmem:[%s6 + $0x18] sm:$0xff]
      %v520 = vld [vmem:[%s6 + $0x20] sm:$0xff]
      %v521 = vld [vmem:[%s6 + $0x28] sm:$0xff]
      %v522 = vld [vmem:[%s6 + $0x30] sm:$0xff]
      %v523 = vld [vmem:[%s6 + $0x38] sm:$0xff]
      %v524 = vld [vmem:[%s6 + $0x40] sm:$0xff]
      %v525 = vld [vmem:[%s6 + $0x48] sm:$0xff]
      %v526 = vld [vmem:[%s6 + $0x50] sm:$0xff]
      %v527 = vld [vmem:[%s6 + $0x58] sm:$0xff]
      %v528 = vld [vmem:[%s6 + $0x60] sm:$0xff]
      %v529 = vld [vmem:[%s6 + $0x68] sm:$0xff]
      %v530 = vld [vmem:[%s6 + $0x70] sm:$0xff]
      %v531 = vld [vmem:[%s6 + $0x78] sm:$0xff]
      %v532 = vld [vmem:[%s6 + $0x80] sm:$0xff]
      %v533 = vld [vmem:[%s6 + $0x88] sm:$0xff]
      %v534 = vld [vmem:[%s6 + $0x90] sm:$0xff]
      %v535 = vld [vmem:[%s6 + $0x98] sm:$0xff]
      %v536 = vld [vmem:[%s6 + $0xa0] sm:$0xff]
      %v537 = vld [vmem:[%s6 + $0xa8] sm:$0xff]
      %v538 = vld [vmem:[%s6 + $0xb0] sm:$0xff]
      %v539 = vld [vmem:[%s6 + $0xb8] sm:$0xff]
      %v540 = vld [vmem:[%s6 + $0xc0] sm:$0xff]
      %v541 = vld [vmem:[%s6 + $0xc8] sm:$0xff]
      %v542 = vld [vmem:[%s6 + $0xd0] sm:$0xff]
      %v543 = vld [vmem:[%s6 + $0xd8] sm:$0xff]
      %v544 = vld [vmem:[%s6 + $0xe0] sm:$0xff]
      %v545 = vld [vmem:[%s6 + $0xe8] sm:$0xff]
      %v546 = vld [vmem:[%s6 + $0xf0] sm:$0xff]
      %v547 = vld [vmem:[%s6 + $0xf8] sm:$0xff]
      %v548 = vld [vmem:[%s6 + $0x100] sm:$0xff]
      %v549 = vld [vmem:[%s6 + $0x108] sm:$0xff]
      %v550 = vld [vmem:[%s6 + $0x110] sm:$0xff]
      %v551 = vld [vmem:[%s6 + $0x118] sm:$0xff]
      %v552 = vld [vmem:[%s6 + $0x120] sm:$0xff]
      %v553 = vld [vmem:[%s6 + $0x128] sm:$0xff]
      %v554 = vld [vmem:[%s6 + $0x130] sm:$0xff]
      %v555 = vld [vmem:[%s6 + $0x138] sm:$0xff]
      %v556 = vld [vmem:[%s6 + $0x140] sm:$0xff]
      %v557 = vld [vmem:[%s6 + $0x148] sm:$0xff]
      %v558 = vld [vmem:[%s6 + $0x150] sm:$0xff]
      %v559 = vld [vmem:[%s6 + $0x158] sm:$0xff]
      %v560 = vld [vmem:[%s6 + $0x160] sm:$0xff]
      %v561 = vld [vmem:[%s6 + $0x168] sm:$0xff]
      %v562 = vld [vmem:[%s6 + $0x170] sm:$0xff]
      %v563 = vld [vmem:[%s6 + $0x178] sm:$0xff]
      %v564 = vld [vmem:[%s7] sm:$0x7]
      %v566 = vlaneseq
      %v567 = vshrl.u32 %v566, 7
      %v568 = vsub.s32 0, %v567
      %v569 = vrot.slane %v564, %v568
      %v570 = vlaneseq
      %v571 = vshrl.u32 %v570, 7
      %v572 = vsub.s32 1, %v571
      %v573 = vrot.slane %v564, %v572
      %v574 = vlaneseq
      %v575 = vshrl.u32 %v574, 7
      %v576 = vsub.s32 2, %v575
      %v577 = vrot.slane %v564, %v576
      %581 = vmatprep.subr.mxu0 %v562
      %582 = vmatpush1.msra.mxu0 %v561
      %583 = vmatprep.subr.mxu0 %v559
      %584 = vmatpush1.msra.mxu0 %v558
      %585 = vmatprep.subr.mxu0 %v556
      %586 = vmatpush1.msra.mxu0 %v555
      %587 = vmatprep.subr.mxu0 %v553
      %588 = vmatpush1.msra.mxu0 %v552
      %589 = vmatprep.subr.mxu0 %v550
      %590 = vmatpush1.msra.mxu0 %v549
      %591 = vmatprep.subr.mxu0 %v547
      %592 = vmatpush1.msra.mxu0 %v546
      %593 = vmatprep.subr.mxu0 %v544
      %594 = vmatpush1.msra.mxu0 %v543
      %595 = vmatprep.subr.mxu0 %v541
      %596 = vmatpush1.msra.mxu0 %v540
      %597 = vmatprep.subr.mxu0 %v538
      %598 = vmatpush1.msra.mxu0 %v537
      %599 = vmatprep.subr.mxu0 %v535
      %600 = vmatpush1.msra.mxu0 %v534
      %601 = vmatprep.subr.mxu0 %v532
      %602 = vmatpush1.msra.mxu0 %v531
      %603 = vmatprep.subr.mxu0 %v529
      %604 = vmatpush1.msra.mxu0 %v528
      %605 = vmatprep.subr.mxu0 %v526
      %606 = vmatpush1.msra.mxu0 %v525
      %607 = vmatprep.subr.mxu0 %v523
      %608 = vmatpush1.msra.mxu0 %v522
      %609 = vmatprep.subr.mxu0 %v520
      %610 = vmatpush1.msra.mxu0 %v519
      %611 = vmatprep.subr.mxu0 %v517
      %612 = vmatpush1.msra.mxu0 %v516
      %613 = vmatprep.subr.mxu0 0.0
      %614 = vmatpush2.msra.mxu0 0.0
      %615 = vmatprep.subr.mxu0 0.0
      %616 = vmatpush2.msra.mxu0 0.0
      %617 = vmatprep.subr.mxu0 0.0
      %618 = vmatpush2.msra.mxu0 0.0
      %619 = vmatprep.subr.mxu0 0.0
      %620 = vmatpush2.msra.mxu0 0.0
      %621 = vmatprep.subr.mxu0 0.0
      %622 = vmatpush2.msra.mxu0 0.0
      %623 = vmatprep.subr.mxu0 0.0
      %624 = vmatpush2.msra.mxu0 0.0
      %625 = vmatprep.subr.mxu0 0.0
      %626 = vmatpush2.msra.mxu0 0.0
      %627 = vmatprep.subr.mxu0 0.0
      %628 = vmatpush2.msra.mxu0 0.0
      %629 = vmatprep.subr.mxu0 0.0
      %630 = vmatpush2.msra.mxu0 0.0
      %631 = vmatprep.subr.mxu0 0.0
      %632 = vmatpush2.msra.mxu0 0.0
      %633 = vmatprep.subr.mxu0 0.0
      %634 = vmatpush2.msra.mxu0 0.0
      %635 = vmatprep.subr.mxu0 0.0
      %636 = vmatpush2.msra.mxu0 0.0
      %637 = vmatprep.subr.mxu0 0.0
      %638 = vmatpush2.msra.mxu0 0.0
      %639 = vmatprep.subr.mxu0 0.0
      %640 = vmatpush2.msra.mxu0 0.0
      %641 = vmatprep.subr.mxu0 0.0
      %642 = vmatpush2.msra.mxu0 0.0
      %643 = vmatprep.subr.mxu0 0.0
      %644 = vmatpush2.msra.mxu0 0.0
      %645 = vmatprep.mubr.f32.mxu0 0.0
      %646 = vmatmul.mubr.f32.gmra.mxu0 %v512
      %v647 = vpop.f32.mrf.mxu0
      %v648 = vadd.f32 %v569, %v647
      %v649 = vpop.f32.mrf.mxu0
      %v650 = vadd.f32 %v573, %v649
      %651 = vdwg.mxu0
      %652 = vmatprep.subr.mxu0 0.0
      %653 = vmatpush1.msra.mxu0 %v563
      %654 = vmatprep.subr.mxu0 0.0
      %655 = vmatpush1.msra.mxu0 %v560
      %656 = vmatprep.subr.mxu0 0.0
      %657 = vmatpush1.msra.mxu0 %v557
      %658 = vmatprep.subr.mxu0 0.0
      %659 = vmatpush1.msra.mxu0 %v554
      %660 = vmatprep.subr.mxu0 0.0
      %661 = vmatpush1.msra.mxu0 %v551
      %662 = vmatprep.subr.mxu0 0.0
      %663 = vmatpush1.msra.mxu0 %v548
      %664 = vmatprep.subr.mxu0 0.0
      %665 = vmatpush1.msra.mxu0 %v545
      %666 = vmatprep.subr.mxu0 0.0
      %667 = vmatpush1.msra.mxu0 %v542
      %668 = vmatprep.subr.mxu0 0.0
      %669 = vmatpush1.msra.mxu0 %v539
      %670 = vmatprep.subr.mxu0 0.0
      %671 = vmatpush1.msra.mxu0 %v536
      %672 = vmatprep.subr.mxu0 0.0
      %673 = vmatpush1.msra.mxu0 %v533
      %674 = vmatprep.subr.mxu0 0.0
      %675 = vmatpush1.msra.mxu0 %v530
      %676 = vmatprep.subr.mxu0 0.0
      %677 = vmatpush1.msra.mxu0 %v527
      %678 = vmatprep.subr.mxu0 0.0
      %679 = vmatpush1.msra.mxu0 %v524
      %680 = vmatprep.subr.mxu0 0.0
      %681 = vmatpush1.msra.mxu0 %v521
      %682 = vmatprep.subr.mxu0 0.0
      %683 = vmatpush1.msra.mxu0 %v518
      %684 = vmatprep.subr.mxu0 0.0
      %685 = vmatpush2.msra.mxu0 0.0
      %686 = vmatprep.subr.mxu0 0.0
      %687 = vmatpush2.msra.mxu0 0.0
      %688 = vmatprep.subr.mxu0 0.0
      %689 = vmatpush2.msra.mxu0 0.0
      %690 = vmatprep.subr.mxu0 0.0
      %691 = vmatpush2.msra.mxu0 0.0
      %692 = vmatprep.subr.mxu0 0.0
      %693 = vmatpush2.msra.mxu0 0.0
      %694 = vmatprep.subr.mxu0 0.0
      %695 = vmatpush2.msra.mxu0 0.0
      %696 = vmatprep.subr.mxu0 0.0
      %697 = vmatpush2.msra.mxu0 0.0
      %698 = vmatprep.subr.mxu0 0.0
      %699 = vmatpush2.msra.mxu0 0.0
      %700 = vmatprep.subr.mxu0 0.0
      %701 = vmatpush2.msra.mxu0 0.0
      %702 = vmatprep.subr.mxu0 0.0
      %703 = vmatpush2.msra.mxu0 0.0
      %704 = vmatprep.subr.mxu0 0.0
      %705 = vmatpush2.msra.mxu0 0.0
      %706 = vmatprep.subr.mxu0 0.0
      %707 = vmatpush2.msra.mxu0 0.0
      %708 = vmatprep.subr.mxu0 0.0
      %709 = vmatpush2.msra.mxu0 0.0
      %710 = vmatprep.subr.mxu0 0.0
      %711 = vmatpush2.msra.mxu0 0.0
      %712 = vmatprep.subr.mxu0 0.0
      %713 = vmatpush2.msra.mxu0 0.0
      %714 = vmatprep.subr.mxu0 0.0
      %715 = vmatpush2.msra.mxu0 0.0
      %716 = vmatprep.mubr.f32.mxu0 0.0
      %717 = vmatmul.mubr.f32.gmra.mxu0 %v512
      %v718 = vpop.f32.mrf.mxu0
      %v719 = vadd.f32 %v577, %v718
      %v720 = vpop.f32.mrf.mxu0
      %721 = vdwg.mxu0
      %v722 = vadd.f32 %v513, %v648
      %v723 = vxor.u32 %v722, 2147483648
      %v724 = vmul.f32 %v723, 1.442695
      %v725 = vpow.pop %v724
      %v726 = vadd.f32 %v725, 1.0
      %v727 = vrcp.pop %v726
      %v728 = vmul.f32 1.0, %v727
      %v729 = vadd.f32 %v514, %v650
      %v730 = vxor.u32 %v729, 2147483648
      %v731 = vmul.f32 %v730, 1.442695
      %v732 = vpow.pop %v731
      %v733 = vadd.f32 %v732, 1.0
      %v734 = vrcp.pop %v733
      %v735 = vmul.f32 1.0, %v734
      %v736 = vmul.f32 %v728, %v719
      %v737 = vadd.f32 %v515, %v736
      %v738 = vtanh.pop %v737
      %v739 = vsub.f32 1.0, %v735
      %v740 = vmul.f32 %v739, %v738
      %v741 = vmul.f32 %v735, %v512
      %v742 = vadd.f32 %v740, %v741
      %743 = vst [vmem:[#allocation2] sm:$0xff] %v742
      %v744 = vld [vmem:[%s2] sm:$0xff]
      %v745 = vld [vmem:[%s2 + $0x8] sm:$0xff]
      %v746 = vld [vmem:[%s2 + $0x10] sm:$0xff]
      %v747 = vld [vmem:[%s2 + $0x18] sm:$0xff]
      %v748 = vld [vmem:[%s2 + $0x20] sm:$0xff]
      %v749 = vld [vmem:[%s2 + $0x28] sm:$0xff]
      %v750 = vld [vmem:[%s2 + $0x30] sm:$0xff]
      %v751 = vld [vmem:[%s2 + $0x38] sm:$0xff]
      %v752 = vld [vmem:[%s2 + $0x40] sm:$0xff]
      %v753 = vld [vmem:[%s2 + $0x48] sm:$0xff]
      %v754 = vld [vmem:[%s2 + $0x50] sm:$0xff]
      %v755 = vld [vmem:[%s2 + $0x58] sm:$0xff]
      %v756 = vld [vmem:[%s2 + $0x60] sm:$0xff]
      %v757 = vld [vmem:[%s2 + $0x68] sm:$0xff]
      %v758 = vld [vmem:[%s2 + $0x70] sm:$0xff]
      %v759 = vld [vmem:[%s2 + $0x78] sm:$0xff]
      %v760 = vld [vmem:[%s8] sm:$0xff]
      %v761 = vld [vmem:[%s8 + $0x8] sm:$0xff]
      %v762 = vld [vmem:[%s8 + $0x10] sm:$0xff]
      %v763 = vld [vmem:[%s8 + $0x18] sm:$0xff]
      %v764 = vld [vmem:[%s8 + $0x20] sm:$0xff]
      %v765 = vld [vmem:[%s8 + $0x28] sm:$0xff]
      %v766 = vld [vmem:[%s8 + $0x30] sm:$0xff]
      %v767 = vld [vmem:[%s8 + $0x38] sm:$0xff]
      %v768 = vld [vmem:[%s8 + $0x40] sm:$0xff]
      %v769 = vld [vmem:[%s8 + $0x48] sm:$0xff]
      %v770 = vld [vmem:[%s8 + $0x50] sm:$0xff]
      %v771 = vld [vmem:[%s8 + $0x58] sm:$0xff]
      %v772 = vld [vmem:[%s8 + $0x60] sm:$0xff]
      %v773 = vld [vmem:[%s8 + $0x68] sm:$0xff]
      %v774 = vld [vmem:[%s8 + $0x70] sm:$0xff]
      %v775 = vld [vmem:[%s8 + $0x78] sm:$0xff]
      %v776 = vld [vmem:[%s8 + $0x80] sm:$0xff]
      %v777 = vld [vmem:[%s8 + $0x88] sm:$0xff]
      %v778 = vld [vmem:[%s8 + $0x90] sm:$0xff]
      %v779 = vld [vmem:[%s8 + $0x98] sm:$0xff]
      %v780 = vld [vmem:[%s8 + $0xa0] sm:$0xff]
      %v781 = vld [vmem:[%s8 + $0xa8] sm:$0xff]
      %v782 = vld [vmem:[%s8 + $0xb0] sm:$0xff]
      %v783 = vld [vmem:[%s8 + $0xb8] sm:$0xff]
      %v784 = vld [vmem:[%s8 + $0xc0] sm:$0xff]
      %v785 = vld [vmem:[%s8 + $0xc8] sm:$0xff]
      %v786 = vld [vmem:[%s8 + $0xd0] sm:$0xff]
      %v787 = vld [vmem:[%s8 + $0xd8] sm:$0xff]
      %v788 = vld [vmem:[%s8 + $0xe0] sm:$0xff]
      %v789 = vld [vmem:[%s8 + $0xe8] sm:$0xff]
      %v790 = vld [vmem:[%s8 + $0xf0] sm:$0xff]
      %v791 = vld [vmem:[%s8 + $0xf8] sm:$0xff]
      %792 = vmatprep.subr.mxu0 %v791
      %793 = vmatpush1.msra.mxu0 %v790
      %794 = vmatprep.subr.mxu0 %v789
      %795 = vmatpush1.msra.mxu0 %v788
      %796 = vmatprep.subr.mxu0 %v787
      %797 = vmatpush1.msra.mxu0 %v786
      %798 = vmatprep.subr.mxu0 %v785
      %799 = vmatpush1.msra.mxu0 %v784
      %800 = vmatprep.subr.mxu0 %v783
      %801 = vmatpush1.msra.mxu0 %v782
      %802 = vmatprep.subr.mxu0 %v781
      %803 = vmatpush1.msra.mxu0 %v780
      %804 = vmatprep.subr.mxu0 %v779
      %805 = vmatpush1.msra.mxu0 %v778
      %806 = vmatprep.subr.mxu0 %v777
      %807 = vmatpush1.msra.mxu0 %v776
      %808 = vmatprep.subr.mxu0 %v775
      %809 = vmatpush1.msra.mxu0 %v774
      %810 = vmatprep.subr.mxu0 %v773
      %811 = vmatpush1.msra.mxu0 %v772
      %812 = vmatprep.subr.mxu0 %v771
      %813 = vmatpush1.msra.mxu0 %v770
      %814 = vmatprep.subr.mxu0 %v769
      %815 = vmatpush1.msra.mxu0 %v768
      %816 = vmatprep.subr.mxu0 %v767
      %817 = vmatpush1.msra.mxu0 %v766
      %818 = vmatprep.subr.mxu0 %v765
      %819 = vmatpush1.msra.mxu0 %v764
      %820 = vmatprep.subr.mxu0 %v763
      %821 = vmatpush1.msra.mxu0 %v762
      %822 = vmatprep.subr.mxu0 %v761
      %823 = vmatpush1.msra.mxu0 %v760
      %824 = vmatprep.subr.mxu0 0.0
      %825 = vmatpush2.msra.mxu0 0.0
      %826 = vmatprep.subr.mxu0 0.0
      %827 = vmatpush2.msra.mxu0 0.0
      %828 = vmatprep.subr.mxu0 0.0
      %829 = vmatpush2.msra.mxu0 0.0
      %830 = vmatprep.subr.mxu0 0.0
      %831 = vmatpush2.msra.mxu0 0.0
      %832 = vmatprep.subr.mxu0 0.0
      %833 = vmatpush2.msra.mxu0 0.0
      %834 = vmatprep.subr.mxu0 0.0
      %835 = vmatpush2.msra.mxu0 0.0
      %836 = vmatprep.subr.mxu0 0.0
      %837 = vmatpush2.msra.mxu0 0.0
      %838 = vmatprep.subr.mxu0 0.0
      %839 = vmatpush2.msra.mxu0 0.0
      %840 = vmatprep.subr.mxu0 0.0
      %841 = vmatpush2.msra.mxu0 0.0
      %842 = vmatprep.subr.mxu0 0.0
      %843 = vmatpush2.msra.mxu0 0.0
      %844 = vmatprep.subr.mxu0 0.0
      %845 = vmatpush2.msra.mxu0 0.0
      %846 = vmatprep.subr.mxu0 0.0
      %847 = vmatpush2.msra.mxu0 0.0
      %848 = vmatprep.subr.mxu0 0.0
      %849 = vmatpush2.msra.mxu0 0.0
      %850 = vmatprep.subr.mxu0 0.0
      %851 = vmatpush2.msra.mxu0 0.0
      %852 = vmatprep.subr.mxu0 0.0
      %853 = vmatpush2.msra.mxu0 0.0
      %854 = vmatprep.subr.mxu0 0.0
      %855 = vmatpush2.msra.mxu0 0.0
      %856 = vmatprep.mubr.f32.mxu0 0.0
      %857 = vmatmul.mubr.f32.gmra.mxu0 %v742
      %v858 = vpop.f32.mrf.mxu0
      %v859 = vadd.f32 0.0, %v858
      %v860 = vpop.f32.mrf.mxu0
      %v861 = vadd.f32 0.0, %v860
      %862 = vdwg.mxu0
      %v865 = vcombine.low %v859, %v861
      %v866 = vcombine.high %v859, %v861
      %v868 = vunpack.c.l.s4 1966171168
      %v869 = vunpack.c.0.s8 %v868
      %v870 = vlaneseq
      %v871 = vshrl.u32 %v870, 7
      %v872 = vsub.s32 %v869, %v871
      %v873 = vrot.slane %v865, %v872
      %v875 = vunpack.c.l.s4 1966171168
      %v876 = vunpack.c.0.s8 %v875
      %v877 = vlaneseq
      %v878 = vshrl.u32 %v877, 7
      %v879 = vsub.s32 %v876, %v878
      %v880 = vrot.slane %v866, %v879
      %v881 = vcombine.high %v873, %v873
      %v882 = vcombine.high %v880, %v880
      %v884 = vunpack.c.l.s4 1966171168
      %v885 = vunpack.c.0.s8 %v884
      %v886 = vlaneseq
      %v887 = vshrl.u32 %v886, 7
      %v888 = vsub.s32 %v885, %v887
      %v889 = vrot.slane %v873, %v888
      %v891 = vunpack.c.l.s4 1966171168
      %v892 = vunpack.c.0.s8 %v891
      %v893 = vlaneseq
      %v894 = vshrl.u32 %v893, 7
      %v895 = vsub.s32 %v892, %v894
      %v896 = vrot.slane %v880, %v895
      %v898 = vunpack.c.l.s4 1966171168
      %v899 = vunpack.c.0.s8 %v898
      %v900 = vlaneseq
      %v901 = vshrl.u32 %v900, 7
      %v902 = vsub.s32 %v899, %v901
      %v903 = vrot.slane %v881, %v902
      %v905 = vunpack.c.l.s4 1966171168
      %v906 = vunpack.c.0.s8 %v905
      %v907 = vlaneseq
      %v908 = vshrl.u32 %v907, 7
      %v909 = vsub.s32 %v906, %v908
      %v910 = vrot.slane %v882, %v909
      %v911 = vcombine.high %v889, %v889
      %v912 = vcombine.high %v896, %v896
      %v913 = vcombine.high %v903, %v903
      %v914 = vcombine.high %v910, %v910
      %v915 = vld [vmem:[%s3] sm:$0x1]
      %v916 = vld [vmem:[%s3 + $0x1] sm:$0x1]
      %v917 = vld [vmem:[%s3 + $0x2] sm:$0x1]
      %v918 = vld [vmem:[%s3 + $0x3] sm:$0x1]
      %v919 = vld [vmem:[%s3 + $0x4] sm:$0x1]
      %v920 = vld [vmem:[%s3 + $0x5] sm:$0x1]
      %v921 = vld [vmem:[%s3 + $0x6] sm:$0x1]
      %v922 = vld [vmem:[%s3 + $0x7] sm:$0x1]
      %v923 = vlaneseq
      %v924 = vshrl.u32 %v923, 7
      %v925 = vsub.s32 0, %v924
      %v926 = vrot.slane %v889, %v925
      %v927 = vlaneseq
      %v928 = vshrl.u32 %v927, 7
      %v929 = vsub.s32 1, %v928
      %v930 = vrot.slane %v889, %v929
      %933 = vmatprep.subr.mxu0 0.0
      %934 = vmatpush1.xpose.msra.mxu0 0.0
      %935 = vmatprep.subr.mxu0 0.0
      %936 = vmatpush1.xpose.msra.mxu0 0.0
      %937 = vmatprep.subr.mxu0 0.0
      %938 = vmatpush1.xpose.msra.mxu0 0.0
      %939 = vmatprep.subr.mxu0 0.0
      %940 = vmatpush1.xpose.msra.mxu0 0.0
      %941 = vmatprep.subr.mxu0 0.0
      %942 = vmatpush1.xpose.msra.mxu0 0.0
      %943 = vmatprep.subr.mxu0 0.0
      %944 = vmatpush1.xpose.msra.mxu0 0.0
      %945 = vmatprep.subr.mxu0 0.0
      %946 = vmatpush1.xpose.msra.mxu0 0.0
      %947 = vmatprep.subr.mxu0 0.0
      %948 = vmatpush1.xpose.msra.mxu0 0.0
      %949 = vmatprep.subr.mxu0 0.0
      %950 = vmatpush1.xpose.msra.mxu0 0.0
      %951 = vmatprep.subr.mxu0 0.0
      %952 = vmatpush1.xpose.msra.mxu0 0.0
      %953 = vmatprep.subr.mxu0 0.0
      %954 = vmatpush1.xpose.msra.mxu0 0.0
      %955 = vmatprep.subr.mxu0 0.0
      %956 = vmatpush1.xpose.msra.mxu0 0.0
      %957 = vmatprep.subr.mxu0 0.0
      %958 = vmatpush1.xpose.msra.mxu0 0.0
      %959 = vmatprep.subr.mxu0 0.0
      %960 = vmatpush1.xpose.msra.mxu0 0.0
      %961 = vmatprep.subr.mxu0 0.0
      %962 = vmatpush1.xpose.msra.mxu0 0.0
      %963 = vmatprep.subr.mxu0 %v745
      %964 = vmatpush1.xpose.msra.mxu0 %v744
      %965 = vmatprep.subr.mxu0 0.0
      %966 = vmatpush2.xpose.msra.mxu0 0.0
      %967 = vmatprep.subr.mxu0 0.0
      %968 = vmatpush2.xpose.msra.mxu0 0.0
      %969 = vmatprep.subr.mxu0 0.0
      %970 = vmatpush2.xpose.msra.mxu0 0.0
      %971 = vmatprep.subr.mxu0 0.0
      %972 = vmatpush2.xpose.msra.mxu0 0.0
      %973 = vmatprep.subr.mxu0 0.0
      %974 = vmatpush2.xpose.msra.mxu0 0.0
      %975 = vmatprep.subr.mxu0 0.0
      %976 = vmatpush2.xpose.msra.mxu0 0.0
      %977 = vmatprep.subr.mxu0 0.0
      %978 = vmatpush2.xpose.msra.mxu0 0.0
      %979 = vmatprep.subr.mxu0 0.0
      %980 = vmatpush2.xpose.msra.mxu0 0.0
      %981 = vmatprep.subr.mxu0 0.0
      %982 = vmatpush2.xpose.msra.mxu0 0.0
      %983 = vmatprep.subr.mxu0 0.0
      %984 = vmatpush2.xpose.msra.mxu0 0.0
      %985 = vmatprep.subr.mxu0 0.0
      %986 = vmatpush2.xpose.msra.mxu0 0.0
      %987 = vmatprep.subr.mxu0 0.0
      %988 = vmatpush2.xpose.msra.mxu0 0.0
      %989 = vmatprep.subr.mxu0 0.0
      %990 = vmatpush2.xpose.msra.mxu0 0.0
      %991 = vmatprep.subr.mxu0 0.0
      %992 = vmatpush2.xpose.msra.mxu0 0.0
      %993 = vmatprep.subr.mxu0 0.0
      %994 = vmatpush2.xpose.msra.mxu0 0.0
      %995 = vmatprep.subr.mxu0 0.0
      %996 = vmatpush2.xpose.msra.mxu0 0.0
      %997 = vmatprep.mubr.f32.mxu0 %v930
      %998 = vmatmul.mubr.f32.gmra.mxu0 %v926
      %v999 = vpop.f32.mrf.mxu0
      %v1000 = vadd.f32 %v915, %v999
      %v1001 = vpop.f32.mrf.mxu0
      %1002 = vdwg.mxu0
      %v1003 = vlaneseq
      %v1004 = vshrl.u32 %v1003, 7
      %v1005 = vsub.s32 0, %v1004
      %v1006 = vrot.slane %v903, %v1005
      %v1007 = vlaneseq
      %v1008 = vshrl.u32 %v1007, 7
      %v1009 = vsub.s32 1, %v1008
      %v1010 = vrot.slane %v903, %v1009
      %1013 = vmatprep.subr.mxu0 0.0
      %1014 = vmatpush1.xpose.msra.mxu0 0.0
      %1015 = vmatprep.subr.mxu0 0.0
      %1016 = vmatpush1.xpose.msra.mxu0 0.0
      %1017 = vmatprep.subr.mxu0 0.0
      %1018 = vmatpush1.xpose.msra.mxu0 0.0
      %1019 = vmatprep.subr.mxu0 0.0
      %1020 = vmatpush1.xpose.msra.mxu0 0.0
      %1021 = vmatprep.subr.mxu0 0.0
      %1022 = vmatpush1.xpose.msra.mxu0 0.0
      %1023 = vmatprep.subr.mxu0 0.0
      %1024 = vmatpush1.xpose.msra.mxu0 0.0
      %1025 = vmatprep.subr.mxu0 0.0
      %1026 = vmatpush1.xpose.msra.mxu0 0.0
      %1027 = vmatprep.subr.mxu0 0.0
      %1028 = vmatpush1.xpose.msra.mxu0 0.0
      %1029 = vmatprep.subr.mxu0 0.0
      %1030 = vmatpush1.xpose.msra.mxu0 0.0
      %1031 = vmatprep.subr.mxu0 0.0
      %1032 = vmatpush1.xpose.msra.mxu0 0.0
      %1033 = vmatprep.subr.mxu0 0.0
      %1034 = vmatpush1.xpose.msra.mxu0 0.0
      %1035 = vmatprep.subr.mxu0 0.0
      %1036 = vmatpush1.xpose.msra.mxu0 0.0
      %1037 = vmatprep.subr.mxu0 0.0
      %1038 = vmatpush1.xpose.msra.mxu0 0.0
      %1039 = vmatprep.subr.mxu0 0.0
      %1040 = vmatpush1.xpose.msra.mxu0 0.0
      %1041 = vmatprep.subr.mxu0 0.0
      %1042 = vmatpush1.xpose.msra.mxu0 0.0
      %1043 = vmatprep.subr.mxu0 %v747
      %1044 = vmatpush1.xpose.msra.mxu0 %v746
      %1045 = vmatprep.subr.mxu0 0.0
      %1046 = vmatpush2.xpose.msra.mxu0 0.0
      %1047 = vmatprep.subr.mxu0 0.0
      %1048 = vmatpush2.xpose.msra.mxu0 0.0
      %1049 = vmatprep.subr.mxu0 0.0
      %1050 = vmatpush2.xpose.msra.mxu0 0.0
      %1051 = vmatprep.subr.mxu0 0.0
      %1052 = vmatpush2.xpose.msra.mxu0 0.0
      %1053 = vmatprep.subr.mxu0 0.0
      %1054 = vmatpush2.xpose.msra.mxu0 0.0
      %1055 = vmatprep.subr.mxu0 0.0
      %1056 = vmatpush2.xpose.msra.mxu0 0.0
      %1057 = vmatprep.subr.mxu0 0.0
      %1058 = vmatpush2.xpose.msra.mxu0 0.0
      %1059 = vmatprep.subr.mxu0 0.0
      %1060 = vmatpush2.xpose.msra.mxu0 0.0
      %1061 = vmatprep.subr.mxu0 0.0
      %1062 = vmatpush2.xpose.msra.mxu0 0.0
      %1063 = vmatprep.subr.mxu0 0.0
      %1064 = vmatpush2.xpose.msra.mxu0 0.0
      %1065 = vmatprep.subr.mxu0 0.0
      %1066 = vmatpush2.xpose.msra.mxu0 0.0
      %1067 = vmatprep.subr.mxu0 0.0
      %1068 = vmatpush2.xpose.msra.mxu0 0.0
      %1069 = vmatprep.subr.mxu0 0.0
      %1070 = vmatpush2.xpose.msra.mxu0 0.0
      %1071 = vmatprep.subr.mxu0 0.0
      %1072 = vmatpush2.xpose.msra.mxu0 0.0
      %1073 = vmatprep.subr.mxu0 0.0
      %1074 = vmatpush2.xpose.msra.mxu0 0.0
      %1075 = vmatprep.subr.mxu0 0.0
      %1076 = vmatpush2.xpose.msra.mxu0 0.0
      %1077 = vmatprep.mubr.f32.mxu0 %v1010
      %1078 = vmatmul.mubr.f32.gmra.mxu0 %v1006
      %v1079 = vpop.f32.mrf.mxu0
      %v1080 = vadd.f32 %v916, %v1079
      %v1081 = vpop.f32.mrf.mxu0
      %1082 = vdwg.mxu0
      %v1083 = vlaneseq
      %v1084 = vshrl.u32 %v1083, 7
      %v1085 = vsub.s32 0, %v1084
      %v1086 = vrot.slane %v911, %v1085
      %v1087 = vlaneseq
      %v1088 = vshrl.u32 %v1087, 7
      %v1089 = vsub.s32 1, %v1088
      %v1090 = vrot.slane %v911, %v1089
      %1093 = vmatprep.subr.mxu0 0.0
      %1094 = vmatpush1.xpose.msra.mxu0 0.0
      %1095 = vmatprep.subr.mxu0 0.0
      %1096 = vmatpush1.xpose.msra.mxu0 0.0
      %1097 = vmatprep.subr.mxu0 0.0
      %1098 = vmatpush1.xpose.msra.mxu0 0.0
      %1099 = vmatprep.subr.mxu0 0.0
      %1100 = vmatpush1.xpose.msra.mxu0 0.0
      %1101 = vmatprep.subr.mxu0 0.0
      %1102 = vmatpush1.xpose.msra.mxu0 0.0
      %1103 = vmatprep.subr.mxu0 0.0
      %1104 = vmatpush1.xpose.msra.mxu0 0.0
      %1105 = vmatprep.subr.mxu0 0.0
      %1106 = vmatpush1.xpose.msra.mxu0 0.0
      %1107 = vmatprep.subr.mxu0 0.0
      %1108 = vmatpush1.xpose.msra.mxu0 0.0
      %1109 = vmatprep.subr.mxu0 0.0
      %1110 = vmatpush1.xpose.msra.mxu0 0.0
      %1111 = vmatprep.subr.mxu0 0.0
      %1112 = vmatpush1.xpose.msra.mxu0 0.0
      %1113 = vmatprep.subr.mxu0 0.0
      %1114 = vmatpush1.xpose.msra.mxu0 0.0
      %1115 = vmatprep.subr.mxu0 0.0
      %1116 = vmatpush1.xpose.msra.mxu0 0.0
      %1117 = vmatprep.subr.mxu0 0.0
      %1118 = vmatpush1.xpose.msra.mxu0 0.0
      %1119 = vmatprep.subr.mxu0 0.0
      %1120 = vmatpush1.xpose.msra.mxu0 0.0
      %1121 = vmatprep.subr.mxu0 0.0
      %1122 = vmatpush1.xpose.msra.mxu0 0.0
      %1123 = vmatprep.subr.mxu0 %v749
      %1124 = vmatpush1.xpose.msra.mxu0 %v748
      %1125 = vmatprep.subr.mxu0 0.0
      %1126 = vmatpush2.xpose.msra.mxu0 0.0
      %1127 = vmatprep.subr.mxu0 0.0
      %1128 = vmatpush2.xpose.msra.mxu0 0.0
      %1129 = vmatprep.subr.mxu0 0.0
      %1130 = vmatpush2.xpose.msra.mxu0 0.0
      %1131 = vmatprep.subr.mxu0 0.0
      %1132 = vmatpush2.xpose.msra.mxu0 0.0
      %1133 = vmatprep.subr.mxu0 0.0
      %1134 = vmatpush2.xpose.msra.mxu0 0.0
      %1135 = vmatprep.subr.mxu0 0.0
      %1136 = vmatpush2.xpose.msra.mxu0 0.0
      %1137 = vmatprep.subr.mxu0 0.0
      %1138 = vmatpush2.xpose.msra.mxu0 0.0
      %1139 = vmatprep.subr.mxu0 0.0
      %1140 = vmatpush2.xpose.msra.mxu0 0.0
      %1141 = vmatprep.subr.mxu0 0.0
      %1142 = vmatpush2.xpose.msra.mxu0 0.0
      %1143 = vmatprep.subr.mxu0 0.0
      %1144 = vmatpush2.xpose.msra.mxu0 0.0
      %1145 = vmatprep.subr.mxu0 0.0
      %1146 = vmatpush2.xpose.msra.mxu0 0.0
      %1147 = vmatprep.subr.mxu0 0.0
      %1148 = vmatpush2.xpose.msra.mxu0 0.0
      %1149 = vmatprep.subr.mxu0 0.0
      %1150 = vmatpush2.xpose.msra.mxu0 0.0
      %1151 = vmatprep.subr.mxu0 0.0
      %1152 = vmatpush2.xpose.msra.mxu0 0.0
      %1153 = vmatprep.subr.mxu0 0.0
      %1154 = vmatpush2.xpose.msra.mxu0 0.0
      %1155 = vmatprep.subr.mxu0 0.0
      %1156 = vmatpush2.xpose.msra.mxu0 0.0
      %1157 = vmatprep.mubr.f32.mxu0 %v1090
      %1158 = vmatmul.mubr.f32.gmra.mxu0 %v1086
      %v1159 = vpop.f32.mrf.mxu0
      %v1160 = vadd.f32 %v917, %v1159
      %v1161 = vpop.f32.mrf.mxu0
      %1162 = vdwg.mxu0
      %v1163 = vlaneseq
      %v1164 = vshrl.u32 %v1163, 7
      %v1165 = vsub.s32 0, %v1164
      %v1166 = vrot.slane %v913, %v1165
      %v1167 = vlaneseq
      %v1168 = vshrl.u32 %v1167, 7
      %v1169 = vsub.s32 1, %v1168
      %v1170 = vrot.slane %v913, %v1169
      %1173 = vmatprep.subr.mxu0 0.0
      %1174 = vmatpush1.xpose.msra.mxu0 0.0
      %1175 = vmatprep.subr.mxu0 0.0
      %1176 = vmatpush1.xpose.msra.mxu0 0.0
      %1177 = vmatprep.subr.mxu0 0.0
      %1178 = vmatpush1.xpose.msra.mxu0 0.0
      %1179 = vmatprep.subr.mxu0 0.0
      %1180 = vmatpush1.xpose.msra.mxu0 0.0
      %1181 = vmatprep.subr.mxu0 0.0
      %1182 = vmatpush1.xpose.msra.mxu0 0.0
      %1183 = vmatprep.subr.mxu0 0.0
      %1184 = vmatpush1.xpose.msra.mxu0 0.0
      %1185 = vmatprep.subr.mxu0 0.0
      %1186 = vmatpush1.xpose.msra.mxu0 0.0
      %1187 = vmatprep.subr.mxu0 0.0
      %1188 = vmatpush1.xpose.msra.mxu0 0.0
      %1189 = vmatprep.subr.mxu0 0.0
      %1190 = vmatpush1.xpose.msra.mxu0 0.0
      %1191 = vmatprep.subr.mxu0 0.0
      %1192 = vmatpush1.xpose.msra.mxu0 0.0
      %1193 = vmatprep.subr.mxu0 0.0
      %1194 = vmatpush1.xpose.msra.mxu0 0.0
      %1195 = vmatprep.subr.mxu0 0.0
      %1196 = vmatpush1.xpose.msra.mxu0 0.0
      %1197 = vmatprep.subr.mxu0 0.0
      %1198 = vmatpush1.xpose.msra.mxu0 0.0
      %1199 = vmatprep.subr.mxu0 0.0
      %1200 = vmatpush1.xpose.msra.mxu0 0.0
      %1201 = vmatprep.subr.mxu0 0.0
      %1202 = vmatpush1.xpose.msra.mxu0 0.0
      %1203 = vmatprep.subr.mxu0 %v751
      %1204 = vmatpush1.xpose.msra.mxu0 %v750
      %1205 = vmatprep.subr.mxu0 0.0
      %1206 = vmatpush2.xpose.msra.mxu0 0.0
      %1207 = vmatprep.subr.mxu0 0.0
      %1208 = vmatpush2.xpose.msra.mxu0 0.0
      %1209 = vmatprep.subr.mxu0 0.0
      %1210 = vmatpush2.xpose.msra.mxu0 0.0
      %1211 = vmatprep.subr.mxu0 0.0
      %1212 = vmatpush2.xpose.msra.mxu0 0.0
      %1213 = vmatprep.subr.mxu0 0.0
      %1214 = vmatpush2.xpose.msra.mxu0 0.0
      %1215 = vmatprep.subr.mxu0 0.0
      %1216 = vmatpush2.xpose.msra.mxu0 0.0
      %1217 = vmatprep.subr.mxu0 0.0
      %1218 = vmatpush2.xpose.msra.mxu0 0.0
      %1219 = vmatprep.subr.mxu0 0.0
      %1220 = vmatpush2.xpose.msra.mxu0 0.0
      %1221 = vmatprep.subr.mxu0 0.0
      %1222 = vmatpush2.xpose.msra.mxu0 0.0
      %1223 = vmatprep.subr.mxu0 0.0
      %1224 = vmatpush2.xpose.msra.mxu0 0.0
      %1225 = vmatprep.subr.mxu0 0.0
      %1226 = vmatpush2.xpose.msra.mxu0 0.0
      %1227 = vmatprep.subr.mxu0 0.0
      %1228 = vmatpush2.xpose.msra.mxu0 0.0
      %1229 = vmatprep.subr.mxu0 0.0
      %1230 = vmatpush2.xpose.msra.mxu0 0.0
      %1231 = vmatprep.subr.mxu0 0.0
      %1232 = vmatpush2.xpose.msra.mxu0 0.0
      %1233 = vmatprep.subr.mxu0 0.0
      %1234 = vmatpush2.xpose.msra.mxu0 0.0
      %1235 = vmatprep.subr.mxu0 0.0
      %1236 = vmatpush2.xpose.msra.mxu0 0.0
      %1237 = vmatprep.mubr.f32.mxu0 %v1170
      %1238 = vmatmul.mubr.f32.gmra.mxu0 %v1166
      %v1239 = vpop.f32.mrf.mxu0
      %v1240 = vadd.f32 %v918, %v1239
      %v1241 = vpop.f32.mrf.mxu0
      %1242 = vdwg.mxu0
      %v1243 = vlaneseq
      %v1244 = vshrl.u32 %v1243, 7
      %v1245 = vsub.s32 0, %v1244
      %v1246 = vrot.slane %v896, %v1245
      %v1247 = vlaneseq
      %v1248 = vshrl.u32 %v1247, 7
      %v1249 = vsub.s32 1, %v1248
      %v1250 = vrot.slane %v896, %v1249
      %1253 = vmatprep.subr.mxu0 0.0
      %1254 = vmatpush1.xpose.msra.mxu0 0.0
      %1255 = vmatprep.subr.mxu0 0.0
      %1256 = vmatpush1.xpose.msra.mxu0 0.0
      %1257 = vmatprep.subr.mxu0 0.0
      %1258 = vmatpush1.xpose.msra.mxu0 0.0
      %1259 = vmatprep.subr.mxu0 0.0
      %1260 = vmatpush1.xpose.msra.mxu0 0.0
      %1261 = vmatprep.subr.mxu0 0.0
      %1262 = vmatpush1.xpose.msra.mxu0 0.0
      %1263 = vmatprep.subr.mxu0 0.0
      %1264 = vmatpush1.xpose.msra.mxu0 0.0
      %1265 = vmatprep.subr.mxu0 0.0
      %1266 = vmatpush1.xpose.msra.mxu0 0.0
      %1267 = vmatprep.subr.mxu0 0.0
      %1268 = vmatpush1.xpose.msra.mxu0 0.0
      %1269 = vmatprep.subr.mxu0 0.0
      %1270 = vmatpush1.xpose.msra.mxu0 0.0
      %1271 = vmatprep.subr.mxu0 0.0
      %1272 = vmatpush1.xpose.msra.mxu0 0.0
      %1273 = vmatprep.subr.mxu0 0.0
      %1274 = vmatpush1.xpose.msra.mxu0 0.0
      %1275 = vmatprep.subr.mxu0 0.0
      %1276 = vmatpush1.xpose.msra.mxu0 0.0
      %1277 = vmatprep.subr.mxu0 0.0
      %1278 = vmatpush1.xpose.msra.mxu0 0.0
      %1279 = vmatprep.subr.mxu0 0.0
      %1280 = vmatpush1.xpose.msra.mxu0 0.0
      %1281 = vmatprep.subr.mxu0 0.0
      %1282 = vmatpush1.xpose.msra.mxu0 0.0
      %1283 = vmatprep.subr.mxu0 %v753
      %1284 = vmatpush1.xpose.msra.mxu0 %v752
      %1285 = vmatprep.subr.mxu0 0.0
      %1286 = vmatpush2.xpose.msra.mxu0 0.0
      %1287 = vmatprep.subr.mxu0 0.0
      %1288 = vmatpush2.xpose.msra.mxu0 0.0
      %1289 = vmatprep.subr.mxu0 0.0
      %1290 = vmatpush2.xpose.msra.mxu0 0.0
      %1291 = vmatprep.subr.mxu0 0.0
      %1292 = vmatpush2.xpose.msra.mxu0 0.0
      %1293 = vmatprep.subr.mxu0 0.0
      %1294 = vmatpush2.xpose.msra.mxu0 0.0
      %1295 = vmatprep.subr.mxu0 0.0
      %1296 = vmatpush2.xpose.msra.mxu0 0.0
      %1297 = vmatprep.subr.mxu0 0.0
      %1298 = vmatpush2.xpose.msra.mxu0 0.0
      %1299 = vmatprep.subr.mxu0 0.0
      %1300 = vmatpush2.xpose.msra.mxu0 0.0
      %1301 = vmatprep.subr.mxu0 0.0
      %1302 = vmatpush2.xpose.msra.mxu0 0.0
      %1303 = vmatprep.subr.mxu0 0.0
      %1304 = vmatpush2.xpose.msra.mxu0 0.0
      %1305 = vmatprep.subr.mxu0 0.0
      %1306 = vmatpush2.xpose.msra.mxu0 0.0
      %1307 = vmatprep.subr.mxu0 0.0
      %1308 = vmatpush2.xpose.msra.mxu0 0.0
      %1309 = vmatprep.subr.mxu0 0.0
      %1310 = vmatpush2.xpose.msra.mxu0 0.0
      %1311 = vmatprep.subr.mxu0 0.0
      %1312 = vmatpush2.xpose.msra.mxu0 0.0
      %1313 = vmatprep.subr.mxu0 0.0
      %1314 = vmatpush2.xpose.msra.mxu0 0.0
      %1315 = vmatprep.subr.mxu0 0.0
      %1316 = vmatpush2.xpose.msra.mxu0 0.0
      %1317 = vmatprep.mubr.f32.mxu0 %v1250
      %1318 = vmatmul.mubr.f32.gmra.mxu0 %v1246
      %v1319 = vpop.f32.mrf.mxu0
      %v1320 = vadd.f32 %v919, %v1319
      %v1321 = vpop.f32.mrf.mxu0
      %1322 = vdwg.mxu0
      %v1323 = vlaneseq
      %v1324 = vshrl.u32 %v1323, 7
      %v1325 = vsub.s32 0, %v1324
      %v1326 = vrot.slane %v910, %v1325
      %v1327 = vlaneseq
      %v1328 = vshrl.u32 %v1327, 7
      %v1329 = vsub.s32 1, %v1328
      %v1330 = vrot.slane %v910, %v1329
      %1333 = vmatprep.subr.mxu0 0.0
      %1334 = vmatpush1.xpose.msra.mxu0 0.0
      %1335 = vmatprep.subr.mxu0 0.0
      %1336 = vmatpush1.xpose.msra.mxu0 0.0
      %1337 = vmatprep.subr.mxu0 0.0
      %1338 = vmatpush1.xpose.msra.mxu0 0.0
      %1339 = vmatprep.subr.mxu0 0.0
      %1340 = vmatpush1.xpose.msra.mxu0 0.0
      %1341 = vmatprep.subr.mxu0 0.0
      %1342 = vmatpush1.xpose.msra.mxu0 0.0
      %1343 = vmatprep.subr.mxu0 0.0
      %1344 = vmatpush1.xpose.msra.mxu0 0.0
      %1345 = vmatprep.subr.mxu0 0.0
      %1346 = vmatpush1.xpose.msra.mxu0 0.0
      %1347 = vmatprep.subr.mxu0 0.0
      %1348 = vmatpush1.xpose.msra.mxu0 0.0
      %1349 = vmatprep.subr.mxu0 0.0
      %1350 = vmatpush1.xpose.msra.mxu0 0.0
      %1351 = vmatprep.subr.mxu0 0.0
      %1352 = vmatpush1.xpose.msra.mxu0 0.0
      %1353 = vmatprep.subr.mxu0 0.0
      %1354 = vmatpush1.xpose.msra.mxu0 0.0
      %1355 = vmatprep.subr.mxu0 0.0
      %1356 = vmatpush1.xpose.msra.mxu0 0.0
      %1357 = vmatprep.subr.mxu0 0.0
      %1358 = vmatpush1.xpose.msra.mxu0 0.0
      %1359 = vmatprep.subr.mxu0 0.0
      %1360 = vmatpush1.xpose.msra.mxu0 0.0
      %1361 = vmatprep.subr.mxu0 0.0
      %1362 = vmatpush1.xpose.msra.mxu0 0.0
      %1363 = vmatprep.subr.mxu0 %v755
      %1364 = vmatpush1.xpose.msra.mxu0 %v754
      %1365 = vmatprep.subr.mxu0 0.0
      %1366 = vmatpush2.xpose.msra.mxu0 0.0
      %1367 = vmatprep.subr.mxu0 0.0
      %1368 = vmatpush2.xpose.msra.mxu0 0.0
      %1369 = vmatprep.subr.mxu0 0.0
      %1370 = vmatpush2.xpose.msra.mxu0 0.0
      %1371 = vmatprep.subr.mxu0 0.0
      %1372 = vmatpush2.xpose.msra.mxu0 0.0
      %1373 = vmatprep.subr.mxu0 0.0
      %1374 = vmatpush2.xpose.msra.mxu0 0.0
      %1375 = vmatprep.subr.mxu0 0.0
      %1376 = vmatpush2.xpose.msra.mxu0 0.0
      %1377 = vmatprep.subr.mxu0 0.0
      %1378 = vmatpush2.xpose.msra.mxu0 0.0
      %1379 = vmatprep.subr.mxu0 0.0
      %1380 = vmatpush2.xpose.msra.mxu0 0.0
      %1381 = vmatprep.subr.mxu0 0.0
      %1382 = vmatpush2.xpose.msra.mxu0 0.0
      %1383 = vmatprep.subr.mxu0 0.0
      %1384 = vmatpush2.xpose.msra.mxu0 0.0
      %1385 = vmatprep.subr.mxu0 0.0
      %1386 = vmatpush2.xpose.msra.mxu0 0.0
      %1387 = vmatprep.subr.mxu0 0.0
      %1388 = vmatpush2.xpose.msra.mxu0 0.0
      %1389 = vmatprep.subr.mxu0 0.0
      %1390 = vmatpush2.xpose.msra.mxu0 0.0
      %1391 = vmatprep.subr.mxu0 0.0
      %1392 = vmatpush2.xpose.msra.mxu0 0.0
      %1393 = vmatprep.subr.mxu0 0.0
      %1394 = vmatpush2.xpose.msra.mxu0 0.0
      %1395 = vmatprep.subr.mxu0 0.0
      %1396 = vmatpush2.xpose.msra.mxu0 0.0
      %1397 = vmatprep.mubr.f32.mxu0 %v1330
      %1398 = vmatmul.mubr.f32.gmra.mxu0 %v1326
      %v1399 = vpop.f32.mrf.mxu0
      %v1400 = vadd.f32 %v920, %v1399
      %v1401 = vpop.f32.mrf.mxu0
      %1402 = vdwg.mxu0
      %v1403 = vlaneseq
      %v1404 = vshrl.u32 %v1403, 7
      %v1405 = vsub.s32 0, %v1404
      %v1406 = vrot.slane %v912, %v1405
      %v1407 = vlaneseq
      %v1408 = vshrl.u32 %v1407, 7
      %v1409 = vsub.s32 1, %v1408
      %v1410 = vrot.slane %v912, %v1409
      %1413 = vmatprep.subr.mxu0 0.0
      %1414 = vmatpush1.xpose.msra.mxu0 0.0
      %1415 = vmatprep.subr.mxu0 0.0
      %1416 = vmatpush1.xpose.msra.mxu0 0.0
      %1417 = vmatprep.subr.mxu0 0.0
      %1418 = vmatpush1.xpose.msra.mxu0 0.0
      %1419 = vmatprep.subr.mxu0 0.0
      %1420 = vmatpush1.xpose.msra.mxu0 0.0
      %1421 = vmatprep.subr.mxu0 0.0
      %1422 = vmatpush1.xpose.msra.mxu0 0.0
      %1423 = vmatprep.subr.mxu0 0.0
      %1424 = vmatpush1.xpose.msra.mxu0 0.0
      %1425 = vmatprep.subr.mxu0 0.0
      %1426 = vmatpush1.xpose.msra.mxu0 0.0
      %1427 = vmatprep.subr.mxu0 0.0
      %1428 = vmatpush1.xpose.msra.mxu0 0.0
      %1429 = vmatprep.subr.mxu0 0.0
      %1430 = vmatpush1.xpose.msra.mxu0 0.0
      %1431 = vmatprep.subr.mxu0 0.0
      %1432 = vmatpush1.xpose.msra.mxu0 0.0
      %1433 = vmatprep.subr.mxu0 0.0
      %1434 = vmatpush1.xpose.msra.mxu0 0.0
      %1435 = vmatprep.subr.mxu0 0.0
      %1436 = vmatpush1.xpose.msra.mxu0 0.0
      %1437 = vmatprep.subr.mxu0 0.0
      %1438 = vmatpush1.xpose.msra.mxu0 0.0
      %1439 = vmatprep.subr.mxu0 0.0
      %1440 = vmatpush1.xpose.msra.mxu0 0.0
      %1441 = vmatprep.subr.mxu0 0.0
      %1442 = vmatpush1.xpose.msra.mxu0 0.0
      %1443 = vmatprep.subr.mxu0 %v757
      %1444 = vmatpush1.xpose.msra.mxu0 %v756
      %1445 = vmatprep.subr.mxu0 0.0
      %1446 = vmatpush2.xpose.msra.mxu0 0.0
      %1447 = vmatprep.subr.mxu0 0.0
      %1448 = vmatpush2.xpose.msra.mxu0 0.0
      %1449 = vmatprep.subr.mxu0 0.0
      %1450 = vmatpush2.xpose.msra.mxu0 0.0
      %1451 = vmatprep.subr.mxu0 0.0
      %1452 = vmatpush2.xpose.msra.mxu0 0.0
      %1453 = vmatprep.subr.mxu0 0.0
      %1454 = vmatpush2.xpose.msra.mxu0 0.0
      %1455 = vmatprep.subr.mxu0 0.0
      %1456 = vmatpush2.xpose.msra.mxu0 0.0
      %1457 = vmatprep.subr.mxu0 0.0
      %1458 = vmatpush2.xpose.msra.mxu0 0.0
      %1459 = vmatprep.subr.mxu0 0.0
      %1460 = vmatpush2.xpose.msra.mxu0 0.0
      %1461 = vmatprep.subr.mxu0 0.0
      %1462 = vmatpush2.xpose.msra.mxu0 0.0
      %1463 = vmatprep.subr.mxu0 0.0
      %1464 = vmatpush2.xpose.msra.mxu0 0.0
      %1465 = vmatprep.subr.mxu0 0.0
      %1466 = vmatpush2.xpose.msra.mxu0 0.0
      %1467 = vmatprep.subr.mxu0 0.0
      %1468 = vmatpush2.xpose.msra.mxu0 0.0
      %1469 = vmatprep.subr.mxu0 0.0
      %1470 = vmatpush2.xpose.msra.mxu0 0.0
      %1471 = vmatprep.subr.mxu0 0.0
      %1472 = vmatpush2.xpose.msra.mxu0 0.0
      %1473 = vmatprep.subr.mxu0 0.0
      %1474 = vmatpush2.xpose.msra.mxu0 0.0
      %1475 = vmatprep.subr.mxu0 0.0
      %1476 = vmatpush2.xpose.msra.mxu0 0.0
      %1477 = vmatprep.mubr.f32.mxu0 %v1410
      %1478 = vmatmul.mubr.f32.gmra.mxu0 %v1406
      %v1479 = vpop.f32.mrf.mxu0
      %v1480 = vadd.f32 %v921, %v1479
      %v1481 = vpop.f32.mrf.mxu0
      %1482 = vdwg.mxu0
      %v1483 = vlaneseq
      %v1484 = vshrl.u32 %v1483, 7
      %v1485 = vsub.s32 0, %v1484
      %v1486 = vrot.slane %v914, %v1485
      %v1487 = vlaneseq
      %v1488 = vshrl.u32 %v1487, 7
      %v1489 = vsub.s32 1, %v1488
      %v1490 = vrot.slane %v914, %v1489
      %1493 = vmatprep.subr.mxu0 0.0
      %1494 = vmatpush1.xpose.msra.mxu0 0.0
      %1495 = vmatprep.subr.mxu0 0.0
      %1496 = vmatpush1.xpose.msra.mxu0 0.0
      %1497 = vmatprep.subr.mxu0 0.0
      %1498 = vmatpush1.xpose.msra.mxu0 0.0
      %1499 = vmatprep.subr.mxu0 0.0
      %1500 = vmatpush1.xpose.msra.mxu0 0.0
      %1501 = vmatprep.subr.mxu0 0.0
      %1502 = vmatpush1.xpose.msra.mxu0 0.0
      %1503 = vmatprep.subr.mxu0 0.0
      %1504 = vmatpush1.xpose.msra.mxu0 0.0
      %1505 = vmatprep.subr.mxu0 0.0
      %1506 = vmatpush1.xpose.msra.mxu0 0.0
      %1507 = vmatprep.subr.mxu0 0.0
      %1508 = vmatpush1.xpose.msra.mxu0 0.0
      %1509 = vmatprep.subr.mxu0 0.0
      %1510 = vmatpush1.xpose.msra.mxu0 0.0
      %1511 = vmatprep.subr.mxu0 0.0
      %1512 = vmatpush1.xpose.msra.mxu0 0.0
      %1513 = vmatprep.subr.mxu0 0.0
      %1514 = vmatpush1.xpose.msra.mxu0 0.0
      %1515 = vmatprep.subr.mxu0 0.0
      %1516 = vmatpush1.xpose.msra.mxu0 0.0
      %1517 = vmatprep.subr.mxu0 0.0
      %1518 = vmatpush1.xpose.msra.mxu0 0.0
      %1519 = vmatprep.subr.mxu0 0.0
      %1520 = vmatpush1.xpose.msra.mxu0 0.0
      %1521 = vmatprep.subr.mxu0 0.0
      %1522 = vmatpush1.xpose.msra.mxu0 0.0
      %1523 = vmatprep.subr.mxu0 %v759
      %1524 = vmatpush1.xpose.msra.mxu0 %v758
      %1525 = vmatprep.subr.mxu0 0.0
      %1526 = vmatpush2.xpose.msra.mxu0 0.0
      %1527 = vmatprep.subr.mxu0 0.0
      %1528 = vmatpush2.xpose.msra.mxu0 0.0
      %1529 = vmatprep.subr.mxu0 0.0
      %1530 = vmatpush2.xpose.msra.mxu0 0.0
      %1531 = vmatprep.subr.mxu0 0.0
      %1532 = vmatpush2.xpose.msra.mxu0 0.0
      %1533 = vmatprep.subr.mxu0 0.0
      %1534 = vmatpush2.xpose.msra.mxu0 0.0
      %1535 = vmatprep.subr.mxu0 0.0
      %1536 = vmatpush2.xpose.msra.mxu0 0.0
      %1537 = vmatprep.subr.mxu0 0.0
      %1538 = vmatpush2.xpose.msra.mxu0 0.0
      %1539 = vmatprep.subr.mxu0 0.0
      %1540 = vmatpush2.xpose.msra.mxu0 0.0
      %1541 = vmatprep.subr.mxu0 0.0
      %1542 = vmatpush2.xpose.msra.mxu0 0.0
      %1543 = vmatprep.subr.mxu0 0.0
      %1544 = vmatpush2.xpose.msra.mxu0 0.0
      %1545 = vmatprep.subr.mxu0 0.0
      %1546 = vmatpush2.xpose.msra.mxu0 0.0
      %1547 = vmatprep.subr.mxu0 0.0
      %1548 = vmatpush2.xpose.msra.mxu0 0.0
      %1549 = vmatprep.subr.mxu0 0.0
      %1550 = vmatpush2.xpose.msra.mxu0 0.0
      %1551 = vmatprep.subr.mxu0 0.0
      %1552 = vmatpush2.xpose.msra.mxu0 0.0
      %1553 = vmatprep.subr.mxu0 0.0
      %1554 = vmatpush2.xpose.msra.mxu0 0.0
      %1555 = vmatprep.subr.mxu0 0.0
      %1556 = vmatpush2.xpose.msra.mxu0 0.0
      %1557 = vmatprep.mubr.f32.mxu0 %v1490
      %1558 = vmatmul.mubr.f32.gmra.mxu0 %v1486
      %v1559 = vpop.f32.mrf.mxu0
      %v1560 = vadd.f32 %v922, %v1559
      %v1561 = vpop.f32.mrf.mxu0
      %1562 = vdwg.mxu0
      %vm1563 = vcmask 57344
      %v1564 = vsel %vm1563, %v1000, -inf
      %1565 = vmax.xlane.f32.xlu0 %v1564
      %v1566 = vpop.xlane.xlu0 %1565
      %v1567 = vsel %vm1563, %v1080, -inf
      %1568 = vmax.xlane.f32.xlu0 %v1567
      %v1569 = vpop.xlane.xlu0 %1568
      %v1570 = vsel %vm1563, %v1160, -inf
      %1571 = vmax.xlane.f32.xlu0 %v1570
      %v1572 = vpop.xlane.xlu0 %1571
      %v1573 = vsel %vm1563, %v1240, -inf
      %1574 = vmax.xlane.f32.xlu0 %v1573
      %v1575 = vpop.xlane.xlu0 %1574
      %v1576 = vsel %vm1563, %v1320, -inf
      %1577 = vmax.xlane.f32.xlu0 %v1576
      %v1578 = vpop.xlane.xlu0 %1577
      %v1579 = vsel %vm1563, %v1400, -inf
      %1580 = vmax.xlane.f32.xlu0 %v1579
      %v1581 = vpop.xlane.xlu0 %1580
      %v1582 = vsel %vm1563, %v1480, -inf
      %1583 = vmax.xlane.f32.xlu0 %v1582
      %v1584 = vpop.xlane.xlu0 %1583
      %v1585 = vsel %vm1563, %v1560, -inf
      %1586 = vmax.xlane.f32.xlu0 %v1585
      %v1587 = vpop.xlane.xlu0 %1586
      %v1588 = vsub.f32 %v1000, %v1566
      %v1589 = vsub.f32 %v1080, %v1569
      %v1590 = vsub.f32 %v1160, %v1572
      %v1591 = vsub.f32 %v1240, %v1575
      %v1592 = vsub.f32 %v1320, %v1578
      %v1593 = vsub.f32 %v1400, %v1581
      %v1594 = vsub.f32 %v1480, %v1584
      %v1595 = vsub.f32 %v1560, %v1587
      %v1596 = vmul.f32 %v1588, 1.442695
      %v1597 = vpow.pop %v1596
      %v1598 = vmul.f32 %v1589, 1.442695
      %v1599 = vpow.pop %v1598
      %v1600 = vmul.f32 %v1590, 1.442695
      %v1601 = vpow.pop %v1600
      %v1602 = vmul.f32 %v1591, 1.442695
      %v1603 = vpow.pop %v1602
      %v1604 = vmul.f32 %v1592, 1.442695
      %v1605 = vpow.pop %v1604
      %v1606 = vmul.f32 %v1593, 1.442695
      %v1607 = vpow.pop %v1606
      %v1608 = vmul.f32 %v1594, 1.442695
      %v1609 = vpow.pop %v1608
      %v1610 = vmul.f32 %v1595, 1.442695
      %v1611 = vpow.pop %v1610
      %v1612 = vsel %vm1563, %v1597, 0.0
      %1613 = vadd.xlane.f32.xlu0 %v1612
      %v1614 = vpop.xlane.xlu0 %1613
      %v1615 = vsel %vm1563, %v1599, 0.0
      %1616 = vadd.xlane.f32.xlu0 %v1615
      %v1617 = vpop.xlane.xlu0 %1616
      %v1618 = vsel %vm1563, %v1601, 0.0
      %1619 = vadd.xlane.f32.xlu0 %v1618
      %v1620 = vpop.xlane.xlu0 %1619
      %v1621 = vsel %vm1563, %v1603, 0.0
      %1622 = vadd.xlane.f32.xlu0 %v1621
      %v1623 = vpop.xlane.xlu0 %1622
      %v1624 = vsel %vm1563, %v1605, 0.0
      %1625 = vadd.xlane.f32.xlu0 %v1624
      %v1626 = vpop.xlane.xlu0 %1625
      %v1627 = vsel %vm1563, %v1607, 0.0
      %1628 = vadd.xlane.f32.xlu0 %v1627
      %v1629 = vpop.xlane.xlu0 %1628
      %v1630 = vsel %vm1563, %v1609, 0.0
      %1631 = vadd.xlane.f32.xlu0 %v1630
      %v1632 = vpop.xlane.xlu0 %1631
      %v1633 = vsel %vm1563, %v1611, 0.0
      %1634 = vadd.xlane.f32.xlu0 %v1633
      %v1635 = vpop.xlane.xlu0 %1634
      %v1636 = vrcp.pop %v1614
      %v1637 = vrcp.pop %v1617
      %v1638 = vrcp.pop %v1620
      %v1639 = vrcp.pop %v1623
      %v1640 = vrcp.pop %v1626
      %v1641 = vrcp.pop %v1629
      %v1642 = vrcp.pop %v1632
      %v1643 = vrcp.pop %v1635
      %v1644 = vmul.f32 %v1597, %v1636
      %v1645 = vmul.f32 %v1599, %v1637
      %v1646 = vmul.f32 %v1601, %v1638
      %v1647 = vmul.f32 %v1603, %v1639
      %v1648 = vmul.f32 %v1605, %v1640
      %v1649 = vmul.f32 %v1607, %v1641
      %v1650 = vmul.f32 %v1609, %v1642
      %v1651 = vmul.f32 %v1611, %v1643
      %vm1652 = vcmask 64512
      %v1654 = vsel %vm1652, %v1644, 0
      %1656 = vmatprep.subr.mxu0 0.0
      %1657 = vmatpush1.msra.mxu0 0.0
      %1658 = vmatprep.subr.mxu0 0.0
      %1659 = vmatpush1.msra.mxu0 0.0
      %1660 = vmatprep.subr.mxu0 0.0
      %1661 = vmatpush1.msra.mxu0 0.0
      %1662 = vmatprep.subr.mxu0 0.0
      %1663 = vmatpush1.msra.mxu0 0.0
      %1664 = vmatprep.subr.mxu0 0.0
      %1665 = vmatpush1.msra.mxu0 0.0
      %1666 = vmatprep.subr.mxu0 0.0
      %1667 = vmatpush1.msra.mxu0 0.0
      %1668 = vmatprep.subr.mxu0 0.0
      %1669 = vmatpush1.msra.mxu0 0.0
      %1670 = vmatprep.subr.mxu0 0.0
      %1671 = vmatpush1.msra.mxu0 0.0
      %1672 = vmatprep.subr.mxu0 0.0
      %1673 = vmatpush1.msra.mxu0 0.0
      %1674 = vmatprep.subr.mxu0 0.0
      %1675 = vmatpush1.msra.mxu0 0.0
      %1676 = vmatprep.subr.mxu0 0.0
      %1677 = vmatpush1.msra.mxu0 0.0
      %1678 = vmatprep.subr.mxu0 0.0
      %1679 = vmatpush1.msra.mxu0 0.0
      %1680 = vmatprep.subr.mxu0 0.0
      %1681 = vmatpush1.msra.mxu0 0.0
      %1682 = vmatprep.subr.mxu0 0.0
      %1683 = vmatpush1.msra.mxu0 0.0
      %1684 = vmatprep.subr.mxu0 0.0
      %1685 = vmatpush1.msra.mxu0 0.0
      %1686 = vmatprep.subr.mxu0 %v745
      %1687 = vmatpush1.msra.mxu0 %v744
      %1688 = vmatprep.subr.mxu0 0.0
      %1689 = vmatpush2.msra.mxu0 0.0
      %1690 = vmatprep.subr.mxu0 0.0
      %1691 = vmatpush2.msra.mxu0 0.0
      %1692 = vmatprep.subr.mxu0 0.0
      %1693 = vmatpush2.msra.mxu0 0.0
      %1694 = vmatprep.subr.mxu0 0.0
      %1695 = vmatpush2.msra.mxu0 0.0
      %1696 = vmatprep.subr.mxu0 0.0
      %1697 = vmatpush2.msra.mxu0 0.0
      %1698 = vmatprep.subr.mxu0 0.0
      %1699 = vmatpush2.msra.mxu0 0.0
      %1700 = vmatprep.subr.mxu0 0.0
      %1701 = vmatpush2.msra.mxu0 0.0
      %1702 = vmatprep.subr.mxu0 0.0
      %1703 = vmatpush2.msra.mxu0 0.0
      %1704 = vmatprep.subr.mxu0 0.0
      %1705 = vmatpush2.msra.mxu0 0.0
      %1706 = vmatprep.subr.mxu0 0.0
      %1707 = vmatpush2.msra.mxu0 0.0
      %1708 = vmatprep.subr.mxu0 0.0
      %1709 = vmatpush2.msra.mxu0 0.0
      %1710 = vmatprep.subr.mxu0 0.0
      %1711 = vmatpush2.msra.mxu0 0.0
      %1712 = vmatprep.subr.mxu0 0.0
      %1713 = vmatpush2.msra.mxu0 0.0
      %1714 = vmatprep.subr.mxu0 0.0
      %1715 = vmatpush2.msra.mxu0 0.0
      %1716 = vmatprep.subr.mxu0 0.0
      %1717 = vmatpush2.msra.mxu0 0.0
      %1718 = vmatprep.subr.mxu0 0.0
      %1719 = vmatpush2.msra.mxu0 0.0
      %1720 = vmatprep.mubr.f32.mxu0 0.0
      %1721 = vmatmul.mubr.f32.gmra.mxu0 %v1654
      %v1722 = vpop.f32.mrf.mxu0
      %v1723 = vadd.f32 0.0, %v1722
      %v1724 = vpop.f32.mrf.mxu0
      %v1725 = vadd.f32 0.0, %v1724
      %1726 = vdwg.mxu0
      %v1728 = vsel %vm1652, %v1645, 0
      %1730 = vmatprep.subr.mxu0 0.0
      %1731 = vmatpush1.msra.mxu0 0.0
      %1732 = vmatprep.subr.mxu0 0.0
      %1733 = vmatpush1.msra.mxu0 0.0
      %1734 = vmatprep.subr.mxu0 0.0
      %1735 = vmatpush1.msra.mxu0 0.0
      %1736 = vmatprep.subr.mxu0 0.0
      %1737 = vmatpush1.msra.mxu0 0.0
      %1738 = vmatprep.subr.mxu0 0.0
      %1739 = vmatpush1.msra.mxu0 0.0
      %1740 = vmatprep.subr.mxu0 0.0
      %1741 = vmatpush1.msra.mxu0 0.0
      %1742 = vmatprep.subr.mxu0 0.0
      %1743 = vmatpush1.msra.mxu0 0.0
      %1744 = vmatprep.subr.mxu0 0.0
      %1745 = vmatpush1.msra.mxu0 0.0
      %1746 = vmatprep.subr.mxu0 0.0
      %1747 = vmatpush1.msra.mxu0 0.0
      %1748 = vmatprep.subr.mxu0 0.0
      %1749 = vmatpush1.msra.mxu0 0.0
      %1750 = vmatprep.subr.mxu0 0.0
      %1751 = vmatpush1.msra.mxu0 0.0
      %1752 = vmatprep.subr.mxu0 0.0
      %1753 = vmatpush1.msra.mxu0 0.0
      %1754 = vmatprep.subr.mxu0 0.0
      %1755 = vmatpush1.msra.mxu0 0.0
      %1756 = vmatprep.subr.mxu0 0.0
      %1757 = vmatpush1.msra.mxu0 0.0
      %1758 = vmatprep.subr.mxu0 0.0
      %1759 = vmatpush1.msra.mxu0 0.0
      %1760 = vmatprep.subr.mxu0 %v747
      %1761 = vmatpush1.msra.mxu0 %v746
      %1762 = vmatprep.subr.mxu0 0.0
      %1763 = vmatpush2.msra.mxu0 0.0
      %1764 = vmatprep.subr.mxu0 0.0
      %1765 = vmatpush2.msra.mxu0 0.0
      %1766 = vmatprep.subr.mxu0 0.0
      %1767 = vmatpush2.msra.mxu0 0.0
      %1768 = vmatprep.subr.mxu0 0.0
      %1769 = vmatpush2.msra.mxu0 0.0
      %1770 = vmatprep.subr.mxu0 0.0
      %1771 = vmatpush2.msra.mxu0 0.0
      %1772 = vmatprep.subr.mxu0 0.0
      %1773 = vmatpush2.msra.mxu0 0.0
      %1774 = vmatprep.subr.mxu0 0.0
      %1775 = vmatpush2.msra.mxu0 0.0
      %1776 = vmatprep.subr.mxu0 0.0
      %1777 = vmatpush2.msra.mxu0 0.0
      %1778 = vmatprep.subr.mxu0 0.0
      %1779 = vmatpush2.msra.mxu0 0.0
      %1780 = vmatprep.subr.mxu0 0.0
      %1781 = vmatpush2.msra.mxu0 0.0
      %1782 = vmatprep.subr.mxu0 0.0
      %1783 = vmatpush2.msra.mxu0 0.0
      %1784 = vmatprep.subr.mxu0 0.0
      %1785 = vmatpush2.msra.mxu0 0.0
      %1786 = vmatprep.subr.mxu0 0.0
      %1787 = vmatpush2.msra.mxu0 0.0
      %1788 = vmatprep.subr.mxu0 0.0
      %1789 = vmatpush2.msra.mxu0 0.0
      %1790 = vmatprep.subr.mxu0 0.0
      %1791 = vmatpush2.msra.mxu0 0.0
      %1792 = vmatprep.subr.mxu0 0.0
      %1793 = vmatpush2.msra.mxu0 0.0
      %1794 = vmatprep.mubr.f32.mxu0 0.0
      %1795 = vmatmul.mubr.f32.gmra.mxu0 %v1728
      %v1796 = vpop.f32.mrf.mxu0
      %v1797 = vadd.f32 0.0, %v1796
      %v1798 = vpop.f32.mrf.mxu0
      %v1799 = vadd.f32 0.0, %v1798
      %1800 = vdwg.mxu0
      %v1802 = vsel %vm1652, %v1646, 0
      %1804 = vmatprep.subr.mxu0 0.0
      %1805 = vmatpush1.msra.mxu0 0.0
      %1806 = vmatprep.subr.mxu0 0.0
      %1807 = vmatpush1.msra.mxu0 0.0
      %1808 = vmatprep.subr.mxu0 0.0
      %1809 = vmatpush1.msra.mxu0 0.0
      %1810 = vmatprep.subr.mxu0 0.0
      %1811 = vmatpush1.msra.mxu0 0.0
      %1812 = vmatprep.subr.mxu0 0.0
      %1813 = vmatpush1.msra.mxu0 0.0
      %1814 = vmatprep.subr.mxu0 0.0
      %1815 = vmatpush1.msra.mxu0 0.0
      %1816 = vmatprep.subr.mxu0 0.0
      %1817 = vmatpush1.msra.mxu0 0.0
      %1818 = vmatprep.subr.mxu0 0.0
      %1819 = vmatpush1.msra.mxu0 0.0
      %1820 = vmatprep.subr.mxu0 0.0
      %1821 = vmatpush1.msra.mxu0 0.0
      %1822 = vmatprep.subr.mxu0 0.0
      %1823 = vmatpush1.msra.mxu0 0.0
      %1824 = vmatprep.subr.mxu0 0.0
      %1825 = vmatpush1.msra.mxu0 0.0
      %1826 = vmatprep.subr.mxu0 0.0
      %1827 = vmatpush1.msra.mxu0 0.0
      %1828 = vmatprep.subr.mxu0 0.0
      %1829 = vmatpush1.msra.mxu0 0.0
      %1830 = vmatprep.subr.mxu0 0.0
      %1831 = vmatpush1.msra.mxu0 0.0
      %1832 = vmatprep.subr.mxu0 0.0
      %1833 = vmatpush1.msra.mxu0 0.0
      %1834 = vmatprep.subr.mxu0 %v749
      %1835 = vmatpush1.msra.mxu0 %v748
      %1836 = vmatprep.subr.mxu0 0.0
      %1837 = vmatpush2.msra.mxu0 0.0
      %1838 = vmatprep.subr.mxu0 0.0
      %1839 = vmatpush2.msra.mxu0 0.0
      %1840 = vmatprep.subr.mxu0 0.0
      %1841 = vmatpush2.msra.mxu0 0.0
      %1842 = vmatprep.subr.mxu0 0.0
      %1843 = vmatpush2.msra.mxu0 0.0
      %1844 = vmatprep.subr.mxu0 0.0
      %1845 = vmatpush2.msra.mxu0 0.0
      %1846 = vmatprep.subr.mxu0 0.0
      %1847 = vmatpush2.msra.mxu0 0.0
      %1848 = vmatprep.subr.mxu0 0.0
      %1849 = vmatpush2.msra.mxu0 0.0
      %1850 = vmatprep.subr.mxu0 0.0
      %1851 = vmatpush2.msra.mxu0 0.0
      %1852 = vmatprep.subr.mxu0 0.0
      %1853 = vmatpush2.msra.mxu0 0.0
      %1854 = vmatprep.subr.mxu0 0.0
      %1855 = vmatpush2.msra.mxu0 0.0
      %1856 = vmatprep.subr.mxu0 0.0
      %1857 = vmatpush2.msra.mxu0 0.0
      %1858 = vmatprep.subr.mxu0 0.0
      %1859 = vmatpush2.msra.mxu0 0.0
      %1860 = vmatprep.subr.mxu0 0.0
      %1861 = vmatpush2.msra.mxu0 0.0
      %1862 = vmatprep.subr.mxu0 0.0
      %1863 = vmatpush2.msra.mxu0 0.0
      %1864 = vmatprep.subr.mxu0 0.0
      %1865 = vmatpush2.msra.mxu0 0.0
      %1866 = vmatprep.subr.mxu0 0.0
      %1867 = vmatpush2.msra.mxu0 0.0
      %1868 = vmatprep.mubr.f32.mxu0 0.0
      %1869 = vmatmul.mubr.f32.gmra.mxu0 %v1802
      %v1870 = vpop.f32.mrf.mxu0
      %v1871 = vadd.f32 0.0, %v1870
      %v1872 = vpop.f32.mrf.mxu0
      %v1873 = vadd.f32 0.0, %v1872
      %1874 = vdwg.mxu0
      %v1876 = vsel %vm1652, %v1647, 0
      %1878 = vmatprep.subr.mxu0 0.0
      %1879 = vmatpush1.msra.mxu0 0.0
      %1880 = vmatprep.subr.mxu0 0.0
      %1881 = vmatpush1.msra.mxu0 0.0
      %1882 = vmatprep.subr.mxu0 0.0
      %1883 = vmatpush1.msra.mxu0 0.0
      %1884 = vmatprep.subr.mxu0 0.0
      %1885 = vmatpush1.msra.mxu0 0.0
      %1886 = vmatprep.subr.mxu0 0.0
      %1887 = vmatpush1.msra.mxu0 0.0
      %1888 = vmatprep.subr.mxu0 0.0
      %1889 = vmatpush1.msra.mxu0 0.0
      %1890 = vmatprep.subr.mxu0 0.0
      %1891 = vmatpush1.msra.mxu0 0.0
      %1892 = vmatprep.subr.mxu0 0.0
      %1893 = vmatpush1.msra.mxu0 0.0
      %1894 = vmatprep.subr.mxu0 0.0
      %1895 = vmatpush1.msra.mxu0 0.0
      %1896 = vmatprep.subr.mxu0 0.0
      %1897 = vmatpush1.msra.mxu0 0.0
      %1898 = vmatprep.subr.mxu0 0.0
      %1899 = vmatpush1.msra.mxu0 0.0
      %1900 = vmatprep.subr.mxu0 0.0
      %1901 = vmatpush1.msra.mxu0 0.0
      %1902 = vmatprep.subr.mxu0 0.0
      %1903 = vmatpush1.msra.mxu0 0.0
      %1904 = vmatprep.subr.mxu0 0.0
      %1905 = vmatpush1.msra.mxu0 0.0
      %1906 = vmatprep.subr.mxu0 0.0
      %1907 = vmatpush1.msra.mxu0 0.0
      %1908 = vmatprep.subr.mxu0 %v751
      %1909 = vmatpush1.msra.mxu0 %v750
      %1910 = vmatprep.subr.mxu0 0.0
      %1911 = vmatpush2.msra.mxu0 0.0
      %1912 = vmatprep.subr.mxu0 0.0
      %1913 = vmatpush2.msra.mxu0 0.0
      %1914 = vmatprep.subr.mxu0 0.0
      %1915 = vmatpush2.msra.mxu0 0.0
      %1916 = vmatprep.subr.mxu0 0.0
      %1917 = vmatpush2.msra.mxu0 0.0
      %1918 = vmatprep.subr.mxu0 0.0
      %1919 = vmatpush2.msra.mxu0 0.0
      %1920 = vmatprep.subr.mxu0 0.0
      %1921 = vmatpush2.msra.mxu0 0.0
      %1922 = vmatprep.subr.mxu0 0.0
      %1923 = vmatpush2.msra.mxu0 0.0
      %1924 = vmatprep.subr.mxu0 0.0
      %1925 = vmatpush2.msra.mxu0 0.0
      %1926 = vmatprep.subr.mxu0 0.0
      %1927 = vmatpush2.msra.mxu0 0.0
      %1928 = vmatprep.subr.mxu0 0.0
      %1929 = vmatpush2.msra.mxu0 0.0
      %1930 = vmatprep.subr.mxu0 0.0
      %1931 = vmatpush2.msra.mxu0 0.0
      %1932 = vmatprep.subr.mxu0 0.0
      %1933 = vmatpush2.msra.mxu0 0.0
      %1934 = vmatprep.subr.mxu0 0.0
      %1935 = vmatpush2.msra.mxu0 0.0
      %1936 = vmatprep.subr.mxu0 0.0
      %1937 = vmatpush2.msra.mxu0 0.0
      %1938 = vmatprep.subr.mxu0 0.0
      %1939 = vmatpush2.msra.mxu0 0.0
      %1940 = vmatprep.subr.mxu0 0.0
      %1941 = vmatpush2.msra.mxu0 0.0
      %1942 = vmatprep.mubr.f32.mxu0 0.0
      %1943 = vmatmul.mubr.f32.gmra.mxu0 %v1876
      %v1944 = vpop.f32.mrf.mxu0
      %v1945 = vadd.f32 0.0, %v1944
      %v1946 = vpop.f32.mrf.mxu0
      %v1947 = vadd.f32 0.0, %v1946
      %1948 = vdwg.mxu0
      %v1950 = vsel %vm1652, %v1648, 0
      %1952 = vmatprep.subr.mxu0 0.0
      %1953 = vmatpush1.msra.mxu0 0.0
      %1954 = vmatprep.subr.mxu0 0.0
      %1955 = vmatpush1.msra.mxu0 0.0
      %1956 = vmatprep.subr.mxu0 0.0
      %1957 = vmatpush1.msra.mxu0 0.0
      %1958 = vmatprep.subr.mxu0 0.0
      %1959 = vmatpush1.msra.mxu0 0.0
      %1960 = vmatprep.subr.mxu0 0.0
      %1961 = vmatpush1.msra.mxu0 0.0
      %1962 = vmatprep.subr.mxu0 0.0
      %1963 = vmatpush1.msra.mxu0 0.0
      %1964 = vmatprep.subr.mxu0 0.0
      %1965 = vmatpush1.msra.mxu0 0.0
      %1966 = vmatprep.subr.mxu0 0.0
      %1967 = vmatpush1.msra.mxu0 0.0
      %1968 = vmatprep.subr.mxu0 0.0
      %1969 = vmatpush1.msra.mxu0 0.0
      %1970 = vmatprep.subr.mxu0 0.0
      %1971 = vmatpush1.msra.mxu0 0.0
      %1972 = vmatprep.subr.mxu0 0.0
      %1973 = vmatpush1.msra.mxu0 0.0
      %1974 = vmatprep.subr.mxu0 0.0
      %1975 = vmatpush1.msra.mxu0 0.0
      %1976 = vmatprep.subr.mxu0 0.0
      %1977 = vmatpush1.msra.mxu0 0.0
      %1978 = vmatprep.subr.mxu0 0.0
      %1979 = vmatpush1.msra.mxu0 0.0
      %1980 = vmatprep.subr.mxu0 0.0
      %1981 = vmatpush1.msra.mxu0 0.0
      %1982 = vmatprep.subr.mxu0 %v753
      %1983 = vmatpush1.msra.mxu0 %v752
      %1984 = vmatprep.subr.mxu0 0.0
      %1985 = vmatpush2.msra.mxu0 0.0
      %1986 = vmatprep.subr.mxu0 0.0
      %1987 = vmatpush2.msra.mxu0 0.0
      %1988 = vmatprep.subr.mxu0 0.0
      %1989 = vmatpush2.msra.mxu0 0.0
      %1990 = vmatprep.subr.mxu0 0.0
      %1991 = vmatpush2.msra.mxu0 0.0
      %1992 = vmatprep.subr.mxu0 0.0
      %1993 = vmatpush2.msra.mxu0 0.0
      %1994 = vmatprep.subr.mxu0 0.0
      %1995 = vmatpush2.msra.mxu0 0.0
      %1996 = vmatprep.subr.mxu0 0.0
      %1997 = vmatpush2.msra.mxu0 0.0
      %1998 = vmatprep.subr.mxu0 0.0
      %1999 = vmatpush2.msra.mxu0 0.0
      %2000 = vmatprep.subr.mxu0 0.0
      %2001 = vmatpush2.msra.mxu0 0.0
      %2002 = vmatprep.subr.mxu0 0.0
      %2003 = vmatpush2.msra.mxu0 0.0
      %2004 = vmatprep.subr.mxu0 0.0
      %2005 = vmatpush2.msra.mxu0 0.0
      %2006 = vmatprep.subr.mxu0 0.0
      %2007 = vmatpush2.msra.mxu0 0.0
      %2008 = vmatprep.subr.mxu0 0.0
      %2009 = vmatpush2.msra.mxu0 0.0
      %2010 = vmatprep.subr.mxu0 0.0
      %2011 = vmatpush2.msra.mxu0 0.0
      %2012 = vmatprep.subr.mxu0 0.0
      %2013 = vmatpush2.msra.mxu0 0.0
      %2014 = vmatprep.subr.mxu0 0.0
      %2015 = vmatpush2.msra.mxu0 0.0
      %2016 = vmatprep.mubr.f32.mxu0 0.0
      %2017 = vmatmul.mubr.f32.gmra.mxu0 %v1950
      %v2018 = vpop.f32.mrf.mxu0
      %v2019 = vadd.f32 0.0, %v2018
      %v2020 = vpop.f32.mrf.mxu0
      %v2021 = vadd.f32 0.0, %v2020
      %2022 = vdwg.mxu0
      %v2024 = vsel %vm1652, %v1649, 0
      %2026 = vmatprep.subr.mxu0 0.0
      %2027 = vmatpush1.msra.mxu0 0.0
      %2028 = vmatprep.subr.mxu0 0.0
      %2029 = vmatpush1.msra.mxu0 0.0
      %2030 = vmatprep.subr.mxu0 0.0
      %2031 = vmatpush1.msra.mxu0 0.0
      %2032 = vmatprep.subr.mxu0 0.0
      %2033 = vmatpush1.msra.mxu0 0.0
      %2034 = vmatprep.subr.mxu0 0.0
      %2035 = vmatpush1.msra.mxu0 0.0
      %2036 = vmatprep.subr.mxu0 0.0
      %2037 = vmatpush1.msra.mxu0 0.0
      %2038 = vmatprep.subr.mxu0 0.0
      %2039 = vmatpush1.msra.mxu0 0.0
      %2040 = vmatprep.subr.mxu0 0.0
      %2041 = vmatpush1.msra.mxu0 0.0
      %2042 = vmatprep.subr.mxu0 0.0
      %2043 = vmatpush1.msra.mxu0 0.0
      %2044 = vmatprep.subr.mxu0 0.0
      %2045 = vmatpush1.msra.mxu0 0.0
      %2046 = vmatprep.subr.mxu0 0.0
      %2047 = vmatpush1.msra.mxu0 0.0
      %2048 = vmatprep.subr.mxu0 0.0
      %2049 = vmatpush1.msra.mxu0 0.0
      %2050 = vmatprep.subr.mxu0 0.0
      %2051 = vmatpush1.msra.mxu0 0.0
      %2052 = vmatprep.subr.mxu0 0.0
      %2053 = vmatpush1.msra.mxu0 0.0
      %2054 = vmatprep.subr.mxu0 0.0
      %2055 = vmatpush1.msra.mxu0 0.0
      %2056 = vmatprep.subr.mxu0 %v755
      %2057 = vmatpush1.msra.mxu0 %v754
      %2058 = vmatprep.subr.mxu0 0.0
      %2059 = vmatpush2.msra.mxu0 0.0
      %2060 = vmatprep.subr.mxu0 0.0
      %2061 = vmatpush2.msra.mxu0 0.0
      %2062 = vmatprep.subr.mxu0 0.0
      %2063 = vmatpush2.msra.mxu0 0.0
      %2064 = vmatprep.subr.mxu0 0.0
      %2065 = vmatpush2.msra.mxu0 0.0
      %2066 = vmatprep.subr.mxu0 0.0
      %2067 = vmatpush2.msra.mxu0 0.0
      %2068 = vmatprep.subr.mxu0 0.0
      %2069 = vmatpush2.msra.mxu0 0.0
      %2070 = vmatprep.subr.mxu0 0.0
      %2071 = vmatpush2.msra.mxu0 0.0
      %2072 = vmatprep.subr.mxu0 0.0
      %2073 = vmatpush2.msra.mxu0 0.0
      %2074 = vmatprep.subr.mxu0 0.0
      %2075 = vmatpush2.msra.mxu0 0.0
      %2076 = vmatprep.subr.mxu0 0.0
      %2077 = vmatpush2.msra.mxu0 0.0
      %2078 = vmatprep.subr.mxu0 0.0
      %2079 = vmatpush2.msra.mxu0 0.0
      %2080 = vmatprep.subr.mxu0 0.0
      %2081 = vmatpush2.msra.mxu0 0.0
      %2082 = vmatprep.subr.mxu0 0.0
      %2083 = vmatpush2.msra.mxu0 0.0
      %2084 = vmatprep.subr.mxu0 0.0
      %2085 = vmatpush2.msra.mxu0 0.0
      %2086 = vmatprep.subr.mxu0 0.0
      %2087 = vmatpush2.msra.mxu0 0.0
      %2088 = vmatprep.subr.mxu0 0.0
      %2089 = vmatpush2.msra.mxu0 0.0
      %2090 = vmatprep.mubr.f32.mxu0 0.0
      %2091 = vmatmul.mubr.f32.gmra.mxu0 %v2024
      %v2092 = vpop.f32.mrf.mxu0
      %v2093 = vadd.f32 0.0, %v2092
      %v2094 = vpop.f32.mrf.mxu0
      %v2095 = vadd.f32 0.0, %v2094
      %2096 = vdwg.mxu0
      %v2098 = vsel %vm1652, %v1650, 0
      %2100 = vmatprep.subr.mxu0 0.0
      %2101 = vmatpush1.msra.mxu0 0.0
      %2102 = vmatprep.subr.mxu0 0.0
      %2103 = vmatpush1.msra.mxu0 0.0
      %2104 = vmatprep.subr.mxu0 0.0
      %2105 = vmatpush1.msra.mxu0 0.0
      %2106 = vmatprep.subr.mxu0 0.0
      %2107 = vmatpush1.msra.mxu0 0.0
      %2108 = vmatprep.subr.mxu0 0.0
      %2109 = vmatpush1.msra.mxu0 0.0
      %2110 = vmatprep.subr.mxu0 0.0
      %2111 = vmatpush1.msra.mxu0 0.0
      %2112 = vmatprep.subr.mxu0 0.0
      %2113 = vmatpush1.msra.mxu0 0.0
      %2114 = vmatprep.subr.mxu0 0.0
      %2115 = vmatpush1.msra.mxu0 0.0
      %2116 = vmatprep.subr.mxu0 0.0
      %2117 = vmatpush1.msra.mxu0 0.0
      %2118 = vmatprep.subr.mxu0 0.0
      %2119 = vmatpush1.msra.mxu0 0.0
      %2120 = vmatprep.subr.mxu0 0.0
      %2121 = vmatpush1.msra.mxu0 0.0
      %2122 = vmatprep.subr.mxu0 0.0
      %2123 = vmatpush1.msra.mxu0 0.0
      %2124 = vmatprep.subr.mxu0 0.0
      %2125 = vmatpush1.msra.mxu0 0.0
      %2126 = vmatprep.subr.mxu0 0.0
      %2127 = vmatpush1.msra.mxu0 0.0
      %2128 = vmatprep.subr.mxu0 0.0
      %2129 = vmatpush1.msra.mxu0 0.0
      %2130 = vmatprep.subr.mxu0 %v757
      %2131 = vmatpush1.msra.mxu0 %v756
      %2132 = vmatprep.subr.mxu0 0.0
      %2133 = vmatpush2.msra.mxu0 0.0
      %2134 = vmatprep.subr.mxu0 0.0
      %2135 = vmatpush2.msra.mxu0 0.0
      %2136 = vmatprep.subr.mxu0 0.0
      %2137 = vmatpush2.msra.mxu0 0.0
      %2138 = vmatprep.subr.mxu0 0.0
      %2139 = vmatpush2.msra.mxu0 0.0
      %2140 = vmatprep.subr.mxu0 0.0
      %2141 = vmatpush2.msra.mxu0 0.0
      %2142 = vmatprep.subr.mxu0 0.0
      %2143 = vmatpush2.msra.mxu0 0.0
      %2144 = vmatprep.subr.mxu0 0.0
      %2145 = vmatpush2.msra.mxu0 0.0
      %2146 = vmatprep.subr.mxu0 0.0
      %2147 = vmatpush2.msra.mxu0 0.0
      %2148 = vmatprep.subr.mxu0 0.0
      %2149 = vmatpush2.msra.mxu0 0.0
      %2150 = vmatprep.subr.mxu0 0.0
      %2151 = vmatpush2.msra.mxu0 0.0
      %2152 = vmatprep.subr.mxu0 0.0
      %2153 = vmatpush2.msra.mxu0 0.0
      %2154 = vmatprep.subr.mxu0 0.0
      %2155 = vmatpush2.msra.mxu0 0.0
      %2156 = vmatprep.subr.mxu0 0.0
      %2157 = vmatpush2.msra.mxu0 0.0
      %2158 = vmatprep.subr.mxu0 0.0
      %2159 = vmatpush2.msra.mxu0 0.0
      %2160 = vmatprep.subr.mxu0 0.0
      %2161 = vmatpush2.msra.mxu0 0.0
      %2162 = vmatprep.subr.mxu0 0.0
      %2163 = vmatpush2.msra.mxu0 0.0
      %2164 = vmatprep.mubr.f32.mxu0 0.0
      %2165 = vmatmul.mubr.f32.gmra.mxu0 %v2098
      %v2166 = vpop.f32.mrf.mxu0
      %v2167 = vadd.f32 0.0, %v2166
      %v2168 = vpop.f32.mrf.mxu0
      %v2169 = vadd.f32 0.0, %v2168
      %2170 = vdwg.mxu0
      %v2172 = vsel %vm1652, %v1651, 0
      %2174 = vmatprep.subr.mxu0 0.0
      %2175 = vmatpush1.msra.mxu0 0.0
      %2176 = vmatprep.subr.mxu0 0.0
      %2177 = vmatpush1.msra.mxu0 0.0
      %2178 = vmatprep.subr.mxu0 0.0
      %2179 = vmatpush1.msra.mxu0 0.0
      %2180 = vmatprep.subr.mxu0 0.0
      %2181 = vmatpush1.msra.mxu0 0.0
      %2182 = vmatprep.subr.mxu0 0.0
      %2183 = vmatpush1.msra.mxu0 0.0
      %2184 = vmatprep.subr.mxu0 0.0
      %2185 = vmatpush1.msra.mxu0 0.0
      %2186 = vmatprep.subr.mxu0 0.0
      %2187 = vmatpush1.msra.mxu0 0.0
      %2188 = vmatprep.subr.mxu0 0.0
      %2189 = vmatpush1.msra.mxu0 0.0
      %2190 = vmatprep.subr.mxu0 0.0
      %2191 = vmatpush1.msra.mxu0 0.0
      %2192 = vmatprep.subr.mxu0 0.0
      %2193 = vmatpush1.msra.mxu0 0.0
      %2194 = vmatprep.subr.mxu0 0.0
      %2195 = vmatpush1.msra.mxu0 0.0
      %2196 = vmatprep.subr.mxu0 0.0
      %2197 = vmatpush1.msra.mxu0 0.0
      %2198 = vmatprep.subr.mxu0 0.0
      %2199 = vmatpush1.msra.mxu0 0.0
      %2200 = vmatprep.subr.mxu0 0.0
      %2201 = vmatpush1.msra.mxu0 0.0
      %2202 = vmatprep.subr.mxu0 0.0
      %2203 = vmatpush1.msra.mxu0 0.0
      %2204 = vmatprep.subr.mxu0 %v759
      %2205 = vmatpush1.msra.mxu0 %v758
      %2206 = vmatprep.subr.mxu0 0.0
      %2207 = vmatpush2.msra.mxu0 0.0
      %2208 = vmatprep.subr.mxu0 0.0
      %2209 = vmatpush2.msra.mxu0 0.0
      %2210 = vmatprep.subr.mxu0 0.0
      %2211 = vmatpush2.msra.mxu0 0.0
      %2212 = vmatprep.subr.mxu0 0.0
      %2213 = vmatpush2.msra.mxu0 0.0
      %2214 = vmatprep.subr.mxu0 0.0
      %2215 = vmatpush2.msra.mxu0 0.0
      %2216 = vmatprep.subr.mxu0 0.0
      %2217 = vmatpush2.msra.mxu0 0.0
      %2218 = vmatprep.subr.mxu0 0.0
      %2219 = vmatpush2.msra.mxu0 0.0
      %2220 = vmatprep.subr.mxu0 0.0
      %2221 = vmatpush2.msra.mxu0 0.0
      %2222 = vmatprep.subr.mxu0 0.0
      %2223 = vmatpush2.msra.mxu0 0.0
      %2224 = vmatprep.subr.mxu0 0.0
      %2225 = vmatpush2.msra.mxu0 0.0
      %2226 = vmatprep.subr.mxu0 0.0
      %2227 = vmatpush2.msra.mxu0 0.0
      %2228 = vmatprep.subr.mxu0 0.0
      %2229 = vmatpush2.msra.mxu0 0.0
      %2230 = vmatprep.subr.mxu0 0.0
      %2231 = vmatpush2.msra.mxu0 0.0
      %2232 = vmatprep.subr.mxu0 0.0
      %2233 = vmatpush2.msra.mxu0 0.0
      %2234 = vmatprep.subr.mxu0 0.0
      %2235 = vmatpush2.msra.mxu0 0.0
      %2236 = vmatprep.subr.mxu0 0.0
      %2237 = vmatpush2.msra.mxu0 0.0
      %2238 = vmatprep.mubr.f32.mxu0 0.0
      %2239 = vmatmul.mubr.f32.gmra.mxu0 %v2172
      %v2240 = vpop.f32.mrf.mxu0
      %v2241 = vadd.f32 0.0, %v2240
      %v2242 = vpop.f32.mrf.mxu0
      %v2243 = vadd.f32 0.0, %v2242
      %2244 = vdwg.mxu0
      %v2245 = vadd.f32 %v1723, 0.0
      %v2246 = vadd.f32 %v1725, 0.0
      %v2247 = vadd.f32 %v1797, 0.0
      %v2248 = vadd.f32 %v1799, 0.0
      %v2249 = vadd.f32 %v1871, 0.0
      %v2250 = vadd.f32 %v1873, 0.0
      %v2251 = vadd.f32 %v1945, 0.0
      %v2252 = vadd.f32 %v1947, 0.0
      %v2253 = vadd.f32 %v2019, 0.0
      %v2254 = vadd.f32 %v2021, 0.0
      %v2255 = vadd.f32 %v2093, 0.0
      %v2256 = vadd.f32 %v2095, 0.0
      %v2257 = vadd.f32 %v2167, 0.0
      %v2258 = vadd.f32 %v2169, 0.0
      %v2259 = vadd.f32 %v2241, 0.0
      %v2260 = vadd.f32 %v2243, 0.0
      %v2261 = vld [vmem:[%s9] sm:$0xff]
      %v2262 = vld [vmem:[%s9 + $0x8] sm:$0xff]
      %v2263 = vld [vmem:[%s9 + $0x10] sm:$0xff]
      %v2264 = vld [vmem:[%s9 + $0x18] sm:$0xff]
      %v2265 = vld [vmem:[%s9 + $0x20] sm:$0xff]
      %v2266 = vld [vmem:[%s9 + $0x28] sm:$0xff]
      %v2267 = vld [vmem:[%s9 + $0x30] sm:$0xff]
      %v2268 = vld [vmem:[%s9 + $0x38] sm:$0xff]
      %v2269 = vld [vmem:[%s9 + $0x40] sm:$0xff]
      %v2270 = vld [vmem:[%s9 + $0x48] sm:$0xff]
      %v2271 = vld [vmem:[%s9 + $0x50] sm:$0xff]
      %v2272 = vld [vmem:[%s9 + $0x58] sm:$0xff]
      %v2273 = vld [vmem:[%s9 + $0x60] sm:$0xff]
      %v2274 = vld [vmem:[%s9 + $0x68] sm:$0xff]
      %v2275 = vld [vmem:[%s9 + $0x70] sm:$0xff]
      %v2276 = vld [vmem:[%s9 + $0x78] sm:$0xff]
      %v2277 = vld [vmem:[%s10] sm:$0xff]
      %v2278 = vld [vmem:[%s10 + $0x8] sm:$0xff]
      %v2279 = vld [vmem:[%s10 + $0x10] sm:$0xff]
      %v2280 = vld [vmem:[%s10 + $0x18] sm:$0xff]
      %v2281 = vld [vmem:[%s10 + $0x20] sm:$0xff]
      %v2282 = vld [vmem:[%s10 + $0x28] sm:$0xff]
      %v2283 = vld [vmem:[%s10 + $0x30] sm:$0xff]
      %v2284 = vld [vmem:[%s10 + $0x38] sm:$0xff]
      %v2285 = vld [vmem:[%s10 + $0x40] sm:$0xff]
      %v2286 = vld [vmem:[%s10 + $0x48] sm:$0xff]
      %v2287 = vld [vmem:[%s10 + $0x50] sm:$0xff]
      %v2288 = vld [vmem:[%s10 + $0x58] sm:$0xff]
      %v2289 = vld [vmem:[%s10 + $0x60] sm:$0xff]
      %v2290 = vld [vmem:[%s10 + $0x68] sm:$0xff]
      %v2291 = vld [vmem:[%s10 + $0x70] sm:$0xff]
      %v2292 = vld [vmem:[%s10 + $0x78] sm:$0xff]
      %v2293 = vld [vmem:[%s10 + $0x80] sm:$0xff]
      %v2294 = vld [vmem:[%s10 + $0x88] sm:$0xff]
      %v2295 = vld [vmem:[%s10 + $0x90] sm:$0xff]
      %v2296 = vld [vmem:[%s10 + $0x98] sm:$0xff]
      %v2297 = vld [vmem:[%s10 + $0xa0] sm:$0xff]
      %v2298 = vld [vmem:[%s10 + $0xa8] sm:$0xff]
      %v2299 = vld [vmem:[%s10 + $0xb0] sm:$0xff]
      %v2300 = vld [vmem:[%s10 + $0xb8] sm:$0xff]
      %v2301 = vld [vmem:[%s10 + $0xc0] sm:$0xff]
      %v2302 = vld [vmem:[%s10 + $0xc8] sm:$0xff]
      %v2303 = vld [vmem:[%s10 + $0xd0] sm:$0xff]
      %v2304 = vld [vmem:[%s10 + $0xd8] sm:$0xff]
      %v2305 = vld [vmem:[%s10 + $0xe0] sm:$0xff]
      %v2306 = vld [vmem:[%s10 + $0xe8] sm:$0xff]
      %v2307 = vld [vmem:[%s10 + $0xf0] sm:$0xff]
      %v2308 = vld [vmem:[%s10 + $0xf8] sm:$0xff]
      %v2325 = vrot.slane %v2247, 7
      %vm2326 = vcmask 1041409
      %v2327 = vsel %vm2326, %v2325, %v2245
      %v2328 = vrot.slane %v2249, 6
      %vm2329 = vcmask 1042434
      %v2330 = vsel %vm2329, %v2328, %v2327
      %v2331 = vrot.slane %v2251, 5
      %vm2332 = vcmask 1043459
      %v2333 = vsel %vm2332, %v2331, %v2330
      %v2334 = vrot.slane %v2253, 4
      %vm2335 = vcmask 1044484
      %v2336 = vsel %vm2335, %v2334, %v2333
      %v2337 = vrot.slane %v2255, 3
      %vm2338 = vcmask 1045509
      %v2339 = vsel %vm2338, %v2337, %v2336
      %v2340 = vrot.slane %v2257, 2
      %vm2341 = vcmask 1046534
      %v2342 = vsel %vm2341, %v2340, %v2339
      %v2343 = vrot.slane %v2259, 1
      %vm2344 = vcmask 1047559
      %v2345 = vsel %vm2344, %v2343, %v2342
      %v2346 = vrot.slane %v2248, 7
      %v2347 = vsel %vm2326, %v2346, %v2246
      %v2348 = vrot.slane %v2250, 6
      %v2349 = vsel %vm2329, %v2348, %v2347
      %v2350 = vrot.slane %v2252, 5
      %v2351 = vsel %vm2332, %v2350, %v2349
      %v2352 = vrot.slane %v2254, 4
      %v2353 = vsel %vm2335, %v2352, %v2351
      %v2354 = vrot.slane %v2256, 3
      %v2355 = vsel %vm2338, %v2354, %v2353
      %v2356 = vrot.slane %v2258, 2
      %v2357 = vsel %vm2341, %v2356, %v2355
      %v2358 = vrot.slane %v2260, 1
      %v2359 = vsel %vm2344, %v2358, %v2357
      %2362 = vmatprep.subr.mxu0 0.0
      %2363 = vmatpush1.msra.mxu0 %v2292
      %2364 = vmatprep.subr.mxu0 0.0
      %2365 = vmatpush1.msra.mxu0 %v2291
      %2366 = vmatprep.subr.mxu0 0.0
      %2367 = vmatpush1.msra.mxu0 %v2290
      %2368 = vmatprep.subr.mxu0 0.0
      %2369 = vmatpush1.msra.mxu0 %v2289
      %2370 = vmatprep.subr.mxu0 0.0
      %2371 = vmatpush1.msra.mxu0 %v2288
      %2372 = vmatprep.subr.mxu0 0.0
      %2373 = vmatpush1.msra.mxu0 %v2287
      %2374 = vmatprep.subr.mxu0 0.0
      %2375 = vmatpush1.msra.mxu0 %v2286
      %2376 = vmatprep.subr.mxu0 0.0
      %2377 = vmatpush1.msra.mxu0 %v2285
      %2378 = vmatprep.subr.mxu0 0.0
      %2379 = vmatpush1.msra.mxu0 %v2284
      %2380 = vmatprep.subr.mxu0 0.0
      %2381 = vmatpush1.msra.mxu0 %v2283
      %2382 = vmatprep.subr.mxu0 0.0
      %2383 = vmatpush1.msra.mxu0 %v2282
      %2384 = vmatprep.subr.mxu0 0.0
      %2385 = vmatpush1.msra.mxu0 %v2281
      %2386 = vmatprep.subr.mxu0 0.0
      %2387 = vmatpush1.msra.mxu0 %v2280
      %2388 = vmatprep.subr.mxu0 0.0
      %2389 = vmatpush1.msra.mxu0 %v2279
      %2390 = vmatprep.subr.mxu0 0.0
      %2391 = vmatpush1.msra.mxu0 %v2278
      %2392 = vmatprep.subr.mxu0 0.0
      %2393 = vmatpush1.msra.mxu0 %v2277
      %2394 = vmatprep.subr.mxu0 0.0
      %2395 = vmatpush2.msra.mxu0 %v2308
      %2396 = vmatprep.subr.mxu0 0.0
      %2397 = vmatpush2.msra.mxu0 %v2307
      %2398 = vmatprep.subr.mxu0 0.0
      %2399 = vmatpush2.msra.mxu0 %v2306
      %2400 = vmatprep.subr.mxu0 0.0
      %2401 = vmatpush2.msra.mxu0 %v2305
      %2402 = vmatprep.subr.mxu0 0.0
      %2403 = vmatpush2.msra.mxu0 %v2304
      %2404 = vmatprep.subr.mxu0 0.0
      %2405 = vmatpush2.msra.mxu0 %v2303
      %2406 = vmatprep.subr.mxu0 0.0
      %2407 = vmatpush2.msra.mxu0 %v2302
      %2408 = vmatprep.subr.mxu0 0.0
      %2409 = vmatpush2.msra.mxu0 %v2301
      %2410 = vmatprep.subr.mxu0 0.0
      %2411 = vmatpush2.msra.mxu0 %v2300
      %2412 = vmatprep.subr.mxu0 0.0
      %2413 = vmatpush2.msra.mxu0 %v2299
      %2414 = vmatprep.subr.mxu0 0.0
      %2415 = vmatpush2.msra.mxu0 %v2298
      %2416 = vmatprep.subr.mxu0 0.0
      %2417 = vmatpush2.msra.mxu0 %v2297
      %2418 = vmatprep.subr.mxu0 0.0
      %2419 = vmatpush2.msra.mxu0 %v2296
      %2420 = vmatprep.subr.mxu0 0.0
      %2421 = vmatpush2.msra.mxu0 %v2295
      %2422 = vmatprep.subr.mxu0 0.0
      %2423 = vmatpush2.msra.mxu0 %v2294
      %2424 = vmatprep.subr.mxu0 0.0
      %2425 = vmatpush2.msra.mxu0 %v2293
      %2426 = vmatprep.mubr.f32.mxu0 %v2359
      %2427 = vmatmul.mubr.f32.gmra.mxu0 %v2345
      %v2428 = vpop.f32.mrf.mxu0
      %v2429 = vadd.f32 0.0, %v2428
      %v2430 = vpop.f32.mrf.mxu0
      %2431 = vdwg.mxu0
      %2432 = vmatprep.subr.mxu0 0.0
      %2433 = vmatpush1.msra.mxu0 %v2276
      %2434 = vmatprep.subr.mxu0 0.0
      %2435 = vmatpush1.msra.mxu0 %v2275
      %2436 = vmatprep.subr.mxu0 0.0
      %2437 = vmatpush1.msra.mxu0 %v2274
      %2438 = vmatprep.subr.mxu0 0.0
      %2439 = vmatpush1.msra.mxu0 %v2273
      %2440 = vmatprep.subr.mxu0 0.0
      %2441 = vmatpush1.msra.mxu0 %v2272
      %2442 = vmatprep.subr.mxu0 0.0
      %2443 = vmatpush1.msra.mxu0 %v2271
      %2444 = vmatprep.subr.mxu0 0.0
      %2445 = vmatpush1.msra.mxu0 %v2270
      %2446 = vmatprep.subr.mxu0 0.0
      %2447 = vmatpush1.msra.mxu0 %v2269
      %2448 = vmatprep.subr.mxu0 0.0
      %2449 = vmatpush1.msra.mxu0 %v2268
      %2450 = vmatprep.subr.mxu0 0.0
      %2451 = vmatpush1.msra.mxu0 %v2267
      %2452 = vmatprep.subr.mxu0 0.0
      %2453 = vmatpush1.msra.mxu0 %v2266
      %2454 = vmatprep.subr.mxu0 0.0
      %2455 = vmatpush1.msra.mxu0 %v2265
      %2456 = vmatprep.subr.mxu0 0.0
      %2457 = vmatpush1.msra.mxu0 %v2264
      %2458 = vmatprep.subr.mxu0 0.0
      %2459 = vmatpush1.msra.mxu0 %v2263
      %2460 = vmatprep.subr.mxu0 0.0
      %2461 = vmatpush1.msra.mxu0 %v2262
      %2462 = vmatprep.subr.mxu0 0.0
      %2463 = vmatpush1.msra.mxu0 %v2261
      %2464 = vmatprep.subr.mxu0 0.0
      %2465 = vmatpush2.msra.mxu0 0.0
      %2466 = vmatprep.subr.mxu0 0.0
      %2467 = vmatpush2.msra.mxu0 0.0
      %2468 = vmatprep.subr.mxu0 0.0
      %2469 = vmatpush2.msra.mxu0 0.0
      %2470 = vmatprep.subr.mxu0 0.0
      %2471 = vmatpush2.msra.mxu0 0.0
      %2472 = vmatprep.subr.mxu0 0.0
      %2473 = vmatpush2.msra.mxu0 0.0
      %2474 = vmatprep.subr.mxu0 0.0
      %2475 = vmatpush2.msra.mxu0 0.0
      %2476 = vmatprep.subr.mxu0 0.0
      %2477 = vmatpush2.msra.mxu0 0.0
      %2478 = vmatprep.subr.mxu0 0.0
      %2479 = vmatpush2.msra.mxu0 0.0
      %2480 = vmatprep.subr.mxu0 0.0
      %2481 = vmatpush2.msra.mxu0 0.0
      %2482 = vmatprep.subr.mxu0 0.0
      %2483 = vmatpush2.msra.mxu0 0.0
      %2484 = vmatprep.subr.mxu0 0.0
      %2485 = vmatpush2.msra.mxu0 0.0
      %2486 = vmatprep.subr.mxu0 0.0
      %2487 = vmatpush2.msra.mxu0 0.0
      %2488 = vmatprep.subr.mxu0 0.0
      %2489 = vmatpush2.msra.mxu0 0.0
      %2490 = vmatprep.subr.mxu0 0.0
      %2491 = vmatpush2.msra.mxu0 0.0
      %2492 = vmatprep.subr.mxu0 0.0
      %2493 = vmatpush2.msra.mxu0 0.0
      %2494 = vmatprep.subr.mxu0 0.0
      %2495 = vmatpush2.msra.mxu0 0.0
      %2496 = vmatprep.mubr.f32.mxu0 0.0
      %2497 = vmatmul.mubr.f32.gmra.mxu0 %v742
      %v2498 = vpop.f32.mrf.mxu0
      %v2499 = vadd.f32 %v2429, %v2498
      %v2500 = vpop.f32.mrf.mxu0
      %2501 = vdwg.mxu0
      %v2502 = vld [vmem:[%s11] sm:$0x1]
      %v2504 = vlaneseq
      %v2505 = vshrl.u32 %v2504, 7
      %v2506 = vsub.s32 0, %v2505
      %v2507 = vrot.slane %v2502, %v2506
      %v2509 = vadd.f32 %v2499, %v2507
      %v2510 = vtanh.pop %v2509
      %2511 = vst [vmem:[%s411] sm:$0xff] %v2510
      %p2512 = scmp.lt.s32.totalorder %s23, 7
      %s2513 = scalar_select %p2512, %s23, 7
      %s2514 = smul.addr %s2513, 8
      %s2515 = scalar_lea.vmem %s12, %s2514
      // Predicated region
      $region73: #{seq2seq_forward.6} parent=67 // pred_check
        %p2516 = pneg %p298
      $region74: #{seq2seq_forward.6} parent=67 // pred_check_branch
        %2518 = sbr.rel (%p2516) target = $region76
      $region75: #{seq2seq_forward.6} parent=67 // pred_region
        _
      $region76: #{seq2seq_forward.6} parent=67 // pred_fallthru
        _
    $region68: #{seq2seq_forward.6} parent=5 // pred_fallthru
      _
    %p2519 = scmp.le.s32.totalorder 2, %s18
    // Predicated region
    $region77: #{seq2seq_forward.6} parent=5 // pred_check
      %p2520 = pneg %p2519
    $region78: #{seq2seq_forward.6} parent=5 // pred_check_branch
      %2522 = sbr.rel (%p2520) target = $region80
    $region79: #{seq2seq_forward.6} parent=5 // pred_region
      %s2523 = ssub.s32 %s18, 2
      // Predicated region
      $region81: #{seq2seq_forward.6} parent=79 // pred_check
        %p2524 = pneg %p304
      $region82: #{seq2seq_forward.6} parent=79 // pred_check_branch
        %2526 = sbr.rel (%p2524) target = $region84
      $region83: #{seq2seq_forward.6} parent=79 // pred_region
        %p2527 = scmp.lt.s32.totalorder %s24, 7
        %s2528 = scalar_select %p2527, %s24, 7
        %s2529 = smul.addr %s2528, 8
        %s2530 = scalar_lea.vmem %s12, %s2529
      $region84: #{seq2seq_forward.6} parent=79 // pred_fallthru
        _
    $region80: #{seq2seq_forward.6} parent=5 // pred_fallthru
      _
  $region6: #{seq2seq_forward.6} parent=0 // loop_footer
    %s22 = sadd.s32 1, %s18
  $region7: #{seq2seq_forward.6} parent=0 // loop_footer_branch
    %17 = sbr.rel target = $region3
  $region8: #{seq2seq_forward.6} parent=0 // loop_exit
    _

</llo_original>
